<compile_context>
chip_gen: v7x
topology: tpu7x:2x2x1
jax: 0.10.0
libtpu: 0.0.40
codegen_flags: <defaults>
</compile_context>

<pallas_src>
import functools

import jax
import jax.numpy as jnp
import numpy as np
from jax.experimental import pallas as pl
from jax.experimental.pallas import tpu as pltpu


# ----------------------------- shape helpers --------------------------------
def conv_out_sizes(h, w):
    h1, w1 = (h - 8) // 4 + 1, (w - 8) // 4 + 1   # conv1: k=8, s=4
    h2, w2 = (h1 - 4) // 2 + 1, (w1 - 4) // 2 + 1  # conv2: k=4, s=2
    h3, w3 = (h2 - 3) // 1 + 1, (w2 - 3) // 1 + 1  # conv3: k=3, s=1
    return (h1, w1), (h2, w2), (h3, w3)


# ----------------------------- fused Pallas kernel ---------------------------
def _fused_forward_kernel(cols1_ref, w1_ref, b1_ref, w2_ref, b2_ref,
                          w3_ref, b3_ref, wl1_ref, bl1_ref, wl2_ref, bl2_ref,
                          out_ref, *, tb, ph1, pw1, h2, w2, h3, w3):
    """Whole ConvQNetwork forward for one batch tile of `tb` samples.

    cols1_ref: (4*ph1*pw1*tb, 8*8*C) bf16 conv1 patches, rows ordered
               (phase f, a, b, sample) with f=(ho%2)*2+(wo%2), ho=2a+f//2,
               wo=2b+f%2 and sample varying fastest (so all downstream gathers
               are contiguous, 8-aligned row chunks).
    Weights are bf16 GEMM layout; biases are (1, N) f32.
    """
    bf16 = jnp.bfloat16

    def gather(src, offsets, chunk):
        """Concatenate contiguous row chunks of a VMEM-resident value."""
        parts = [src[o:o + chunk, :] for o in offsets]
        return parts[0] if len(parts) == 1 else jnp.concatenate(parts, axis=0)

    # ---- conv1 (8x8, s4) + ReLU: ONE GEMM over all phases & samples --------
    y1 = jnp.dot(cols1_ref[...], w1_ref[...],
                 preferred_element_type=jnp.float32)
    y1 = jnp.maximum(y1 + b1_ref[...], 0.0)           # (4*ph1*pw1*tb, 32) f32

    plane = ph1 * pw1 * tb                             # rows per conv1 phase

    # ---- conv2 (4x4, s2) + ReLU: value-based im2col (no scratch) ------------
    taps = []
    for kh in range(4):
        for kw in range(4):
            f = (kh % 2) * 2 + (kw % 2)
            offs = [f * plane + ((ho2 + kh // 2) * pw1 + kw // 2) * tb
                    for ho2 in range(h2)]
            taps.append(gather(y1, offs, w2 * tb))     # (h2*w2*tb, 32)
    cols2 = jnp.concatenate(taps, axis=1).astype(bf16)  # (h2*w2*tb, 4*4*32)
    y2 = jnp.dot(cols2, w2_ref[...], preferred_element_type=jnp.float32)
    y2 = jnp.maximum(y2 + b2_ref[...], 0.0)            # (h2*w2*tb, 64) f32

    # ---- conv3 (3x3, s1) + ReLU ---------------------------------------------
    taps = []
    for kh in range(3):
        for kw in range(3):
            offs = [((ho3 + kh) * w2 + kw) * tb for ho3 in range(h3)]
            taps.append(gather(y2, offs, w3 * tb))     # (h3*w3*tb, 64)
    cols3 = jnp.concatenate(taps, axis=1).astype(bf16)  # (h3*w3*tb, 3*3*64)
    y3 = jnp.dot(cols3, w3_ref[...], preferred_element_type=jnp.float32)
    y3 = jnp.maximum(y3 + b3_ref[...], 0.0)            # (h3*w3*tb, 64) f32

    # ---- flatten (p, sample, c) -> (sample, p*c) via lane concat ------------
    # wl1 columns were pre-permuted to (h3, w3, c) order, so this matches the
    # PyTorch NCHW flatten with no transpose.
    flat = jnp.concatenate([y3[p * tb:(p + 1) * tb, :] for p in range(h3 * w3)],
                           axis=1).astype(bf16)        # (tb, h3*w3*64)
    hfc = jnp.dot(flat, wl1_ref[...], preferred_element_type=jnp.float32)
    hfc = jnp.maximum(hfc + bl1_ref[...], 0.0)         # (tb, 512) f32

    # ---- final linear, padded to 128 lanes (lane-dense output store) --------
    q = jnp.dot(hfc.astype(bf16), wl2_ref[...],
                preferred_element_type=jnp.float32) + bl2_ref[...]
    out_ref[...] = q                                   # (tb, n_pad) f32


# ----------------------------- host-side glue --------------------------------
def _conv1_patches_phase_batched(x_bhwc, h1, w1, tb):
    """conv1 im2col (k=8, s=4), columns ordered (kh, kw, c); rows ordered
    (batch_tile, phase, a, b, sample).  Output: (B//tb * 4*ph1*pw1*tb, 8*8*C)."""
    k, s = 8, 4
    B, _, _, c = x_bhwc.shape
    patches = [x_bhwc[:, kh:kh + (h1 - 1) * s + 1:s,
                      kw:kw + (w1 - 1) * s + 1:s, :]
               for kh in range(k) for kw in range(k)]          # (B, h1, w1, C)
    cols = jnp.concatenate(patches, axis=-1)                   # (B, h1, w1, K1)
    ph1, pw1 = h1 // 2, w1 // 2
    cols = cols.reshape(B // tb, tb, ph1, 2, pw1, 2, k * k * c)
    cols = cols.transpose(0, 3, 5, 2, 4, 1, 6)   # (nt, fh, fw, a, b, sample, K1)
    return cols.reshape((B // tb) * 4 * ph1 * pw1 * tb, k * k * c)


def prepare_params(params, input_shape, num_actions):
    """One-time conversion of PyTorch-layout params into bf16 GEMM operands."""
    c, h, w = input_shape
    (_, _), (_, _), (h3, w3) = conv_out_sizes(h, w)
    n_pad = ((num_actions + 127) // 128) * 128
    f32 = lambda a: a.astype(jnp.float32)
    bf16 = lambda a: a.astype(jnp.bfloat16)
    g = {}
    # conv weights: OIHW -> (kh*kw*cin, cout); 1/255 folded into conv1.
    g["w1"] = bf16((f32(params["w1"]) / 255.0)
                   .transpose(2, 3, 1, 0).reshape(8 * 8 * c, 32))
    g["w2"] = bf16(f32(params["w2"]).transpose(2, 3, 1, 0).reshape(4 * 4 * 32, 64))
    g["w3"] = bf16(f32(params["w3"]).transpose(2, 3, 1, 0).reshape(3 * 3 * 64, 64))
    # fc1: permute columns from PyTorch (c, h3, w3) flatten to (h3, w3, c).
    g["wl1"] = bf16(f32(params["wl1"]).reshape(512, 64, h3, w3)
                    .transpose(2, 3, 1, 0).reshape(h3 * w3 * 64, 512))
    # fc2: transpose + pad N to a full 128-lane slab.
    g["wl2"] = bf16(jnp.pad(f32(params["wl2"]).T,
                            ((0, 0), (0, n_pad - num_actions))))
    g["b1"] = f32(params["b1"]).reshape(1, 32)
    g["b2"] = f32(params["b2"]).reshape(1, 64)
    g["b3"] = f32(params["b3"]).reshape(1, 64)
    g["bl1"] = f32(params["bl1"]).reshape(1, 512)
    g["bl2"] = jnp.pad(f32(params["bl2"]), (0, n_pad - num_actions)).reshape(1, n_pad)
    return g


def make_forward(input_shape, num_actions, batch_tile=8):
    """Builds a jitted forward(prepped_params, x_nchw) -> (B, num_actions).

    batch_tile: samples per grid step (multiple of 8). Use ~64-128 on v7x
    (64 MiB VMEM) and ~128-256 on v5e/v6e; keep the grid length >= 2.
    """
    c, h, w = input_shape
    (h1, w1), (h2, w2), (h3, w3) = conv_out_sizes(h, w)
    assert h2 >= 3 and w2 >= 3, "input spatial size too small for the conv stack"
    assert h1 % 2 == 0 and w1 % 2 == 0, "conv1 output must be even for phase split"
    tb = int(batch_tile)
    assert tb % 8 == 0, "batch_tile must be a multiple of 8 (sublane alignment)"
    ph1, pw1 = h1 // 2, w1 // 2
    k1 = 8 * 8 * c
    rows1 = 4 * ph1 * pw1 * tb
    n_pad = ((num_actions + 127) // 128) * 128

    kernel = functools.partial(_fused_forward_kernel, tb=tb, ph1=ph1, pw1=pw1,
                               h2=h2, w2=w2, h3=h3, w3=w3)

    def _const_spec(arr):
        nd = arr.ndim
        return pl.BlockSpec(arr.shape, lambda t, _n=nd: (0,) * _n)

    # Per-sample MACs (for the XLA scheduling cost hint).
    macs = (4 * ph1 * pw1 * k1 * 32 + h2 * w2 * (4 * 4 * 32) * 64
            + h3 * w3 * (3 * 3 * 64) * 64 + (h3 * w3 * 64) * 512 + 512 * n_pad)

    def forward(g, x_nchw):
        B = x_nchw.shape[0]
        nt = -(-B // tb)                      # cdiv
        Bp = nt * tb
        x = x_nchw
        if Bp != B:                           # pad batch to a whole tile
            x = jnp.pad(x, ((0, Bp - B), (0, 0), (0, 0), (0, 0)))
        xh = jnp.transpose(x, (0, 2, 3, 1)).astype(jnp.bfloat16)   # NCHW->NHWC
        cols1 = _conv1_patches_phase_batched(xh, h1, w1, tb)       # (nt*rows1, k1)

        weight_bytes = sum(int(np.prod(a.shape)) * int(np.dtype(a.dtype).itemsize)
                           for a in g.values())
        cost = pl.CostEstimate(
            flops=2 * Bp * macs, transcendentals=0,
            bytes_accessed=int(cols1.size) * 2 + Bp * n_pad * 4 + weight_bytes)

        out = pl.pallas_call(
            kernel,
            out_shape=jax.ShapeDtypeStruct((Bp, n_pad), jnp.float32),
            grid_spec=pltpu.PrefetchScalarGridSpec(
                num_scalar_prefetch=0,
                grid=(nt,),
                in_specs=[
                    pl.BlockSpec((rows1, k1), lambda t: (t, 0)),
                    _const_spec(g["w1"]), _const_spec(g["b1"]),
                    _const_spec(g["w2"]), _const_spec(g["b2"]),
                    _const_spec(g["w3"]), _const_spec(g["b3"]),
                    _const_spec(g["wl1"]), _const_spec(g["bl1"]),
                    _const_spec(g["wl2"]), _const_spec(g["bl2"]),
                ],
                out_specs=pl.BlockSpec((tb, n_pad), lambda t: (t, 0)),
            ),
            compiler_params=pltpu.CompilerParams(
                dimension_semantics=("parallel",),
                vmem_limit_bytes=32 * 1024 * 1024,   # safe on v7x's 64 MiB VMEM
            ),
            cost_estimate=cost,
        )(cols1, g["w1"], g["b1"], g["w2"], g["b2"], g["w3"], g["b3"],
          g["wl1"], g["bl1"], g["wl2"], g["bl2"])
        return out[:B, :num_actions]

    return jax.jit(forward)


# ----------------------------- reference & init ------------------------------
def reference_forward(params, x_nchw):
    """Pure-JAX f32 reference with exact PyTorch semantics."""
    x = x_nchw.astype(jnp.float32) / 255.0

    def conv_relu(x, wt, b, s):
        y = jax.lax.conv_general_dilated(
            x, wt.astype(jnp.float32), window_strides=(s, s), padding="VALID",
            dimension_numbers=("NCHW", "OIHW", "NCHW"))
        return jnp.maximum(y + b.astype(jnp.float32)[None, :, None, None], 0.0)

    x = conv_relu(x, params["w1"], params["b1"], 4)
    x = conv_relu(x, params["w2"], params["b2"], 2)
    x = conv_relu(x, params["w3"], params["b3"], 1)
    x = x.reshape(x.shape[0], -1)                       # NCHW flatten (PyTorch)
    x = jnp.maximum(x @ params["wl1"].T + params["bl1"], 0.0)
    return x @ params["wl2"].T + params["bl2"]


def init_params(key, input_shape, num_actions):
    """Deterministic PyTorch-default-style uniform init (shapes match nn.Module)."""
    c, h, w = input_shape
    (_, _), (_, _), (h3, w3) = conv_out_sizes(h, w)
    n_flatten = 64 * h3 * w3
    keys = jax.random.split(key, 10)

    def uinit(k, shape, fan_in):
        bound = 1.0 / (fan_in ** 0.5)
        return jax.random.uniform(k, shape, jnp.float32, -bound, bound)

    return {
        "w1": uinit(keys[0], (32, c, 8, 8), c * 8 * 8),
        "b1": uinit(keys[1], (32,), c * 8 * 8),
        "w2": uinit(keys[2], (64, 32, 4, 4), 32 * 4 * 4),
        "b2": uinit(keys[3], (64,), 32 * 4 * 4),
        "w3": uinit(keys[4], (64, 64, 3, 3), 64 * 3 * 3),
        "b3": uinit(keys[5], (64,), 64 * 3 * 3),
        "wl1": uinit(keys[6], (512, n_flatten), n_flatten),
        "bl1": uinit(keys[7], (512,), n_flatten),
        "wl2": uinit(keys[8], (num_actions, 512), 512),
        "bl2": uinit(keys[9], (num_actions,), 512),
    }


# ----------------------------- demo ------------------------------------------
if __name__ == "__main__":
    input_shape = (4, 44, 44)   # (c, h, w): smallest nice size surviving the stack
    num_actions = 7
    batch = 16                  # with batch_tile=8 -> grid=(2,), megacore-friendly

    key = jax.random.PRNGKey(0)
    kp, kx = jax.random.split(key)
    params = init_params(kp, input_shape, num_actions)
    x = jax.random.uniform(kx, (batch,) + input_shape, jnp.float32, 0.0, 255.0)

    prepped = prepare_params(params, input_shape, num_actions)   # one-time cost
    forward = make_forward(input_shape, num_actions, batch_tile=8)

    q = jax.block_until_ready(forward(prepped, x))
    assert q.shape == (batch, num_actions), q.shape

    q_ref = jax.block_until_ready(reference_forward(params, x))
    np.testing.assert_allclose(np.asarray(q), np.asarray(q_ref),
                               rtol=2e-2, atol=2e-2)
    print("KERNEL_OK")
</pallas_src>

<mosaic_0001>
module attributes {stable_mosaic.version = 11 : i64} {
  func.func @_fused_forward_kernel(%arg0: i32, %arg1: memref<800x256xbf16, #tpu.memory_space<vmem>>, %arg2: memref<256x32xbf16, #tpu.memory_space<vmem>>, %arg3: memref<1x32xf32, #tpu.memory_space<vmem>>, %arg4: memref<512x64xbf16, #tpu.memory_space<vmem>>, %arg5: memref<1x64xf32, #tpu.memory_space<vmem>>, %arg6: memref<576x64xbf16, #tpu.memory_space<vmem>>, %arg7: memref<1x64xf32, #tpu.memory_space<vmem>>, %arg8: memref<256x512xbf16, #tpu.memory_space<vmem>>, %arg9: memref<1x512xf32, #tpu.memory_space<vmem>>, %arg10: memref<512x128xbf16, #tpu.memory_space<vmem>>, %arg11: memref<1x128xf32, #tpu.memory_space<vmem>>, %arg12: memref<8x128xf32, #tpu.memory_space<vmem>>) attributes {dimension_semantics = [#tpu.dimension_semantics<parallel>], iteration_bounds = array<i64: 2>, scalar_prefetch = 0 : i64, scratch_operands = 0 : i64, tpu.core_type = #tpu.core_type<tc>, window_params = [{transform_indices = @transform_0, window_bounds = array<i64: 800, 256>}, {pipeline_mode = #tpu.pipeline_mode<synchronous>, transform_indices = @transform_1, window_bounds = array<i64: 256, 32>}, {pipeline_mode = #tpu.pipeline_mode<synchronous>, transform_indices = @transform_2, window_bounds = array<i64: 1, 32>}, {pipeline_mode = #tpu.pipeline_mode<synchronous>, transform_indices = @transform_3, window_bounds = array<i64: 512, 64>}, {pipeline_mode = #tpu.pipeline_mode<synchronous>, transform_indices = @transform_4, window_bounds = array<i64: 1, 64>}, {pipeline_mode = #tpu.pipeline_mode<synchronous>, transform_indices = @transform_5, window_bounds = array<i64: 576, 64>}, {pipeline_mode = #tpu.pipeline_mode<synchronous>, transform_indices = @transform_6, window_bounds = array<i64: 1, 64>}, {pipeline_mode = #tpu.pipeline_mode<synchronous>, transform_indices = @transform_7, window_bounds = array<i64: 256, 512>}, {pipeline_mode = #tpu.pipeline_mode<synchronous>, transform_indices = @transform_8, window_bounds = array<i64: 1, 512>}, {pipeline_mode = #tpu.pipeline_mode<synchronous>, transform_indices = @transform_9, window_bounds = array<i64: 512, 128>}, {pipeline_mode = #tpu.pipeline_mode<synchronous>, transform_indices = @transform_10, window_bounds = array<i64: 1, 128>}, {transform_indices = @transform_11, window_bounds = array<i64: 8, 128>}]} {
    %c0 = arith.constant 0 : index
    %c0_0 = arith.constant 0 : index
    %0 = vector.load %arg1[%c0, %c0_0] : memref<800x256xbf16, #tpu.memory_space<vmem>>, vector<800x256xbf16>
    %c0_1 = arith.constant 0 : index
    %c0_2 = arith.constant 0 : index
    %1 = vector.load %arg2[%c0_1, %c0_2] : memref<256x32xbf16, #tpu.memory_space<vmem>>, vector<256x32xbf16>
    %cst = arith.constant dense<0.000000e+00> : vector<800x32xf32>
    %2 = tpu.matmul %0, %1, %cst {dimension_numbers = #tpu.dot_dimension_numbers<[1], [0], [0], [1], [0, 0, 1, 1], [], []>} : vector<800x256xbf16>, vector<256x32xbf16>, vector<800x32xf32> -> vector<800x32xf32>
    %c0_3 = arith.constant 0 : index
    %c0_4 = arith.constant 0 : index
    %3 = vector.load %arg3[%c0_3, %c0_4] : memref<1x32xf32, #tpu.memory_space<vmem>>, vector<1x32xf32>
    %4 = vector.broadcast %3 : vector<1x32xf32> to vector<800x32xf32>
    %5 = arith.addf %2, %4 : vector<800x32xf32>
    %cst_5 = arith.constant 0.000000e+00 : f32
    %6 = vector.broadcast %cst_5 : f32 to vector<800x32xf32>
    %7 = arith.maximumf %5, %6 : vector<800x32xf32>
    %8 = vector.extract_strided_slice %7 {offsets = [0, 0], sizes = [32, 32], strides = [1, 1]} : vector<800x32xf32> to vector<32x32xf32>
    %9 = vector.extract_strided_slice %7 {offsets = [40, 0], sizes = [32, 32], strides = [1, 1]} : vector<800x32xf32> to vector<32x32xf32>
    %10 = vector.extract_strided_slice %7 {offsets = [80, 0], sizes = [32, 32], strides = [1, 1]} : vector<800x32xf32> to vector<32x32xf32>
    %11 = vector.extract_strided_slice %7 {offsets = [120, 0], sizes = [32, 32], strides = [1, 1]} : vector<800x32xf32> to vector<32x32xf32>
    %12 = tpu.concatenate %8, %9, %10, %11 in 0 : vector<32x32xf32>, vector<32x32xf32>, vector<32x32xf32>, vector<32x32xf32> -> vector<128x32xf32>
    %13 = vector.extract_strided_slice %7 {offsets = [200, 0], sizes = [32, 32], strides = [1, 1]} : vector<800x32xf32> to vector<32x32xf32>
    %14 = vector.extract_strided_slice %7 {offsets = [240, 0], sizes = [32, 32], strides = [1, 1]} : vector<800x32xf32> to vector<32x32xf32>
    %15 = vector.extract_strided_slice %7 {offsets = [280, 0], sizes = [32, 32], strides = [1, 1]} : vector<800x32xf32> to vector<32x32xf32>
    %16 = vector.extract_strided_slice %7 {offsets = [320, 0], sizes = [32, 32], strides = [1, 1]} : vector<800x32xf32> to vector<32x32xf32>
    %17 = tpu.concatenate %13, %14, %15, %16 in 0 : vector<32x32xf32>, vector<32x32xf32>, vector<32x32xf32>, vector<32x32xf32> -> vector<128x32xf32>
    %18 = vector.extract_strided_slice %7 {offsets = [8, 0], sizes = [32, 32], strides = [1, 1]} : vector<800x32xf32> to vector<32x32xf32>
    %19 = vector.extract_strided_slice %7 {offsets = [48, 0], sizes = [32, 32], strides = [1, 1]} : vector<800x32xf32> to vector<32x32xf32>
    %20 = vector.extract_strided_slice %7 {offsets = [88, 0], sizes = [32, 32], strides = [1, 1]} : vector<800x32xf32> to vector<32x32xf32>
    %21 = vector.extract_strided_slice %7 {offsets = [128, 0], sizes = [32, 32], strides = [1, 1]} : vector<800x32xf32> to vector<32x32xf32>
    %22 = tpu.concatenate %18, %19, %20, %21 in 0 : vector<32x32xf32>, vector<32x32xf32>, vector<32x32xf32>, vector<32x32xf32> -> vector<128x32xf32>
    %23 = vector.extract_strided_slice %7 {offsets = [208, 0], sizes = [32, 32], strides = [1, 1]} : vector<800x32xf32> to vector<32x32xf32>
    %24 = vector.extract_strided_slice %7 {offsets = [248, 0], sizes = [32, 32], strides = [1, 1]} : vector<800x32xf32> to vector<32x32xf32>
    %25 = vector.extract_strided_slice %7 {offsets = [288, 0], sizes = [32, 32], strides = [1, 1]} : vector<800x32xf32> to vector<32x32xf32>
    %26 = vector.extract_strided_slice %7 {offsets = [328, 0], sizes = [32, 32], strides = [1, 1]} : vector<800x32xf32> to vector<32x32xf32>
    %27 = tpu.concatenate %23, %24, %25, %26 in 0 : vector<32x32xf32>, vector<32x32xf32>, vector<32x32xf32>, vector<32x32xf32> -> vector<128x32xf32>
    %28 = vector.extract_strided_slice %7 {offsets = [400, 0], sizes = [32, 32], strides = [1, 1]} : vector<800x32xf32> to vector<32x32xf32>
    %29 = vector.extract_strided_slice %7 {offsets = [440, 0], sizes = [32, 32], strides = [1, 1]} : vector<800x32xf32> to vector<32x32xf32>
    %30 = vector.extract_strided_slice %7 {offsets = [480, 0], sizes = [32, 32], strides = [1, 1]} : vector<800x32xf32> to vector<32x32xf32>
    %31 = vector.extract_strided_slice %7 {offsets = [520, 0], sizes = [32, 32], strides = [1, 1]} : vector<800x32xf32> to vector<32x32xf32>
    %32 = tpu.concatenate %28, %29, %30, %31 in 0 : vector<32x32xf32>, vector<32x32xf32>, vector<32x32xf32>, vector<32x32xf32> -> vector<128x32xf32>
    %33 = vector.extract_strided_slice %7 {offsets = [600, 0], sizes = [32, 32], strides = [1, 1]} : vector<800x32xf32> to vector<32x32xf32>
    %34 = vector.extract_strided_slice %7 {offsets = [640, 0], sizes = [32, 32], strides = [1, 1]} : vector<800x32xf32> to vector<32x32xf32>
    %35 = vector.extract_strided_slice %7 {offsets = [680, 0], sizes = [32, 32], strides = [1, 1]} : vector<800x32xf32> to vector<32x32xf32>
    %36 = vector.extract_strided_slice %7 {offsets = [720, 0], sizes = [32, 32], strides = [1, 1]} : vector<800x32xf32> to vector<32x32xf32>
    %37 = tpu.concatenate %33, %34, %35, %36 in 0 : vector<32x32xf32>, vector<32x32xf32>, vector<32x32xf32>, vector<32x32xf32> -> vector<128x32xf32>
    %38 = vector.extract_strided_slice %7 {offsets = [408, 0], sizes = [32, 32], strides = [1, 1]} : vector<800x32xf32> to vector<32x32xf32>
    %39 = vector.extract_strided_slice %7 {offsets = [448, 0], sizes = [32, 32], strides = [1, 1]} : vector<800x32xf32> to vector<32x32xf32>
    %40 = vector.extract_strided_slice %7 {offsets = [488, 0], sizes = [32, 32], strides = [1, 1]} : vector<800x32xf32> to vector<32x32xf32>
    %41 = vector.extract_strided_slice %7 {offsets = [528, 0], sizes = [32, 32], strides = [1, 1]} : vector<800x32xf32> to vector<32x32xf32>
    %42 = tpu.concatenate %38, %39, %40, %41 in 0 : vector<32x32xf32>, vector<32x32xf32>, vector<32x32xf32>, vector<32x32xf32> -> vector<128x32xf32>
    %43 = vector.extract_strided_slice %7 {offsets = [608, 0], sizes = [32, 32], strides = [1, 1]} : vector<800x32xf32> to vector<32x32xf32>
    %44 = vector.extract_strided_slice %7 {offsets = [648, 0], sizes = [32, 32], strides = [1, 1]} : vector<800x32xf32> to vector<32x32xf32>
    %45 = vector.extract_strided_slice %7 {offsets = [688, 0], sizes = [32, 32], strides = [1, 1]} : vector<800x32xf32> to vector<32x32xf32>
    %46 = vector.extract_strided_slice %7 {offsets = [728, 0], sizes = [32, 32], strides = [1, 1]} : vector<800x32xf32> to vector<32x32xf32>
    %47 = tpu.concatenate %43, %44, %45, %46 in 0 : vector<32x32xf32>, vector<32x32xf32>, vector<32x32xf32>, vector<32x32xf32> -> vector<128x32xf32>
    %48 = vector.extract_strided_slice %7 {offsets = [40, 0], sizes = [32, 32], strides = [1, 1]} : vector<800x32xf32> to vector<32x32xf32>
    %49 = vector.extract_strided_slice %7 {offsets = [80, 0], sizes = [32, 32], strides = [1, 1]} : vector<800x32xf32> to vector<32x32xf32>
    %50 = vector.extract_strided_slice %7 {offsets = [120, 0], sizes = [32, 32], strides = [1, 1]} : vector<800x32xf32> to vector<32x32xf32>
    %51 = vector.extract_strided_slice %7 {offsets = [160, 0], sizes = [32, 32], strides = [1, 1]} : vector<800x32xf32> to vector<32x32xf32>
    %52 = tpu.concatenate %48, %49, %50, %51 in 0 : vector<32x32xf32>, vector<32x32xf32>, vector<32x32xf32>, vector<32x32xf32> -> vector<128x32xf32>
    %53 = vector.extract_strided_slice %7 {offsets = [240, 0], sizes = [32, 32], strides = [1, 1]} : vector<800x32xf32> to vector<32x32xf32>
    %54 = vector.extract_strided_slice %7 {offsets = [280, 0], sizes = [32, 32], strides = [1, 1]} : vector<800x32xf32> to vector<32x32xf32>
    %55 = vector.extract_strided_slice %7 {offsets = [320, 0], sizes = [32, 32], strides = [1, 1]} : vector<800x32xf32> to vector<32x32xf32>
    %56 = vector.extract_strided_slice %7 {offsets = [360, 0], sizes = [32, 32], strides = [1, 1]} : vector<800x32xf32> to vector<32x32xf32>
    %57 = tpu.concatenate %53, %54, %55, %56 in 0 : vector<32x32xf32>, vector<32x32xf32>, vector<32x32xf32>, vector<32x32xf32> -> vector<128x32xf32>
    %58 = vector.extract_strided_slice %7 {offsets = [48, 0], sizes = [32, 32], strides = [1, 1]} : vector<800x32xf32> to vector<32x32xf32>
    %59 = vector.extract_strided_slice %7 {offsets = [88, 0], sizes = [32, 32], strides = [1, 1]} : vector<800x32xf32> to vector<32x32xf32>
    %60 = vector.extract_strided_slice %7 {offsets = [128, 0], sizes = [32, 32], strides = [1, 1]} : vector<800x32xf32> to vector<32x32xf32>
    %61 = vector.extract_strided_slice %7 {offsets = [168, 0], sizes = [32, 32], strides = [1, 1]} : vector<800x32xf32> to vector<32x32xf32>
    %62 = tpu.concatenate %58, %59, %60, %61 in 0 : vector<32x32xf32>, vector<32x32xf32>, vector<32x32xf32>, vector<32x32xf32> -> vector<128x32xf32>
    %63 = vector.extract_strided_slice %7 {offsets = [248, 0], sizes = [32, 32], strides = [1, 1]} : vector<800x32xf32> to vector<32x32xf32>
    %64 = vector.extract_strided_slice %7 {offsets = [288, 0], sizes = [32, 32], strides = [1, 1]} : vector<800x32xf32> to vector<32x32xf32>
    %65 = vector.extract_strided_slice %7 {offsets = [328, 0], sizes = [32, 32], strides = [1, 1]} : vector<800x32xf32> to vector<32x32xf32>
    %66 = vector.extract_strided_slice %7 {offsets = [368, 0], sizes = [32, 32], strides = [1, 1]} : vector<800x32xf32> to vector<32x32xf32>
    %67 = tpu.concatenate %63, %64, %65, %66 in 0 : vector<32x32xf32>, vector<32x32xf32>, vector<32x32xf32>, vector<32x32xf32> -> vector<128x32xf32>
    %68 = vector.extract_strided_slice %7 {offsets = [440, 0], sizes = [32, 32], strides = [1, 1]} : vector<800x32xf32> to vector<32x32xf32>
    %69 = vector.extract_strided_slice %7 {offsets = [480, 0], sizes = [32, 32], strides = [1, 1]} : vector<800x32xf32> to vector<32x32xf32>
    %70 = vector.extract_strided_slice %7 {offsets = [520, 0], sizes = [32, 32], strides = [1, 1]} : vector<800x32xf32> to vector<32x32xf32>
    %71 = vector.extract_strided_slice %7 {offsets = [560, 0], sizes = [32, 32], strides = [1, 1]} : vector<800x32xf32> to vector<32x32xf32>
    %72 = tpu.concatenate %68, %69, %70, %71 in 0 : vector<32x32xf32>, vector<32x32xf32>, vector<32x32xf32>, vector<32x32xf32> -> vector<128x32xf32>
    %73 = vector.extract_strided_slice %7 {offsets = [640, 0], sizes = [32, 32], strides = [1, 1]} : vector<800x32xf32> to vector<32x32xf32>
    %74 = vector.extract_strided_slice %7 {offsets = [680, 0], sizes = [32, 32], strides = [1, 1]} : vector<800x32xf32> to vector<32x32xf32>
    %75 = vector.extract_strided_slice %7 {offsets = [720, 0], sizes = [32, 32], strides = [1, 1]} : vector<800x32xf32> to vector<32x32xf32>
    %76 = vector.extract_strided_slice %7 {offsets = [760, 0], sizes = [32, 32], strides = [1, 1]} : vector<800x32xf32> to vector<32x32xf32>
    %77 = tpu.concatenate %73, %74, %75, %76 in 0 : vector<32x32xf32>, vector<32x32xf32>, vector<32x32xf32>, vector<32x32xf32> -> vector<128x32xf32>
    %78 = vector.extract_strided_slice %7 {offsets = [448, 0], sizes = [32, 32], strides = [1, 1]} : vector<800x32xf32> to vector<32x32xf32>
    %79 = vector.extract_strided_slice %7 {offsets = [488, 0], sizes = [32, 32], strides = [1, 1]} : vector<800x32xf32> to vector<32x32xf32>
    %80 = vector.extract_strided_slice %7 {offsets = [528, 0], sizes = [32, 32], strides = [1, 1]} : vector<800x32xf32> to vector<32x32xf32>
    %81 = vector.extract_strided_slice %7 {offsets = [568, 0], sizes = [32, 32], strides = [1, 1]} : vector<800x32xf32> to vector<32x32xf32>
    %82 = tpu.concatenate %78, %79, %80, %81 in 0 : vector<32x32xf32>, vector<32x32xf32>, vector<32x32xf32>, vector<32x32xf32> -> vector<128x32xf32>
    %83 = vector.extract_strided_slice %7 {offsets = [648, 0], sizes = [32, 32], strides = [1, 1]} : vector<800x32xf32> to vector<32x32xf32>
    %84 = vector.extract_strided_slice %7 {offsets = [688, 0], sizes = [32, 32], strides = [1, 1]} : vector<800x32xf32> to vector<32x32xf32>
    %85 = vector.extract_strided_slice %7 {offsets = [728, 0], sizes = [32, 32], strides = [1, 1]} : vector<800x32xf32> to vector<32x32xf32>
    %86 = vector.extract_strided_slice %7 {offsets = [768, 0], sizes = [32, 32], strides = [1, 1]} : vector<800x32xf32> to vector<32x32xf32>
    %87 = tpu.concatenate %83, %84, %85, %86 in 0 : vector<32x32xf32>, vector<32x32xf32>, vector<32x32xf32>, vector<32x32xf32> -> vector<128x32xf32>
    %88 = tpu.concatenate %12, %17, %22, %27, %32, %37, %42, %47, %52, %57, %62, %67, %72, %77, %82, %87 in 1 : vector<128x32xf32>, vector<128x32xf32>, vector<128x32xf32>, vector<128x32xf32>, vector<128x32xf32>, vector<128x32xf32>, vector<128x32xf32>, vector<128x32xf32>, vector<128x32xf32>, vector<128x32xf32>, vector<128x32xf32>, vector<128x32xf32>, vector<128x32xf32>, vector<128x32xf32>, vector<128x32xf32>, vector<128x32xf32> -> vector<128x512xf32>
    %89 = arith.truncf %88 : vector<128x512xf32> to vector<128x512xbf16>
    %c0_6 = arith.constant 0 : index
    %c0_7 = arith.constant 0 : index
    %90 = vector.load %arg4[%c0_6, %c0_7] : memref<512x64xbf16, #tpu.memory_space<vmem>>, vector<512x64xbf16>
    %cst_8 = arith.constant dense<0.000000e+00> : vector<128x64xf32>
    %91 = tpu.matmul %89, %90, %cst_8 {dimension_numbers = #tpu.dot_dimension_numbers<[1], [0], [0], [1], [0, 0, 1, 1], [], []>} : vector<128x512xbf16>, vector<512x64xbf16>, vector<128x64xf32> -> vector<128x64xf32>
    %c0_9 = arith.constant 0 : index
    %c0_10 = arith.constant 0 : index
    %92 = vector.load %arg5[%c0_9, %c0_10] : memref<1x64xf32, #tpu.memory_space<vmem>>, vector<1x64xf32>
    %93 = vector.broadcast %92 : vector<1x64xf32> to vector<128x64xf32>
    %94 = arith.addf %91, %93 : vector<128x64xf32>
    %cst_11 = arith.constant 0.000000e+00 : f32
    %95 = vector.broadcast %cst_11 : f32 to vector<128x64xf32>
    %96 = arith.maximumf %94, %95 : vector<128x64xf32>
    %97 = vector.extract_strided_slice %96 {offsets = [0, 0], sizes = [16, 64], strides = [1, 1]} : vector<128x64xf32> to vector<16x64xf32>
    %98 = vector.extract_strided_slice %96 {offsets = [32, 0], sizes = [16, 64], strides = [1, 1]} : vector<128x64xf32> to vector<16x64xf32>
    %99 = tpu.concatenate %97, %98 in 0 : vector<16x64xf32>, vector<16x64xf32> -> vector<32x64xf32>
    %100 = vector.extract_strided_slice %96 {offsets = [8, 0], sizes = [16, 64], strides = [1, 1]} : vector<128x64xf32> to vector<16x64xf32>
    %101 = vector.extract_strided_slice %96 {offsets = [40, 0], sizes = [16, 64], strides = [1, 1]} : vector<128x64xf32> to vector<16x64xf32>
    %102 = tpu.concatenate %100, %101 in 0 : vector<16x64xf32>, vector<16x64xf32> -> vector<32x64xf32>
    %103 = vector.extract_strided_slice %96 {offsets = [16, 0], sizes = [16, 64], strides = [1, 1]} : vector<128x64xf32> to vector<16x64xf32>
    %104 = vector.extract_strided_slice %96 {offsets = [48, 0], sizes = [16, 64], strides = [1, 1]} : vector<128x64xf32> to vector<16x64xf32>
    %105 = tpu.concatenate %103, %104 in 0 : vector<16x64xf32>, vector<16x64xf32> -> vector<32x64xf32>
    %106 = vector.extract_strided_slice %96 {offsets = [32, 0], sizes = [16, 64], strides = [1, 1]} : vector<128x64xf32> to vector<16x64xf32>
    %107 = vector.extract_strided_slice %96 {offsets = [64, 0], sizes = [16, 64], strides = [1, 1]} : vector<128x64xf32> to vector<16x64xf32>
    %108 = tpu.concatenate %106, %107 in 0 : vector<16x64xf32>, vector<16x64xf32> -> vector<32x64xf32>
    %109 = vector.extract_strided_slice %96 {offsets = [40, 0], sizes = [16, 64], strides = [1, 1]} : vector<128x64xf32> to vector<16x64xf32>
    %110 = vector.extract_strided_slice %96 {offsets = [72, 0], sizes = [16, 64], strides = [1, 1]} : vector<128x64xf32> to vector<16x64xf32>
    %111 = tpu.concatenate %109, %110 in 0 : vector<16x64xf32>, vector<16x64xf32> -> vector<32x64xf32>
    %112 = vector.extract_strided_slice %96 {offsets = [48, 0], sizes = [16, 64], strides = [1, 1]} : vector<128x64xf32> to vector<16x64xf32>
    %113 = vector.extract_strided_slice %96 {offsets = [80, 0], sizes = [16, 64], strides = [1, 1]} : vector<128x64xf32> to vector<16x64xf32>
    %114 = tpu.concatenate %112, %113 in 0 : vector<16x64xf32>, vector<16x64xf32> -> vector<32x64xf32>
    %115 = vector.extract_strided_slice %96 {offsets = [64, 0], sizes = [16, 64], strides = [1, 1]} : vector<128x64xf32> to vector<16x64xf32>
    %116 = vector.extract_strided_slice %96 {offsets = [96, 0], sizes = [16, 64], strides = [1, 1]} : vector<128x64xf32> to vector<16x64xf32>
    %117 = tpu.concatenate %115, %116 in 0 : vector<16x64xf32>, vector<16x64xf32> -> vector<32x64xf32>
    %118 = vector.extract_strided_slice %96 {offsets = [72, 0], sizes = [16, 64], strides = [1, 1]} : vector<128x64xf32> to vector<16x64xf32>
    %119 = vector.extract_strided_slice %96 {offsets = [104, 0], sizes = [16, 64], strides = [1, 1]} : vector<128x64xf32> to vector<16x64xf32>
    %120 = tpu.concatenate %118, %119 in 0 : vector<16x64xf32>, vector<16x64xf32> -> vector<32x64xf32>
    %121 = vector.extract_strided_slice %96 {offsets = [80, 0], sizes = [16, 64], strides = [1, 1]} : vector<128x64xf32> to vector<16x64xf32>
    %122 = vector.extract_strided_slice %96 {offsets = [112, 0], sizes = [16, 64], strides = [1, 1]} : vector<128x64xf32> to vector<16x64xf32>
    %123 = tpu.concatenate %121, %122 in 0 : vector<16x64xf32>, vector<16x64xf32> -> vector<32x64xf32>
    %124 = tpu.concatenate %99, %102, %105, %108, %111, %114, %117, %120, %123 in 1 : vector<32x64xf32>, vector<32x64xf32>, vector<32x64xf32>, vector<32x64xf32>, vector<32x64xf32>, vector<32x64xf32>, vector<32x64xf32>, vector<32x64xf32>, vector<32x64xf32> -> vector<32x576xf32>
    %125 = arith.truncf %124 : vector<32x576xf32> to vector<32x576xbf16>
    %c0_12 = arith.constant 0 : index
    %c0_13 = arith.constant 0 : index
    %126 = vector.load %arg6[%c0_12, %c0_13] : memref<576x64xbf16, #tpu.memory_space<vmem>>, vector<576x64xbf16>
    %cst_14 = arith.constant dense<0.000000e+00> : vector<32x64xf32>
    %127 = tpu.matmul %125, %126, %cst_14 {dimension_numbers = #tpu.dot_dimension_numbers<[1], [0], [0], [1], [0, 0, 1, 1], [], []>} : vector<32x576xbf16>, vector<576x64xbf16>, vector<32x64xf32> -> vector<32x64xf32>
    %c0_15 = arith.constant 0 : index
    %c0_16 = arith.constant 0 : index
    %128 = vector.load %arg7[%c0_15, %c0_16] : memref<1x64xf32, #tpu.memory_space<vmem>>, vector<1x64xf32>
    %129 = vector.broadcast %128 : vector<1x64xf32> to vector<32x64xf32>
    %130 = arith.addf %127, %129 : vector<32x64xf32>
    %cst_17 = arith.constant 0.000000e+00 : f32
    %131 = vector.broadcast %cst_17 : f32 to vector<32x64xf32>
    %132 = arith.maximumf %130, %131 : vector<32x64xf32>
    %133 = vector.extract_strided_slice %132 {offsets = [0, 0], sizes = [8, 64], strides = [1, 1]} : vector<32x64xf32> to vector<8x64xf32>
    %134 = vector.extract_strided_slice %132 {offsets = [8, 0], sizes = [8, 64], strides = [1, 1]} : vector<32x64xf32> to vector<8x64xf32>
    %135 = vector.extract_strided_slice %132 {offsets = [16, 0], sizes = [8, 64], strides = [1, 1]} : vector<32x64xf32> to vector<8x64xf32>
    %136 = vector.extract_strided_slice %132 {offsets = [24, 0], sizes = [8, 64], strides = [1, 1]} : vector<32x64xf32> to vector<8x64xf32>
    %137 = tpu.concatenate %133, %134, %135, %136 in 1 : vector<8x64xf32>, vector<8x64xf32>, vector<8x64xf32>, vector<8x64xf32> -> vector<8x256xf32>
    %138 = arith.truncf %137 : vector<8x256xf32> to vector<8x256xbf16>
    %c0_18 = arith.constant 0 : index
    %c0_19 = arith.constant 0 : index
    %139 = vector.load %arg8[%c0_18, %c0_19] : memref<256x512xbf16, #tpu.memory_space<vmem>>, vector<256x512xbf16>
    %cst_20 = arith.constant dense<0.000000e+00> : vector<8x512xf32>
    %140 = tpu.matmul %138, %139, %cst_20 {dimension_numbers = #tpu.dot_dimension_numbers<[1], [0], [0], [1], [0, 0, 1, 1], [], []>} : vector<8x256xbf16>, vector<256x512xbf16>, vector<8x512xf32> -> vector<8x512xf32>
    %c0_21 = arith.constant 0 : index
    %c0_22 = arith.constant 0 : index
    %141 = vector.load %arg9[%c0_21, %c0_22] : memref<1x512xf32, #tpu.memory_space<vmem>>, vector<1x512xf32>
    %142 = vector.broadcast %141 : vector<1x512xf32> to vector<8x512xf32>
    %143 = arith.addf %140, %142 : vector<8x512xf32>
    %cst_23 = arith.constant 0.000000e+00 : f32
    %144 = vector.broadcast %cst_23 : f32 to vector<8x512xf32>
    %145 = arith.maximumf %143, %144 : vector<8x512xf32>
    %146 = arith.truncf %145 : vector<8x512xf32> to vector<8x512xbf16>
    %c0_24 = arith.constant 0 : index
    %c0_25 = arith.constant 0 : index
    %147 = vector.load %arg10[%c0_24, %c0_25] : memref<512x128xbf16, #tpu.memory_space<vmem>>, vector<512x128xbf16>
    %cst_26 = arith.constant dense<0.000000e+00> : vector<8x128xf32>
    %148 = tpu.matmul %146, %147, %cst_26 {dimension_numbers = #tpu.dot_dimension_numbers<[1], [0], [0], [1], [0, 0, 1, 1], [], []>} : vector<8x512xbf16>, vector<512x128xbf16>, vector<8x128xf32> -> vector<8x128xf32>
    %c0_27 = arith.constant 0 : index
    %c0_28 = arith.constant 0 : index
    %149 = vector.load %arg11[%c0_27, %c0_28] : memref<1x128xf32, #tpu.memory_space<vmem>>, vector<1x128xf32>
    %150 = vector.broadcast %149 : vector<1x128xf32> to vector<8x128xf32>
    %151 = arith.addf %148, %150 : vector<8x128xf32>
    %c0_29 = arith.constant 0 : index
    %c0_30 = arith.constant 0 : index
    %152 = vector.load %arg12[%c0_29, %c0_30] : memref<8x128xf32, #tpu.memory_space<vmem>>, vector<8x128xf32>
    tpu.vector_store %arg12[%c0_29, %c0_30], %151 {strides = array<i32>} : memref<8x128xf32, #tpu.memory_space<vmem>>, vector<8x128xf32>,
    return
  }
  func.func @transform_0(%arg0: i32) -> (i32, i32) {
    %c0_i32 = arith.constant 0 : i32
    %c0_i32_0 = arith.constant 0 : i32
    return %arg0, %c0_i32 : i32, i32
  }
  func.func @transform_1(%arg0: i32) -> (i32, i32) {
    %c0_i32 = arith.constant 0 : i32
    %c0_i32_0 = arith.constant 0 : i32
    %c0_i32_1 = arith.constant 0 : i32
    return %c0_i32, %c0_i32_0 : i32, i32
  }
  func.func @transform_2(%arg0: i32) -> (i32, i32) {
    %c0_i32 = arith.constant 0 : i32
    %c0_i32_0 = arith.constant 0 : i32
    %c0_i32_1 = arith.constant 0 : i32
    return %c0_i32, %c0_i32_0 : i32, i32
  }
  func.func @transform_3(%arg0: i32) -> (i32, i32) {
    %c0_i32 = arith.constant 0 : i32
    %c0_i32_0 = arith.constant 0 : i32
    %c0_i32_1 = arith.constant 0 : i32
    return %c0_i32, %c0_i32_0 : i32, i32
  }
  func.func @transform_4(%arg0: i32) -> (i32, i32) {
    %c0_i32 = arith.constant 0 : i32
    %c0_i32_0 = arith.constant 0 : i32
    %c0_i32_1 = arith.constant 0 : i32
    return %c0_i32, %c0_i32_0 : i32, i32
  }
  func.func @transform_5(%arg0: i32) -> (i32, i32) {
    %c0_i32 = arith.constant 0 : i32
    %c0_i32_0 = arith.constant 0 : i32
    %c0_i32_1 = arith.constant 0 : i32
    return %c0_i32, %c0_i32_0 : i32, i32
  }
  func.func @transform_6(%arg0: i32) -> (i32, i32) {
    %c0_i32 = arith.constant 0 : i32
    %c0_i32_0 = arith.constant 0 : i32
    %c0_i32_1 = arith.constant 0 : i32
    return %c0_i32, %c0_i32_0 : i32, i32
  }
  func.func @transform_7(%arg0: i32) -> (i32, i32) {
    %c0_i32 = arith.constant 0 : i32
    %c0_i32_0 = arith.constant 0 : i32
    %c0_i32_1 = arith.constant 0 : i32
    return %c0_i32, %c0_i32_0 : i32, i32
  }
  func.func @transform_8(%arg0: i32) -> (i32, i32) {
    %c0_i32 = arith.constant 0 : i32
    %c0_i32_0 = arith.constant 0 : i32
    %c0_i32_1 = arith.constant 0 : i32
    return %c0_i32, %c0_i32_0 : i32, i32
  }
  func.func @transform_9(%arg0: i32) -> (i32, i32) {
    %c0_i32 = arith.constant 0 : i32
    %c0_i32_0 = arith.constant 0 : i32
    %c0_i32_1 = arith.constant 0 : i32
    return %c0_i32, %c0_i32_0 : i32, i32
  }
  func.func @transform_10(%arg0: i32) -> (i32, i32) {
    %c0_i32 = arith.constant 0 : i32
    %c0_i32_0 = arith.constant 0 : i32
    %c0_i32_1 = arith.constant 0 : i32
    return %c0_i32, %c0_i32_0 : i32, i32
  }
  func.func @transform_11(%arg0: i32) -> (i32, i32) {
    %c0_i32 = arith.constant 0 : i32
    %c0_i32_0 = arith.constant 0 : i32
    return %arg0, %c0_i32 : i32, i32
  }
}

</mosaic_0001>

<llo_original>
// kernel: forward.1
$region0: #{forward.1}
  #allocation0 [shape = 'u32[]', space=smem, size = 0x4, offset = 0x4, fixed_abs, tag = 'smem constant byte address 0x4 - core index']
  #allocation1 [shape = 'u32[144,128]{1,0:T(1,128)}', space=vmem, size = 0x12000, scoped, tag = 'internal scratch']
  %s0 = inlined_call_operand.vmem [shape: bf16[1600,256], index: 0, kind: input, shape index: {}]
  %s1 = inlined_call_operand.vmem [shape: bf16[256,32], index: 1, kind: input, shape index: {}]
  %s2 = inlined_call_operand.vmem [shape: f32[1,32], index: 2, kind: input, shape index: {}]
  %s3 = inlined_call_operand.vmem [shape: bf16[512,64], index: 3, kind: input, shape index: {}]
  %s4 = inlined_call_operand.vmem [shape: f32[1,64], index: 4, kind: input, shape index: {}]
  %s5 = inlined_call_operand.vmem [shape: bf16[576,64], index: 5, kind: input, shape index: {}]
  %s6 = inlined_call_operand.vmem [shape: f32[1,64], index: 6, kind: input, shape index: {}]
  %s7 = inlined_call_operand.vmem [shape: bf16[256,512], index: 7, kind: input, shape index: {}]
  %s8 = inlined_call_operand.vmem [shape: f32[1,512], index: 8, kind: input, shape index: {}]
  %s9 = inlined_call_operand.vmem [shape: bf16[512,128], index: 9, kind: input, shape index: {}]
  %s10 = inlined_call_operand.vmem [shape: f32[1,128], index: 10, kind: input, shape index: {}]
  %s11 = inlined_call_operand.vmem [shape: f32[16,128], index: 11, kind: output, shape index: {}]
  %s12 = sld [smem:[#allocation0]]
  $region77: #{forward.1} parent=0
    _
  %s14 = ssub.s32 1, %s12
  %s15 = scalar_select 0, %s14, %s12
  loop: start=0, step=1, limit=4
  $region2: #{forward.1} parent=0 // loop_pre_header
    _
  $region3: #{forward.1} parent=0 // loop_header
    %s17 = sphi 0, %s21
    %p18 = scmp.ge.s32.totalorder %s17, 4
    %s27 = sphi 0, %s29
    %s30 = sphi 0, %s27
    %s31 = sphi 0, %s30
    %s47 = sphi 0, %s31
    %s51 = sphi 0, %s51
    %s53 = sphi 0, %s51
    %s54 = sphi 0, %s53
    %s68 = sphi 0, %s54
    %s72 = sphi 0, %s72
    %s74 = sphi 0, %s72
    %s75 = sphi 0, %s74
    %s89 = sphi 0, %s75
    %s93 = sphi 0, %s93
    %s95 = sphi 0, %s93
    %s96 = sphi 0, %s95
    %s110 = sphi 0, %s96
    %s114 = sphi 0, %s114
    %s116 = sphi 0, %s114
    %s117 = sphi 0, %s116
    %s131 = sphi 0, %s117
    %s135 = sphi 0, %s135
    %s137 = sphi 0, %s135
    %s138 = sphi 0, %s137
    %s152 = sphi 0, %s138
    %s156 = sphi 0, %s156
    %s158 = sphi 0, %s156
    %s159 = sphi 0, %s158
    %s173 = sphi 0, %s159
    %s177 = sphi 0, %s177
    %s179 = sphi 0, %s177
    %s180 = sphi 0, %s179
    %s194 = sphi 0, %s180
    %s198 = sphi 0, %s198
    %s200 = sphi 0, %s198
    %s201 = sphi 0, %s200
    %s215 = sphi 0, %s201
    %s219 = sphi 0, %s219
    %s221 = sphi 0, %s219
    %s222 = sphi 0, %s221
    %s236 = sphi 0, %s222
    %s240 = sphi 0, %s240
    %s242 = sphi 0, %s240
    %s243 = sphi 0, %s242
    %s257 = sphi 0, %s243
    %s263 = sphi 0, %s265
    %s266 = sphi 0, %s263
    %s267 = sphi 0, %s266
    %s283 = sphi 0, %s267
  $region4: #{forward.1} parent=0 // loop_header_branch
    %20 = sbr.rel (%p18) target = $region8
  $region5: #{forward.1} parent=0 // loop_body
    %s22 = ssub.s32 %s17, 1
    %s23 = ssub.s32 %s17, 2
    %s24 = sadd.s32 %s17, 1
    %s25 = ssub.s32 %s17, %s24
    %p26 = scmp.eq.s32.totalorder %s25, 0
    %s28 = sadd.s32 %s27, 1
    %s29 = scalar_select %p26, %s27, %s28
    %p32 = pneg %p26
    %p33 = scmp.eq.s32.totalorder %s17, 1
    %p34 = por %p32, %p33
    %p35 = scmp.ne.s32.totalorder %s27, %s30
    %p36 = scmp.eq.s32.totalorder %s17, 0
    %p37 = por %p35, %p36
    %p38 = scmp.ne.s32.totalorder %s27, %s30
    %p39 = scmp.eq.s32.totalorder %s22, 1
    %p40 = por %p38, %p39
    %p41 = scmp.ne.s32.totalorder %s30, %s31
    %p42 = scmp.eq.s32.totalorder %s22, 0
    %p43 = por %p41, %p42
    %p44 = scmp.ne.s32.totalorder %s30, %s31
    %p45 = scmp.eq.s32.totalorder %s23, 1
    %p46 = por %p44, %p45
    %p48 = scmp.ne.s32.totalorder %s31, %s47
    %p49 = scmp.eq.s32.totalorder %s23, 0
    %p50 = por %p48, %p49
    %s52 = sadd.s32 %s51, 1
    %p55 = scmp.eq.s32.totalorder %s17, 1
    %p56 = scmp.ne.s32.totalorder %s51, %s53
    %p57 = scmp.eq.s32.totalorder %s17, 0
    %p58 = por %p56, %p57
    %p59 = scmp.ne.s32.totalorder %s51, %s53
    %p60 = scmp.eq.s32.totalorder %s22, 1
    %p61 = por %p59, %p60
    %p62 = scmp.ne.s32.totalorder %s53, %s54
    %p63 = scmp.eq.s32.totalorder %s22, 0
    %p64 = por %p62, %p63
    %p65 = scmp.ne.s32.totalorder %s53, %s54
    %p66 = scmp.eq.s32.totalorder %s23, 1
    %p67 = por %p65, %p66
    %p69 = scmp.ne.s32.totalorder %s54, %s68
    %p70 = scmp.eq.s32.totalorder %s23, 0
    %p71 = por %p69, %p70
    %s73 = sadd.s32 %s72, 1
    %p76 = scmp.eq.s32.totalorder %s17, 1
    %p77 = scmp.ne.s32.totalorder %s72, %s74
    %p78 = scmp.eq.s32.totalorder %s17, 0
    %p79 = por %p77, %p78
    %p80 = scmp.ne.s32.totalorder %s72, %s74
    %p81 = scmp.eq.s32.totalorder %s22, 1
    %p82 = por %p80, %p81
    %p83 = scmp.ne.s32.totalorder %s74, %s75
    %p84 = scmp.eq.s32.totalorder %s22, 0
    %p85 = por %p83, %p84
    %p86 = scmp.ne.s32.totalorder %s74, %s75
    %p87 = scmp.eq.s32.totalorder %s23, 1
    %p88 = por %p86, %p87
    %p90 = scmp.ne.s32.totalorder %s75, %s89
    %p91 = scmp.eq.s32.totalorder %s23, 0
    %p92 = por %p90, %p91
    %s94 = sadd.s32 %s93, 1
    %p97 = scmp.eq.s32.totalorder %s17, 1
    %p98 = scmp.ne.s32.totalorder %s93, %s95
    %p99 = scmp.eq.s32.totalorder %s17, 0
    %p100 = por %p98, %p99
    %p101 = scmp.ne.s32.totalorder %s93, %s95
    %p102 = scmp.eq.s32.totalorder %s22, 1
    %p103 = por %p101, %p102
    %p104 = scmp.ne.s32.totalorder %s95, %s96
    %p105 = scmp.eq.s32.totalorder %s22, 0
    %p106 = por %p104, %p105
    %p107 = scmp.ne.s32.totalorder %s95, %s96
    %p108 = scmp.eq.s32.totalorder %s23, 1
    %p109 = por %p107, %p108
    %p111 = scmp.ne.s32.totalorder %s96, %s110
    %p112 = scmp.eq.s32.totalorder %s23, 0
    %p113 = por %p111, %p112
    %s115 = sadd.s32 %s114, 1
    %p118 = scmp.eq.s32.totalorder %s17, 1
    %p119 = scmp.ne.s32.totalorder %s114, %s116
    %p120 = scmp.eq.s32.totalorder %s17, 0
    %p121 = por %p119, %p120
    %p122 = scmp.ne.s32.totalorder %s114, %s116
    %p123 = scmp.eq.s32.totalorder %s22, 1
    %p124 = por %p122, %p123
    %p125 = scmp.ne.s32.totalorder %s116, %s117
    %p126 = scmp.eq.s32.totalorder %s22, 0
    %p127 = por %p125, %p126
    %p128 = scmp.ne.s32.totalorder %s116, %s117
    %p129 = scmp.eq.s32.totalorder %s23, 1
    %p130 = por %p128, %p129
    %p132 = scmp.ne.s32.totalorder %s117, %s131
    %p133 = scmp.eq.s32.totalorder %s23, 0
    %p134 = por %p132, %p133
    %s136 = sadd.s32 %s135, 1
    %p139 = scmp.eq.s32.totalorder %s17, 1
    %p140 = scmp.ne.s32.totalorder %s135, %s137
    %p141 = scmp.eq.s32.totalorder %s17, 0
    %p142 = por %p140, %p141
    %p143 = scmp.ne.s32.totalorder %s135, %s137
    %p144 = scmp.eq.s32.totalorder %s22, 1
    %p145 = por %p143, %p144
    %p146 = scmp.ne.s32.totalorder %s137, %s138
    %p147 = scmp.eq.s32.totalorder %s22, 0
    %p148 = por %p146, %p147
    %p149 = scmp.ne.s32.totalorder %s137, %s138
    %p150 = scmp.eq.s32.totalorder %s23, 1
    %p151 = por %p149, %p150
    %p153 = scmp.ne.s32.totalorder %s138, %s152
    %p154 = scmp.eq.s32.totalorder %s23, 0
    %p155 = por %p153, %p154
    %s157 = sadd.s32 %s156, 1
    %p160 = scmp.eq.s32.totalorder %s17, 1
    %p161 = scmp.ne.s32.totalorder %s156, %s158
    %p162 = scmp.eq.s32.totalorder %s17, 0
    %p163 = por %p161, %p162
    %p164 = scmp.ne.s32.totalorder %s156, %s158
    %p165 = scmp.eq.s32.totalorder %s22, 1
    %p166 = por %p164, %p165
    %p167 = scmp.ne.s32.totalorder %s158, %s159
    %p168 = scmp.eq.s32.totalorder %s22, 0
    %p169 = por %p167, %p168
    %p170 = scmp.ne.s32.totalorder %s158, %s159
    %p171 = scmp.eq.s32.totalorder %s23, 1
    %p172 = por %p170, %p171
    %p174 = scmp.ne.s32.totalorder %s159, %s173
    %p175 = scmp.eq.s32.totalorder %s23, 0
    %p176 = por %p174, %p175
    %s178 = sadd.s32 %s177, 1
    %p181 = scmp.eq.s32.totalorder %s17, 1
    %p182 = scmp.ne.s32.totalorder %s177, %s179
    %p183 = scmp.eq.s32.totalorder %s17, 0
    %p184 = por %p182, %p183
    %p185 = scmp.ne.s32.totalorder %s177, %s179
    %p186 = scmp.eq.s32.totalorder %s22, 1
    %p187 = por %p185, %p186
    %p188 = scmp.ne.s32.totalorder %s179, %s180
    %p189 = scmp.eq.s32.totalorder %s22, 0
    %p190 = por %p188, %p189
    %p191 = scmp.ne.s32.totalorder %s179, %s180
    %p192 = scmp.eq.s32.totalorder %s23, 1
    %p193 = por %p191, %p192
    %p195 = scmp.ne.s32.totalorder %s180, %s194
    %p196 = scmp.eq.s32.totalorder %s23, 0
    %p197 = por %p195, %p196
    %s199 = sadd.s32 %s198, 1
    %p202 = scmp.eq.s32.totalorder %s17, 1
    %p203 = scmp.ne.s32.totalorder %s198, %s200
    %p204 = scmp.eq.s32.totalorder %s17, 0
    %p205 = por %p203, %p204
    %p206 = scmp.ne.s32.totalorder %s198, %s200
    %p207 = scmp.eq.s32.totalorder %s22, 1
    %p208 = por %p206, %p207
    %p209 = scmp.ne.s32.totalorder %s200, %s201
    %p210 = scmp.eq.s32.totalorder %s22, 0
    %p211 = por %p209, %p210
    %p212 = scmp.ne.s32.totalorder %s200, %s201
    %p213 = scmp.eq.s32.totalorder %s23, 1
    %p214 = por %p212, %p213
    %p216 = scmp.ne.s32.totalorder %s201, %s215
    %p217 = scmp.eq.s32.totalorder %s23, 0
    %p218 = por %p216, %p217
    %s220 = sadd.s32 %s219, 1
    %p223 = scmp.eq.s32.totalorder %s17, 1
    %p224 = scmp.ne.s32.totalorder %s219, %s221
    %p225 = scmp.eq.s32.totalorder %s17, 0
    %p226 = por %p224, %p225
    %p227 = scmp.ne.s32.totalorder %s219, %s221
    %p228 = scmp.eq.s32.totalorder %s22, 1
    %p229 = por %p227, %p228
    %p230 = scmp.ne.s32.totalorder %s221, %s222
    %p231 = scmp.eq.s32.totalorder %s22, 0
    %p232 = por %p230, %p231
    %p233 = scmp.ne.s32.totalorder %s221, %s222
    %p234 = scmp.eq.s32.totalorder %s23, 1
    %p235 = por %p233, %p234
    %p237 = scmp.ne.s32.totalorder %s222, %s236
    %p238 = scmp.eq.s32.totalorder %s23, 0
    %p239 = por %p237, %p238
    %s241 = sadd.s32 %s240, 1
    %p244 = scmp.eq.s32.totalorder %s17, 1
    %p245 = scmp.ne.s32.totalorder %s240, %s242
    %p246 = scmp.eq.s32.totalorder %s17, 0
    %p247 = por %p245, %p246
    %p248 = scmp.ne.s32.totalorder %s240, %s242
    %p249 = scmp.eq.s32.totalorder %s22, 1
    %p250 = por %p248, %p249
    %p251 = scmp.ne.s32.totalorder %s242, %s243
    %p252 = scmp.eq.s32.totalorder %s22, 0
    %p253 = por %p251, %p252
    %p254 = scmp.ne.s32.totalorder %s242, %s243
    %p255 = scmp.eq.s32.totalorder %s23, 1
    %p256 = por %p254, %p255
    %p258 = scmp.ne.s32.totalorder %s243, %s257
    %p259 = scmp.eq.s32.totalorder %s23, 0
    %p260 = por %p258, %p259
    %s261 = ssub.s32 %s17, %s24
    %p262 = scmp.eq.s32.totalorder %s261, 0
    %s264 = sadd.s32 %s263, 1
    %s265 = scalar_select %p262, %s263, %s264
    %p268 = pneg %p262
    %p269 = scmp.eq.s32.totalorder %s17, 1
    %p270 = por %p268, %p269
    %p271 = scmp.ne.s32.totalorder %s263, %s266
    %p272 = scmp.eq.s32.totalorder %s17, 0
    %p273 = por %p271, %p272
    %p274 = scmp.ne.s32.totalorder %s263, %s266
    %p275 = scmp.eq.s32.totalorder %s22, 1
    %p276 = por %p274, %p275
    %p277 = scmp.ne.s32.totalorder %s266, %s267
    %p278 = scmp.eq.s32.totalorder %s22, 0
    %p279 = por %p277, %p278
    %p280 = scmp.ne.s32.totalorder %s266, %s267
    %p281 = scmp.eq.s32.totalorder %s23, 1
    %p282 = por %p280, %p281
    %p284 = scmp.ne.s32.totalorder %s267, %s283
    %p285 = scmp.eq.s32.totalorder %s23, 0
    %p286 = por %p284, %p285
    %p287 = scmp.le.s32.totalorder 1, %s17
    %p288 = scmp.lt.s32.totalorder %s17, 3
    %p289 = pnand %p287, %p288
    %p290 = pneg %p289
    // Predicated region
    $region9: #{forward.1} parent=5 // pred_check
      _
    $region10: #{forward.1} parent=5 // pred_check_branch
      %292 = sbr.rel (%p289) target = $region12
    $region11: #{forward.1} parent=5 // pred_region
      %s293 = ssub.s32 %s17, 1
      // Predicated region
      $region13: #{forward.1} parent=11 // pred_check
        %p294 = pneg %p64
      $region14: #{forward.1} parent=11 // pred_check_branch
        %296 = sbr.rel (%p294) target = $region16
      $region15: #{forward.1} parent=11 // pred_region
        _
      $region16: #{forward.1} parent=11 // pred_fallthru
        _
      // Predicated region
      $region17: #{forward.1} parent=11 // pred_check
        %p297 = pneg %p85
      $region18: #{forward.1} parent=11 // pred_check_branch
        %299 = sbr.rel (%p297) target = $region20
      $region19: #{forward.1} parent=11 // pred_region
        _
      $region20: #{forward.1} parent=11 // pred_fallthru
        _
      // Predicated region
      $region21: #{forward.1} parent=11 // pred_check
        %p300 = pneg %p106
      $region22: #{forward.1} parent=11 // pred_check_branch
        %302 = sbr.rel (%p300) target = $region24
      $region23: #{forward.1} parent=11 // pred_region
        _
      $region24: #{forward.1} parent=11 // pred_fallthru
        _
      // Predicated region
      $region25: #{forward.1} parent=11 // pred_check
        %p303 = pneg %p127
      $region26: #{forward.1} parent=11 // pred_check_branch
        %305 = sbr.rel (%p303) target = $region28
      $region27: #{forward.1} parent=11 // pred_region
        _
      $region28: #{forward.1} parent=11 // pred_fallthru
        _
      // Predicated region
      $region29: #{forward.1} parent=11 // pred_check
        %p306 = pneg %p148
      $region30: #{forward.1} parent=11 // pred_check_branch
        %308 = sbr.rel (%p306) target = $region32
      $region31: #{forward.1} parent=11 // pred_region
        _
      $region32: #{forward.1} parent=11 // pred_fallthru
        _
      // Predicated region
      $region33: #{forward.1} parent=11 // pred_check
        %p309 = pneg %p169
      $region34: #{forward.1} parent=11 // pred_check_branch
        %311 = sbr.rel (%p309) target = $region36
      $region35: #{forward.1} parent=11 // pred_region
        _
      $region36: #{forward.1} parent=11 // pred_fallthru
        _
      // Predicated region
      $region37: #{forward.1} parent=11 // pred_check
        %p312 = pneg %p190
      $region38: #{forward.1} parent=11 // pred_check_branch
        %314 = sbr.rel (%p312) target = $region40
      $region39: #{forward.1} parent=11 // pred_region
        _
      $region40: #{forward.1} parent=11 // pred_fallthru
        _
      // Predicated region
      $region41: #{forward.1} parent=11 // pred_check
        %p315 = pneg %p211
      $region42: #{forward.1} parent=11 // pred_check_branch
        %317 = sbr.rel (%p315) target = $region44
      $region43: #{forward.1} parent=11 // pred_region
        _
      $region44: #{forward.1} parent=11 // pred_fallthru
        _
      // Predicated region
      $region45: #{forward.1} parent=11 // pred_check
        %p318 = pneg %p232
      $region46: #{forward.1} parent=11 // pred_check_branch
        %320 = sbr.rel (%p318) target = $region48
      $region47: #{forward.1} parent=11 // pred_region
        _
      $region48: #{forward.1} parent=11 // pred_fallthru
        _
      // Predicated region
      $region49: #{forward.1} parent=11 // pred_check
        %p321 = pneg %p253
      $region50: #{forward.1} parent=11 // pred_check_branch
        %323 = sbr.rel (%p321) target = $region52
      $region51: #{forward.1} parent=11 // pred_region
        _
      $region52: #{forward.1} parent=11 // pred_fallthru
        _
    $region12: #{forward.1} parent=5 // pred_fallthru
      _
    %p324 = scmp.lt.s32.totalorder %s17, 2
    // Predicated region
    $region53: #{forward.1} parent=5 // pred_check
      %p325 = pneg %p324
    $region54: #{forward.1} parent=5 // pred_check_branch
      %327 = sbr.rel (%p325) target = $region56
    $region55: #{forward.1} parent=5 // pred_region
      // Predicated region
      $region57: #{forward.1} parent=55 // pred_check
        %p328 = pneg %p37
      $region58: #{forward.1} parent=55 // pred_check_branch
        %330 = sbr.rel (%p328) target = $region60
      $region59: #{forward.1} parent=55 // pred_region
        %s331 = smul.u32 100, %s17
        %p332 = scmp.lt.s32.totalorder %s331, 199
        %s333 = scalar_select %p332, %s331, 199
        %s334 = smul.addr %s333, 2
        %s335 = smul.addr %s334, 4
        %s336 = scalar_lea.vmem %s0, %s335
        %s337 = smul.u32 100, %s17
      $region60: #{forward.1} parent=55 // pred_fallthru
        _
    $region56: #{forward.1} parent=5 // pred_fallthru
      _
    %p338 = scmp.le.s32.totalorder 1, %s17
    %p339 = scmp.lt.s32.totalorder %s17, 3
    %p340 = pnand %p338, %p339
    %p341 = pneg %p340
    // Predicated region
    $region61: #{forward.1} parent=5 // pred_check
      _
    $region62: #{forward.1} parent=5 // pred_check_branch
      %343 = sbr.rel (%p340) target = $region64
    $region63: #{forward.1} parent=5 // pred_region
      %s344 = ssub.s32 %s17, 1
      %s345 = smul.u32 100, %s22
      %p346 = scmp.lt.s32.totalorder %s345, 199
      %s347 = scalar_select %p346, %s345, 199
      %s348 = smul.addr %s347, 2
      %s349 = smul.addr %s348, 4
      %s350 = scalar_lea.vmem %s0, %s349
      %p351 = pneg %p43
      %p352 = pneg %p40
      %p353 = pneg %p64
      %p354 = pneg %p61
      %p355 = pneg %p85
      %p356 = pneg %p82
      %p357 = pneg %p106
      %p358 = pneg %p103
      %p359 = pneg %p127
      %p360 = pneg %p124
      %p361 = pneg %p148
      %p362 = pneg %p145
      %p363 = pneg %p169
      %p364 = pneg %p166
      %p365 = pneg %p190
      %p366 = pneg %p187
      %p367 = pneg %p211
      %p368 = pneg %p208
      %p369 = pneg %p232
      %p370 = pneg %p229
      %p371 = pneg %p253
      %p372 = pneg %p250
      %p373 = pneg %p279
      %p374 = pneg %p276
      %p375 = scmp.lt.s32.totalorder %s22, 1
      %s376 = scalar_select %p375, %s22, 1
      %s377 = smul.addr %s376, 8
      %s378 = scalar_lea.vmem %s11, %s377
      %s379 = smul.u32 100, %s22
      %p380 = scmp.lt.s32.totalorder %s379, 199
      %s381 = scalar_select %p380, %s379, 199
      %s382 = smul.addr %s381, 2
      %s383 = smul.addr %s382, 4
      %s384 = scalar_lea.vmem %s0, %s383
      %s385 = smul.u32 100, %s22
      %p386 = scmp.lt.s32.totalorder %s22, 1
      %s387 = scalar_select %p386, %s22, 1
      %s388 = smul.addr %s387, 8
      %s389 = scalar_lea.vmem %s11, %s388
      %v391 = vld [vmem:[%s384] sm:$0xff]
      %v392 = vld [vmem:[%s384 + $0x8] sm:$0xff]
      %v393 = vld [vmem:[%s384 + $0x10] sm:$0xff]
      %v394 = vld [vmem:[%s384 + $0x18] sm:$0xff]
      %v395 = vld [vmem:[%s384 + $0x20] sm:$0xff]
      %v396 = vld [vmem:[%s384 + $0x28] sm:$0xff]
      %v397 = vld [vmem:[%s384 + $0x30] sm:$0xff]
      %v398 = vld [vmem:[%s384 + $0x38] sm:$0xff]
      %v399 = vld [vmem:[%s384 + $0x40] sm:$0xff]
      %v400 = vld [vmem:[%s384 + $0x48] sm:$0xff]
      %v401 = vld [vmem:[%s384 + $0x50] sm:$0xff]
      %v402 = vld [vmem:[%s384 + $0x58] sm:$0xff]
      %v403 = vld [vmem:[%s384 + $0x60] sm:$0xff]
      %v404 = vld [vmem:[%s384 + $0x68] sm:$0xff]
      %v405 = vld [vmem:[%s384 + $0x70] sm:$0xff]
      %v406 = vld [vmem:[%s384 + $0x78] sm:$0xff]
      %v407 = vld [vmem:[%s384 + $0x80] sm:$0xff]
      %v408 = vld [vmem:[%s384 + $0x88] sm:$0xff]
      %v409 = vld [vmem:[%s384 + $0x90] sm:$0xff]
      %v410 = vld [vmem:[%s384 + $0x98] sm:$0xff]
      %v411 = vld [vmem:[%s384 + $0xa0] sm:$0xff]
      %v412 = vld [vmem:[%s384 + $0xa8] sm:$0xff]
      %v413 = vld [vmem:[%s384 + $0xb0] sm:$0xff]
      %v414 = vld [vmem:[%s384 + $0xb8] sm:$0xff]
      %v415 = vld [vmem:[%s384 + $0xc0] sm:$0xff]
      %v416 = vld [vmem:[%s384 + $0xc8] sm:$0xff]
      %v417 = vld [vmem:[%s384 + $0xd0] sm:$0xff]
      %v418 = vld [vmem:[%s384 + $0xd8] sm:$0xff]
      %v419 = vld [vmem:[%s384 + $0xe0] sm:$0xff]
      %v420 = vld [vmem:[%s384 + $0xe8] sm:$0xff]
      %v421 = vld [vmem:[%s384 + $0xf0] sm:$0xff]
      %v422 = vld [vmem:[%s384 + $0xf8] sm:$0xff]
      %v423 = vld [vmem:[%s384 + $0x100] sm:$0xff]
      %v424 = vld [vmem:[%s384 + $0x108] sm:$0xff]
      %v425 = vld [vmem:[%s384 + $0x110] sm:$0xff]
      %v426 = vld [vmem:[%s384 + $0x118] sm:$0xff]
      %v427 = vld [vmem:[%s384 + $0x120] sm:$0xff]
      %v428 = vld [vmem:[%s384 + $0x128] sm:$0xff]
      %v429 = vld [vmem:[%s384 + $0x130] sm:$0xff]
      %v430 = vld [vmem:[%s384 + $0x138] sm:$0xff]
      %v431 = vld [vmem:[%s384 + $0x140] sm:$0xff]
      %v432 = vld [vmem:[%s384 + $0x148] sm:$0xff]
      %v433 = vld [vmem:[%s384 + $0x150] sm:$0xff]
      %v434 = vld [vmem:[%s384 + $0x158] sm:$0xff]
      %v435 = vld [vmem:[%s384 + $0x160] sm:$0xff]
      %v436 = vld [vmem:[%s384 + $0x168] sm:$0xff]
      %v437 = vld [vmem:[%s384 + $0x170] sm:$0xff]
      %v438 = vld [vmem:[%s384 + $0x178] sm:$0xff]
      %v439 = vld [vmem:[%s384 + $0x180] sm:$0xff]
      %v440 = vld [vmem:[%s384 + $0x188] sm:$0xff]
      %v441 = vld [vmem:[%s384 + $0x190] sm:$0xff]
      %v442 = vld [vmem:[%s384 + $0x198] sm:$0xff]
      %v443 = vld [vmem:[%s384 + $0x1a0] sm:$0xff]
      %v444 = vld [vmem:[%s384 + $0x1a8] sm:$0xff]
      %v445 = vld [vmem:[%s384 + $0x1b0] sm:$0xff]
      %v446 = vld [vmem:[%s384 + $0x1b8] sm:$0xff]
      %v447 = vld [vmem:[%s384 + $0x1c0] sm:$0xff]
      %v448 = vld [vmem:[%s384 + $0x1c8] sm:$0xff]
      %v449 = vld [vmem:[%s384 + $0x1d0] sm:$0xff]
      %v450 = vld [vmem:[%s384 + $0x1d8] sm:$0xff]
      %v451 = vld [vmem:[%s384 + $0x1e0] sm:$0xff]
      %v452 = vld [vmem:[%s384 + $0x1e8] sm:$0xff]
      %v453 = vld [vmem:[%s384 + $0x1f0] sm:$0xff]
      %v454 = vld [vmem:[%s384 + $0x1f8] sm:$0xff]
      %v455 = vld [vmem:[%s384 + $0x200] sm:$0xff]
      %v456 = vld [vmem:[%s384 + $0x208] sm:$0xff]
      %v457 = vld [vmem:[%s384 + $0x210] sm:$0xff]
      %v458 = vld [vmem:[%s384 + $0x218] sm:$0xff]
      %v459 = vld [vmem:[%s384 + $0x220] sm:$0xff]
      %v460 = vld [vmem:[%s384 + $0x228] sm:$0xff]
      %v461 = vld [vmem:[%s384 + $0x230] sm:$0xff]
      %v462 = vld [vmem:[%s384 + $0x238] sm:$0xff]
      %v463 = vld [vmem:[%s384 + $0x240] sm:$0xff]
      %v464 = vld [vmem:[%s384 + $0x248] sm:$0xff]
      %v465 = vld [vmem:[%s384 + $0x250] sm:$0xff]
      %v466 = vld [vmem:[%s384 + $0x258] sm:$0xff]
      %v467 = vld [vmem:[%s384 + $0x260] sm:$0xff]
      %v468 = vld [vmem:[%s384 + $0x268] sm:$0xff]
      %v469 = vld [vmem:[%s384 + $0x270] sm:$0xff]
      %v470 = vld [vmem:[%s384 + $0x278] sm:$0xff]
      %v471 = vld [vmem:[%s384 + $0x280] sm:$0xff]
      %v472 = vld [vmem:[%s384 + $0x288] sm:$0xff]
      %v473 = vld [vmem:[%s384 + $0x290] sm:$0xff]
      %v474 = vld [vmem:[%s384 + $0x298] sm:$0xff]
      %v475 = vld [vmem:[%s384 + $0x2a0] sm:$0xff]
      %v476 = vld [vmem:[%s384 + $0x2a8] sm:$0xff]
      %v477 = vld [vmem:[%s384 + $0x2b0] sm:$0xff]
      %v478 = vld [vmem:[%s384 + $0x2b8] sm:$0xff]
      %v479 = vld [vmem:[%s384 + $0x2c0] sm:$0xff]
      %v480 = vld [vmem:[%s384 + $0x2c8] sm:$0xff]
      %v481 = vld [vmem:[%s384 + $0x2d0] sm:$0xff]
      %v482 = vld [vmem:[%s384 + $0x2d8] sm:$0xff]
      %v483 = vld [vmem:[%s384 + $0x2e0] sm:$0xff]
      %v484 = vld [vmem:[%s384 + $0x2e8] sm:$0xff]
      %v485 = vld [vmem:[%s384 + $0x2f0] sm:$0xff]
      %v486 = vld [vmem:[%s384 + $0x2f8] sm:$0xff]
      %v487 = vld [vmem:[%s384 + $0x300] sm:$0xff]
      %v488 = vld [vmem:[%s384 + $0x308] sm:$0xff]
      %v489 = vld [vmem:[%s384 + $0x310] sm:$0xff]
      %v490 = vld [vmem:[%s384 + $0x318] sm:$0xff]
      %v491 = vld [vmem:[%s1] sm:$0xf]
      %v492 = vld [vmem:[%s1 + $0x4] sm:$0xf]
      %v493 = vld [vmem:[%s1 + $0x8] sm:$0xf]
      %v494 = vld [vmem:[%s1 + $0xc] sm:$0xf]
      %v495 = vld [vmem:[%s1 + $0x10] sm:$0xf]
      %v496 = vld [vmem:[%s1 + $0x14] sm:$0xf]
      %v497 = vld [vmem:[%s1 + $0x18] sm:$0xf]
      %v498 = vld [vmem:[%s1 + $0x1c] sm:$0xf]
      %v499 = vld [vmem:[%s1 + $0x20] sm:$0xf]
      %v500 = vld [vmem:[%s1 + $0x24] sm:$0xf]
      %v501 = vld [vmem:[%s1 + $0x28] sm:$0xf]
      %v502 = vld [vmem:[%s1 + $0x2c] sm:$0xf]
      %v503 = vld [vmem:[%s1 + $0x30] sm:$0xf]
      %v504 = vld [vmem:[%s1 + $0x34] sm:$0xf]
      %v505 = vld [vmem:[%s1 + $0x38] sm:$0xf]
      %v506 = vld [vmem:[%s1 + $0x3c] sm:$0xf]
      %v507 = vld [vmem:[%s1 + $0x40] sm:$0xf]
      %v508 = vld [vmem:[%s1 + $0x44] sm:$0xf]
      %v509 = vld [vmem:[%s1 + $0x48] sm:$0xf]
      %v510 = vld [vmem:[%s1 + $0x4c] sm:$0xf]
      %v511 = vld [vmem:[%s1 + $0x50] sm:$0xf]
      %v512 = vld [vmem:[%s1 + $0x54] sm:$0xf]
      %v513 = vld [vmem:[%s1 + $0x58] sm:$0xf]
      %v514 = vld [vmem:[%s1 + $0x5c] sm:$0xf]
      %v515 = vld [vmem:[%s1 + $0x60] sm:$0xf]
      %v516 = vld [vmem:[%s1 + $0x64] sm:$0xf]
      %v517 = vld [vmem:[%s1 + $0x68] sm:$0xf]
      %v518 = vld [vmem:[%s1 + $0x6c] sm:$0xf]
      %v519 = vld [vmem:[%s1 + $0x70] sm:$0xf]
      %v520 = vld [vmem:[%s1 + $0x74] sm:$0xf]
      %v521 = vld [vmem:[%s1 + $0x78] sm:$0xf]
      %v522 = vld [vmem:[%s1 + $0x7c] sm:$0xf]
      %v523 = vld [vmem:[%s2] sm:$0x1]
      %v525 = vlaneseq
      %v526 = vshrl.u32 %v525, 7
      %v527 = vsub.s32 0, %v526
      %v528 = vrot.slane %v523, %v527
      %v630 = vunpack.c.l.b16 %v391
      %v631 = vunpack.c.h.b16 %v391
      %v632 = vunpack.c.l.b16 %v392
      %v633 = vunpack.c.h.b16 %v392
      %v634 = vunpack.c.l.b16 %v393
      %v635 = vunpack.c.h.b16 %v393
      %v636 = vunpack.c.l.b16 %v394
      %v637 = vunpack.c.h.b16 %v394
      %v638 = vunpack.c.l.b16 %v395
      %v639 = vunpack.c.h.b16 %v395
      %v640 = vunpack.c.l.b16 %v396
      %v641 = vunpack.c.h.b16 %v396
      %v642 = vunpack.c.l.b16 %v397
      %v643 = vunpack.c.h.b16 %v397
      %v644 = vunpack.c.l.b16 %v398
      %v645 = vunpack.c.h.b16 %v398
      %v646 = vunpack.c.l.b16 %v399
      %v647 = vunpack.c.h.b16 %v399
      %v648 = vunpack.c.l.b16 %v400
      %v649 = vunpack.c.h.b16 %v400
      %v650 = vunpack.c.l.b16 %v401
      %v651 = vunpack.c.h.b16 %v401
      %v652 = vunpack.c.l.b16 %v402
      %v653 = vunpack.c.h.b16 %v402
      %v654 = vunpack.c.l.b16 %v403
      %v655 = vunpack.c.h.b16 %v403
      %v656 = vunpack.c.l.b16 %v404
      %v657 = vunpack.c.h.b16 %v404
      %v658 = vunpack.c.l.b16 %v405
      %v659 = vunpack.c.h.b16 %v405
      %v660 = vunpack.c.l.b16 %v406
      %v661 = vunpack.c.h.b16 %v406
      %v662 = vunpack.c.l.b16 %v407
      %v663 = vunpack.c.h.b16 %v407
      %v664 = vunpack.c.l.b16 %v408
      %v665 = vunpack.c.h.b16 %v408
      %v666 = vunpack.c.l.b16 %v409
      %v667 = vunpack.c.h.b16 %v409
      %v668 = vunpack.c.l.b16 %v410
      %v669 = vunpack.c.h.b16 %v410
      %v670 = vunpack.c.l.b16 %v411
      %v671 = vunpack.c.h.b16 %v411
      %v672 = vunpack.c.l.b16 %v412
      %v673 = vunpack.c.h.b16 %v412
      %v674 = vunpack.c.l.b16 %v413
      %v675 = vunpack.c.h.b16 %v413
      %v676 = vunpack.c.l.b16 %v414
      %v677 = vunpack.c.h.b16 %v414
      %v678 = vunpack.c.l.b16 %v415
      %v679 = vunpack.c.h.b16 %v415
      %v680 = vunpack.c.l.b16 %v416
      %v681 = vunpack.c.h.b16 %v416
      %v682 = vunpack.c.l.b16 %v417
      %v683 = vunpack.c.h.b16 %v417
      %v684 = vunpack.c.l.b16 %v418
      %v685 = vunpack.c.h.b16 %v418
      %v686 = vunpack.c.l.b16 %v419
      %v687 = vunpack.c.h.b16 %v419
      %v688 = vunpack.c.l.b16 %v420
      %v689 = vunpack.c.h.b16 %v420
      %v690 = vunpack.c.l.b16 %v421
      %v691 = vunpack.c.h.b16 %v421
      %v692 = vunpack.c.l.b16 %v422
      %v693 = vunpack.c.h.b16 %v422
      %v694 = vunpack.c.l.b16 %v423
      %v695 = vunpack.c.h.b16 %v423
      %v696 = vunpack.c.l.b16 %v424
      %v697 = vunpack.c.h.b16 %v424
      %v698 = vunpack.c.l.b16 %v425
      %v699 = vunpack.c.h.b16 %v425
      %v700 = vunpack.c.l.b16 %v426
      %v701 = vunpack.c.h.b16 %v426
      %v702 = vunpack.c.l.b16 %v427
      %v703 = vunpack.c.h.b16 %v427
      %v704 = vunpack.c.l.b16 %v428
      %v705 = vunpack.c.h.b16 %v428
      %v706 = vunpack.c.l.b16 %v429
      %v707 = vunpack.c.h.b16 %v429
      %v708 = vunpack.c.l.b16 %v430
      %v709 = vunpack.c.h.b16 %v430
      %v710 = vunpack.c.l.b16 %v431
      %v711 = vunpack.c.h.b16 %v431
      %v712 = vunpack.c.l.b16 %v432
      %v713 = vunpack.c.h.b16 %v432
      %v714 = vunpack.c.l.b16 %v433
      %v715 = vunpack.c.h.b16 %v433
      %v716 = vunpack.c.l.b16 %v434
      %v717 = vunpack.c.h.b16 %v434
      %v718 = vunpack.c.l.b16 %v435
      %v719 = vunpack.c.h.b16 %v435
      %v720 = vunpack.c.l.b16 %v436
      %v721 = vunpack.c.h.b16 %v436
      %v722 = vunpack.c.l.b16 %v437
      %v723 = vunpack.c.h.b16 %v437
      %v724 = vunpack.c.l.b16 %v438
      %v725 = vunpack.c.h.b16 %v438
      %v726 = vunpack.c.l.b16 %v439
      %v727 = vunpack.c.h.b16 %v439
      %v728 = vunpack.c.l.b16 %v440
      %v729 = vunpack.c.h.b16 %v440
      %v730 = vunpack.c.l.b16 %v441
      %v731 = vunpack.c.h.b16 %v441
      %v732 = vunpack.c.l.b16 %v442
      %v733 = vunpack.c.h.b16 %v442
      %v734 = vunpack.c.l.b16 %v443
      %v735 = vunpack.c.h.b16 %v443
      %v736 = vunpack.c.l.b16 %v444
      %v737 = vunpack.c.h.b16 %v444
      %v738 = vunpack.c.l.b16 %v445
      %v739 = vunpack.c.h.b16 %v445
      %v740 = vunpack.c.l.b16 %v446
      %v741 = vunpack.c.h.b16 %v446
      %v742 = vunpack.c.l.b16 %v447
      %v743 = vunpack.c.h.b16 %v447
      %v744 = vunpack.c.l.b16 %v448
      %v745 = vunpack.c.h.b16 %v448
      %v746 = vunpack.c.l.b16 %v449
      %v747 = vunpack.c.h.b16 %v449
      %v748 = vunpack.c.l.b16 %v450
      %v749 = vunpack.c.h.b16 %v450
      %v750 = vunpack.c.l.b16 %v451
      %v751 = vunpack.c.h.b16 %v451
      %v752 = vunpack.c.l.b16 %v452
      %v753 = vunpack.c.h.b16 %v452
      %v754 = vunpack.c.l.b16 %v453
      %v755 = vunpack.c.h.b16 %v453
      %v756 = vunpack.c.l.b16 %v454
      %v757 = vunpack.c.h.b16 %v454
      %v758 = vunpack.c.l.b16 %v455
      %v759 = vunpack.c.h.b16 %v455
      %v760 = vunpack.c.l.b16 %v456
      %v761 = vunpack.c.h.b16 %v456
      %v762 = vunpack.c.l.b16 %v457
      %v763 = vunpack.c.h.b16 %v457
      %v764 = vunpack.c.l.b16 %v458
      %v765 = vunpack.c.h.b16 %v458
      %v766 = vunpack.c.l.b16 %v459
      %v767 = vunpack.c.h.b16 %v459
      %v768 = vunpack.c.l.b16 %v460
      %v769 = vunpack.c.h.b16 %v460
      %v770 = vunpack.c.l.b16 %v461
      %v771 = vunpack.c.h.b16 %v461
      %v772 = vunpack.c.l.b16 %v462
      %v773 = vunpack.c.h.b16 %v462
      %v774 = vunpack.c.l.b16 %v463
      %v775 = vunpack.c.h.b16 %v463
      %v776 = vunpack.c.l.b16 %v464
      %v777 = vunpack.c.h.b16 %v464
      %v778 = vunpack.c.l.b16 %v465
      %v779 = vunpack.c.h.b16 %v465
      %v780 = vunpack.c.l.b16 %v466
      %v781 = vunpack.c.h.b16 %v466
      %v782 = vunpack.c.l.b16 %v467
      %v783 = vunpack.c.h.b16 %v467
      %v784 = vunpack.c.l.b16 %v468
      %v785 = vunpack.c.h.b16 %v468
      %v786 = vunpack.c.l.b16 %v469
      %v787 = vunpack.c.h.b16 %v469
      %v788 = vunpack.c.l.b16 %v470
      %v789 = vunpack.c.h.b16 %v470
      %v790 = vunpack.c.l.b16 %v471
      %v791 = vunpack.c.h.b16 %v471
      %v792 = vunpack.c.l.b16 %v472
      %v793 = vunpack.c.h.b16 %v472
      %v794 = vunpack.c.l.b16 %v473
      %v795 = vunpack.c.h.b16 %v473
      %v796 = vunpack.c.l.b16 %v474
      %v797 = vunpack.c.h.b16 %v474
      %v798 = vunpack.c.l.b16 %v475
      %v799 = vunpack.c.h.b16 %v475
      %v800 = vunpack.c.l.b16 %v476
      %v801 = vunpack.c.h.b16 %v476
      %v802 = vunpack.c.l.b16 %v477
      %v803 = vunpack.c.h.b16 %v477
      %v804 = vunpack.c.l.b16 %v478
      %v805 = vunpack.c.h.b16 %v478
      %v806 = vunpack.c.l.b16 %v479
      %v807 = vunpack.c.h.b16 %v479
      %v808 = vunpack.c.l.b16 %v480
      %v809 = vunpack.c.h.b16 %v480
      %v810 = vunpack.c.l.b16 %v481
      %v811 = vunpack.c.h.b16 %v481
      %v812 = vunpack.c.l.b16 %v482
      %v813 = vunpack.c.h.b16 %v482
      %v814 = vunpack.c.l.b16 %v483
      %v815 = vunpack.c.h.b16 %v483
      %v816 = vunpack.c.l.b16 %v484
      %v817 = vunpack.c.h.b16 %v484
      %v818 = vunpack.c.l.b16 %v485
      %v819 = vunpack.c.h.b16 %v485
      %v820 = vunpack.c.l.b16 %v486
      %v821 = vunpack.c.h.b16 %v486
      %v822 = vunpack.c.l.b16 %v487
      %v823 = vunpack.c.h.b16 %v487
      %v824 = vunpack.c.l.b16 %v488
      %v825 = vunpack.c.h.b16 %v488
      %v826 = vunpack.c.l.b16 %v489
      %v827 = vunpack.c.h.b16 %v489
      %v828 = vunpack.c.l.b16 %v490
      %v829 = vunpack.c.h.b16 %v490
      %v830 = vpack.c.b16 %v632, %v630
      %v831 = vpack.c.b16 %v633, %v631
      %v832 = vpack.c.b16 %v636, %v634
      %v833 = vpack.c.b16 %v637, %v635
      %v834 = vpack.c.b16 %v640, %v638
      %v835 = vpack.c.b16 %v641, %v639
      %v836 = vpack.c.b16 %v644, %v642
      %v837 = vpack.c.b16 %v645, %v643
      %v838 = vpack.c.b16 %v648, %v646
      %v839 = vpack.c.b16 %v649, %v647
      %v840 = vpack.c.b16 %v652, %v650
      %v841 = vpack.c.b16 %v653, %v651
      %v842 = vpack.c.b16 %v656, %v654
      %v843 = vpack.c.b16 %v657, %v655
      %v844 = vpack.c.b16 %v660, %v658
      %v845 = vpack.c.b16 %v661, %v659
      %v846 = vpack.c.b16 %v664, %v662
      %v847 = vpack.c.b16 %v665, %v663
      %v848 = vpack.c.b16 %v668, %v666
      %v849 = vpack.c.b16 %v669, %v667
      %v850 = vpack.c.b16 %v672, %v670
      %v851 = vpack.c.b16 %v673, %v671
      %v852 = vpack.c.b16 %v676, %v674
      %v853 = vpack.c.b16 %v677, %v675
      %v854 = vpack.c.b16 %v680, %v678
      %v855 = vpack.c.b16 %v681, %v679
      %v856 = vpack.c.b16 %v684, %v682
      %v857 = vpack.c.b16 %v685, %v683
      %v858 = vpack.c.b16 %v688, %v686
      %v859 = vpack.c.b16 %v689, %v687
      %v860 = vpack.c.b16 %v692, %v690
      %v861 = vpack.c.b16 %v693, %v691
      %v862 = vpack.c.b16 %v696, %v694
      %v863 = vpack.c.b16 %v697, %v695
      %v864 = vpack.c.b16 %v700, %v698
      %v865 = vpack.c.b16 %v701, %v699
      %v866 = vpack.c.b16 %v704, %v702
      %v867 = vpack.c.b16 %v705, %v703
      %v868 = vpack.c.b16 %v708, %v706
      %v869 = vpack.c.b16 %v709, %v707
      %v870 = vpack.c.b16 %v712, %v710
      %v871 = vpack.c.b16 %v713, %v711
      %v872 = vpack.c.b16 %v716, %v714
      %v873 = vpack.c.b16 %v717, %v715
      %v874 = vpack.c.b16 %v720, %v718
      %v875 = vpack.c.b16 %v721, %v719
      %v876 = vpack.c.b16 %v724, %v722
      %v877 = vpack.c.b16 %v725, %v723
      %v878 = vpack.c.b16 %v728, %v726
      %v879 = vpack.c.b16 %v729, %v727
      %v880 = vpack.c.b16 %v732, %v730
      %v881 = vpack.c.b16 %v733, %v731
      %v882 = vpack.c.b16 %v736, %v734
      %v883 = vpack.c.b16 %v737, %v735
      %v884 = vpack.c.b16 %v740, %v738
      %v885 = vpack.c.b16 %v741, %v739
      %v886 = vpack.c.b16 %v744, %v742
      %v887 = vpack.c.b16 %v745, %v743
      %v888 = vpack.c.b16 %v748, %v746
      %v889 = vpack.c.b16 %v749, %v747
      %v890 = vpack.c.b16 %v752, %v750
      %v891 = vpack.c.b16 %v753, %v751
      %v892 = vpack.c.b16 %v756, %v754
      %v893 = vpack.c.b16 %v757, %v755
      %v894 = vpack.c.b16 %v760, %v758
      %v895 = vpack.c.b16 %v761, %v759
      %v896 = vpack.c.b16 %v764, %v762
      %v897 = vpack.c.b16 %v765, %v763
      %v898 = vpack.c.b16 %v768, %v766
      %v899 = vpack.c.b16 %v769, %v767
      %v900 = vpack.c.b16 %v772, %v770
      %v901 = vpack.c.b16 %v773, %v771
      %v902 = vpack.c.b16 %v776, %v774
      %v903 = vpack.c.b16 %v777, %v775
      %v904 = vpack.c.b16 %v780, %v778
      %v905 = vpack.c.b16 %v781, %v779
      %v906 = vpack.c.b16 %v784, %v782
      %v907 = vpack.c.b16 %v785, %v783
      %v908 = vpack.c.b16 %v788, %v786
      %v909 = vpack.c.b16 %v789, %v787
      %v910 = vpack.c.b16 %v792, %v790
      %v911 = vpack.c.b16 %v793, %v791
      %v912 = vpack.c.b16 %v796, %v794
      %v913 = vpack.c.b16 %v797, %v795
      %v914 = vpack.c.b16 %v800, %v798
      %v915 = vpack.c.b16 %v801, %v799
      %v916 = vpack.c.b16 %v804, %v802
      %v917 = vpack.c.b16 %v805, %v803
      %v918 = vpack.c.b16 %v808, %v806
      %v919 = vpack.c.b16 %v809, %v807
      %v920 = vpack.c.b16 %v812, %v810
      %v921 = vpack.c.b16 %v813, %v811
      %v922 = vpack.c.b16 %v816, %v814
      %v923 = vpack.c.b16 %v817, %v815
      %v924 = vpack.c.b16 %v820, %v818
      %v925 = vpack.c.b16 %v821, %v819
      %v926 = vpack.c.b16 %v824, %v822
      %v927 = vpack.c.b16 %v825, %v823
      %v928 = vpack.c.b16 %v828, %v826
      %v929 = vpack.c.b16 %v829, %v827
      %v1062 = vunpack.c.l.b16 %v491
      %v1063 = vunpack.c.l.b16 %v492
      %v1064 = vunpack.c.l.b16 %v493
      %v1065 = vunpack.c.l.b16 %v494
      %v1066 = vunpack.c.l.b16 %v495
      %v1067 = vunpack.c.l.b16 %v496
      %v1068 = vunpack.c.l.b16 %v497
      %v1069 = vunpack.c.l.b16 %v498
      %v1070 = vunpack.c.l.b16 %v499
      %v1071 = vunpack.c.l.b16 %v500
      %v1072 = vunpack.c.l.b16 %v501
      %v1073 = vunpack.c.l.b16 %v502
      %v1074 = vunpack.c.l.b16 %v503
      %v1075 = vunpack.c.l.b16 %v504
      %v1076 = vunpack.c.l.b16 %v505
      %v1077 = vunpack.c.l.b16 %v506
      %v1078 = vunpack.c.l.b16 %v507
      %v1079 = vunpack.c.l.b16 %v508
      %v1080 = vunpack.c.l.b16 %v509
      %v1081 = vunpack.c.l.b16 %v510
      %v1082 = vunpack.c.l.b16 %v511
      %v1083 = vunpack.c.l.b16 %v512
      %v1084 = vunpack.c.l.b16 %v513
      %v1085 = vunpack.c.l.b16 %v514
      %v1086 = vunpack.c.l.b16 %v515
      %v1087 = vunpack.c.l.b16 %v516
      %v1088 = vunpack.c.l.b16 %v517
      %v1089 = vunpack.c.l.b16 %v518
      %v1090 = vunpack.c.l.b16 %v519
      %v1091 = vunpack.c.l.b16 %v520
      %v1092 = vunpack.c.l.b16 %v521
      %v1093 = vunpack.c.l.b16 %v522
      %v1094 = vpack.c.b16 %v1063, %v1062
      %v1095 = vpack.c.b16 %v1065, %v1064
      %v1096 = vpack.c.b16 %v1067, %v1066
      %v1097 = vpack.c.b16 %v1069, %v1068
      %v1098 = vpack.c.b16 %v1071, %v1070
      %v1099 = vpack.c.b16 %v1073, %v1072
      %v1100 = vpack.c.b16 %v1075, %v1074
      %v1101 = vpack.c.b16 %v1077, %v1076
      %v1102 = vpack.c.b16 %v1079, %v1078
      %v1103 = vpack.c.b16 %v1081, %v1080
      %v1104 = vpack.c.b16 %v1083, %v1082
      %v1105 = vpack.c.b16 %v1085, %v1084
      %v1106 = vpack.c.b16 %v1087, %v1086
      %v1107 = vpack.c.b16 %v1089, %v1088
      %v1108 = vpack.c.b16 %v1091, %v1090
      %v1109 = vpack.c.b16 %v1093, %v1092
      %1126 = vmatprep.subr.bf16.mxu0 0
      %1127 = vmatpush1.bf16.msra.mxu0 %v1094
      %1128 = vmatprep.subr.bf16.mxu0 0
      %1129 = vmatpush1.bf16.msra.mxu0 %v1095
      %1130 = vmatprep.subr.bf16.mxu0 0
      %1131 = vmatpush1.bf16.msra.mxu0 %v1096
      %1132 = vmatprep.subr.bf16.mxu0 0
      %1133 = vmatpush1.bf16.msra.mxu0 %v1097
      %1134 = vmatprep.subr.bf16.mxu0 0
      %1135 = vmatpush1.bf16.msra.mxu0 %v1098
      %1136 = vmatprep.subr.bf16.mxu0 0
      %1137 = vmatpush1.bf16.msra.mxu0 %v1099
      %1138 = vmatprep.subr.bf16.mxu0 0
      %1139 = vmatpush1.bf16.msra.mxu0 %v1100
      %1140 = vmatprep.subr.bf16.mxu0 0
      %1141 = vmatpush1.bf16.msra.mxu0 %v1101
      %1142 = vmatprep.subr.bf16.mxu0 0
      %1143 = vmatpush1.bf16.msra.mxu0 %v1102
      %1144 = vmatprep.subr.bf16.mxu0 0
      %1145 = vmatpush1.bf16.msra.mxu0 %v1103
      %1146 = vmatprep.subr.bf16.mxu0 0
      %1147 = vmatpush1.bf16.msra.mxu0 %v1104
      %1148 = vmatprep.subr.bf16.mxu0 0
      %1149 = vmatpush1.bf16.msra.mxu0 %v1105
      %1150 = vmatprep.subr.bf16.mxu0 0
      %1151 = vmatpush1.bf16.msra.mxu0 %v1106
      %1152 = vmatprep.subr.bf16.mxu0 0
      %1153 = vmatpush1.bf16.msra.mxu0 %v1107
      %1154 = vmatprep.subr.bf16.mxu0 0
      %1155 = vmatpush1.bf16.msra.mxu0 %v1108
      %1156 = vmatprep.subr.bf16.mxu0 0
      %1157 = vmatpush1.bf16.msra.mxu0 %v1109
      %1158 = vmatprep.mubr.bf16.mxu0 %v831
      %1159 = vmatmul.mubr.bf16.gmra.mrb[0].mxu0 %v830
      %v1160 = vpop.f32.mrb[0].mxu0
      %v1161 = vadd.f32 %v528, %v1160
      %v1162 = vpop.f32.mrb[0].mxu0
      %v1163 = vpop.f32.mrb[0].mxu0
      %v1164 = vadd.f32 %v528, %v1163
      %v1165 = vpop.f32.mrb[0].mxu0
      %1166 = vmatprep.mubr.bf16.mxu0 %v833
      %1167 = vmatmul.mubr.bf16.gmra.mrb[0].mxu0 %v832
      %v1168 = vpop.f32.mrb[0].mxu0
      %v1169 = vadd.f32 %v528, %v1168
      %v1170 = vpop.f32.mrb[0].mxu0
      %v1171 = vpop.f32.mrb[0].mxu0
      %v1172 = vadd.f32 %v528, %v1171
      %v1173 = vpop.f32.mrb[0].mxu0
      %1174 = vmatprep.mubr.bf16.mxu0 %v835
      %1175 = vmatmul.mubr.bf16.gmra.mrb[0].mxu0 %v834
      %v1176 = vpop.f32.mrb[0].mxu0
      %v1177 = vadd.f32 %v528, %v1176
      %v1178 = vpop.f32.mrb[0].mxu0
      %v1179 = vpop.f32.mrb[0].mxu0
      %v1180 = vadd.f32 %v528, %v1179
      %v1181 = vpop.f32.mrb[0].mxu0
      %1182 = vmatprep.mubr.bf16.mxu0 %v837
      %1183 = vmatmul.mubr.bf16.gmra.mrb[0].mxu0 %v836
      %v1184 = vpop.f32.mrb[0].mxu0
      %v1185 = vadd.f32 %v528, %v1184
      %v1186 = vpop.f32.mrb[0].mxu0
      %v1187 = vpop.f32.mrb[0].mxu0
      %v1188 = vadd.f32 %v528, %v1187
      %v1189 = vpop.f32.mrb[0].mxu0
      %1190 = vmatprep.mubr.bf16.mxu0 %v839
      %1191 = vmatmul.mubr.bf16.gmra.mrb[0].mxu0 %v838
      %v1192 = vpop.f32.mrb[0].mxu0
      %v1193 = vadd.f32 %v528, %v1192
      %v1194 = vpop.f32.mrb[0].mxu0
      %v1195 = vpop.f32.mrb[0].mxu0
      %v1196 = vadd.f32 %v528, %v1195
      %v1197 = vpop.f32.mrb[0].mxu0
      %1198 = vmatprep.mubr.bf16.mxu0 %v841
      %1199 = vmatmul.mubr.bf16.gmra.mrb[0].mxu0 %v840
      %v1200 = vpop.f32.mrb[0].mxu0
      %v1201 = vadd.f32 %v528, %v1200
      %v1202 = vpop.f32.mrb[0].mxu0
      %v1203 = vpop.f32.mrb[0].mxu0
      %v1204 = vadd.f32 %v528, %v1203
      %v1205 = vpop.f32.mrb[0].mxu0
      %1206 = vmatprep.mubr.bf16.mxu0 %v843
      %1207 = vmatmul.mubr.bf16.gmra.mrb[0].mxu0 %v842
      %v1208 = vpop.f32.mrb[0].mxu0
      %v1209 = vadd.f32 %v528, %v1208
      %v1210 = vpop.f32.mrb[0].mxu0
      %v1211 = vpop.f32.mrb[0].mxu0
      %v1212 = vadd.f32 %v528, %v1211
      %v1213 = vpop.f32.mrb[0].mxu0
      %1214 = vmatprep.mubr.bf16.mxu0 %v845
      %1215 = vmatmul.mubr.bf16.gmra.mrb[0].mxu0 %v844
      %v1216 = vpop.f32.mrb[0].mxu0
      %v1217 = vadd.f32 %v528, %v1216
      %v1218 = vpop.f32.mrb[0].mxu0
      %v1219 = vpop.f32.mrb[0].mxu0
      %v1220 = vadd.f32 %v528, %v1219
      %v1221 = vpop.f32.mrb[0].mxu0
      %1222 = vmatprep.mubr.bf16.mxu0 %v847
      %1223 = vmatmul.mubr.bf16.gmra.mrb[0].mxu0 %v846
      %v1224 = vpop.f32.mrb[0].mxu0
      %v1225 = vadd.f32 %v528, %v1224
      %v1226 = vpop.f32.mrb[0].mxu0
      %v1227 = vpop.f32.mrb[0].mxu0
      %v1228 = vadd.f32 %v528, %v1227
      %v1229 = vpop.f32.mrb[0].mxu0
      %1230 = vmatprep.mubr.bf16.mxu0 %v849
      %1231 = vmatmul.mubr.bf16.gmra.mrb[0].mxu0 %v848
      %v1232 = vpop.f32.mrb[0].mxu0
      %v1233 = vadd.f32 %v528, %v1232
      %v1234 = vpop.f32.mrb[0].mxu0
      %v1235 = vpop.f32.mrb[0].mxu0
      %v1236 = vadd.f32 %v528, %v1235
      %v1237 = vpop.f32.mrb[0].mxu0
      %1238 = vmatprep.mubr.bf16.mxu0 %v851
      %1239 = vmatmul.mubr.bf16.gmra.mrb[0].mxu0 %v850
      %v1240 = vpop.f32.mrb[0].mxu0
      %v1241 = vadd.f32 %v528, %v1240
      %v1242 = vpop.f32.mrb[0].mxu0
      %v1243 = vpop.f32.mrb[0].mxu0
      %v1244 = vadd.f32 %v528, %v1243
      %v1245 = vpop.f32.mrb[0].mxu0
      %1246 = vmatprep.mubr.bf16.mxu0 %v853
      %1247 = vmatmul.mubr.bf16.gmra.mrb[0].mxu0 %v852
      %v1248 = vpop.f32.mrb[0].mxu0
      %v1249 = vadd.f32 %v528, %v1248
      %v1250 = vpop.f32.mrb[0].mxu0
      %v1251 = vpop.f32.mrb[0].mxu0
      %v1252 = vadd.f32 %v528, %v1251
      %v1253 = vpop.f32.mrb[0].mxu0
      %1254 = vmatprep.mubr.bf16.mxu0 %v855
      %1255 = vmatmul.mubr.bf16.gmra.mrb[0].mxu0 %v854
      %v1256 = vpop.f32.mrb[0].mxu0
      %v1257 = vadd.f32 %v528, %v1256
      %v1258 = vpop.f32.mrb[0].mxu0
      %v1259 = vpop.f32.mrb[0].mxu0
      %v1260 = vadd.f32 %v528, %v1259
      %v1261 = vpop.f32.mrb[0].mxu0
      %1262 = vmatprep.mubr.bf16.mxu0 %v857
      %1263 = vmatmul.mubr.bf16.gmra.mrb[0].mxu0 %v856
      %v1264 = vpop.f32.mrb[0].mxu0
      %v1265 = vadd.f32 %v528, %v1264
      %v1266 = vpop.f32.mrb[0].mxu0
      %v1267 = vpop.f32.mrb[0].mxu0
      %v1268 = vadd.f32 %v528, %v1267
      %v1269 = vpop.f32.mrb[0].mxu0
      %1270 = vmatprep.mubr.bf16.mxu0 %v859
      %1271 = vmatmul.mubr.bf16.gmra.mrb[0].mxu0 %v858
      %v1272 = vpop.f32.mrb[0].mxu0
      %v1273 = vadd.f32 %v528, %v1272
      %v1274 = vpop.f32.mrb[0].mxu0
      %v1275 = vpop.f32.mrb[0].mxu0
      %v1276 = vadd.f32 %v528, %v1275
      %v1277 = vpop.f32.mrb[0].mxu0
      %1278 = vmatprep.mubr.bf16.mxu0 %v861
      %1279 = vmatmul.mubr.bf16.gmra.mrb[0].mxu0 %v860
      %v1280 = vpop.f32.mrb[0].mxu0
      %v1281 = vadd.f32 %v528, %v1280
      %v1282 = vpop.f32.mrb[0].mxu0
      %v1283 = vpop.f32.mrb[0].mxu0
      %v1284 = vadd.f32 %v528, %v1283
      %v1285 = vpop.f32.mrb[0].mxu0
      %1286 = vmatprep.mubr.bf16.mxu0 %v863
      %1287 = vmatmul.mubr.bf16.gmra.mrb[0].mxu0 %v862
      %v1288 = vpop.f32.mrb[0].mxu0
      %v1289 = vadd.f32 %v528, %v1288
      %v1290 = vpop.f32.mrb[0].mxu0
      %v1291 = vpop.f32.mrb[0].mxu0
      %v1292 = vadd.f32 %v528, %v1291
      %v1293 = vpop.f32.mrb[0].mxu0
      %1294 = vmatprep.mubr.bf16.mxu0 %v865
      %1295 = vmatmul.mubr.bf16.gmra.mrb[0].mxu0 %v864
      %v1296 = vpop.f32.mrb[0].mxu0
      %v1297 = vadd.f32 %v528, %v1296
      %v1298 = vpop.f32.mrb[0].mxu0
      %v1299 = vpop.f32.mrb[0].mxu0
      %v1300 = vadd.f32 %v528, %v1299
      %v1301 = vpop.f32.mrb[0].mxu0
      %1302 = vmatprep.mubr.bf16.mxu0 %v867
      %1303 = vmatmul.mubr.bf16.gmra.mrb[0].mxu0 %v866
      %v1304 = vpop.f32.mrb[0].mxu0
      %v1305 = vadd.f32 %v528, %v1304
      %v1306 = vpop.f32.mrb[0].mxu0
      %v1307 = vpop.f32.mrb[0].mxu0
      %v1308 = vadd.f32 %v528, %v1307
      %v1309 = vpop.f32.mrb[0].mxu0
      %1310 = vmatprep.mubr.bf16.mxu0 %v869
      %1311 = vmatmul.mubr.bf16.gmra.mrb[0].mxu0 %v868
      %v1312 = vpop.f32.mrb[0].mxu0
      %v1313 = vadd.f32 %v528, %v1312
      %v1314 = vpop.f32.mrb[0].mxu0
      %v1315 = vpop.f32.mrb[0].mxu0
      %v1316 = vadd.f32 %v528, %v1315
      %v1317 = vpop.f32.mrb[0].mxu0
      %1318 = vmatprep.mubr.bf16.mxu0 %v871
      %1319 = vmatmul.mubr.bf16.gmra.mrb[0].mxu0 %v870
      %v1320 = vpop.f32.mrb[0].mxu0
      %v1321 = vadd.f32 %v528, %v1320
      %v1322 = vpop.f32.mrb[0].mxu0
      %v1323 = vpop.f32.mrb[0].mxu0
      %v1324 = vadd.f32 %v528, %v1323
      %v1325 = vpop.f32.mrb[0].mxu0
      %1326 = vmatprep.mubr.bf16.mxu0 %v873
      %1327 = vmatmul.mubr.bf16.gmra.mrb[0].mxu0 %v872
      %v1328 = vpop.f32.mrb[0].mxu0
      %v1329 = vadd.f32 %v528, %v1328
      %v1330 = vpop.f32.mrb[0].mxu0
      %v1331 = vpop.f32.mrb[0].mxu0
      %v1332 = vadd.f32 %v528, %v1331
      %v1333 = vpop.f32.mrb[0].mxu0
      %1334 = vmatprep.mubr.bf16.mxu0 %v875
      %1335 = vmatmul.mubr.bf16.gmra.mrb[0].mxu0 %v874
      %v1336 = vpop.f32.mrb[0].mxu0
      %v1337 = vadd.f32 %v528, %v1336
      %v1338 = vpop.f32.mrb[0].mxu0
      %v1339 = vpop.f32.mrb[0].mxu0
      %v1340 = vadd.f32 %v528, %v1339
      %v1341 = vpop.f32.mrb[0].mxu0
      %1342 = vmatprep.mubr.bf16.mxu0 %v877
      %1343 = vmatmul.mubr.bf16.gmra.mrb[0].mxu0 %v876
      %v1344 = vpop.f32.mrb[0].mxu0
      %v1345 = vadd.f32 %v528, %v1344
      %v1346 = vpop.f32.mrb[0].mxu0
      %v1347 = vpop.f32.mrb[0].mxu0
      %v1348 = vadd.f32 %v528, %v1347
      %v1349 = vpop.f32.mrb[0].mxu0
      %1350 = vmatprep.mubr.bf16.mxu0 %v879
      %1351 = vmatmul.mubr.bf16.gmra.mrb[0].mxu0 %v878
      %v1352 = vpop.f32.mrb[0].mxu0
      %v1353 = vadd.f32 %v528, %v1352
      %v1354 = vpop.f32.mrb[0].mxu0
      %v1355 = vpop.f32.mrb[0].mxu0
      %v1356 = vadd.f32 %v528, %v1355
      %v1357 = vpop.f32.mrb[0].mxu0
      %1358 = vmatprep.mubr.bf16.mxu0 %v881
      %1359 = vmatmul.mubr.bf16.gmra.mrb[0].mxu0 %v880
      %v1360 = vpop.f32.mrb[0].mxu0
      %v1361 = vadd.f32 %v528, %v1360
      %v1362 = vpop.f32.mrb[0].mxu0
      %v1363 = vpop.f32.mrb[0].mxu0
      %v1364 = vadd.f32 %v528, %v1363
      %v1365 = vpop.f32.mrb[0].mxu0
      %1366 = vmatprep.mubr.bf16.mxu0 %v883
      %1367 = vmatmul.mubr.bf16.gmra.mrb[0].mxu0 %v882
      %v1368 = vpop.f32.mrb[0].mxu0
      %v1369 = vadd.f32 %v528, %v1368
      %v1370 = vpop.f32.mrb[0].mxu0
      %v1371 = vpop.f32.mrb[0].mxu0
      %v1372 = vadd.f32 %v528, %v1371
      %v1373 = vpop.f32.mrb[0].mxu0
      %1374 = vmatprep.mubr.bf16.mxu0 %v885
      %1375 = vmatmul.mubr.bf16.gmra.mrb[0].mxu0 %v884
      %v1376 = vpop.f32.mrb[0].mxu0
      %v1377 = vadd.f32 %v528, %v1376
      %v1378 = vpop.f32.mrb[0].mxu0
      %v1379 = vpop.f32.mrb[0].mxu0
      %v1380 = vadd.f32 %v528, %v1379
      %v1381 = vpop.f32.mrb[0].mxu0
      %1382 = vmatprep.mubr.bf16.mxu0 %v887
      %1383 = vmatmul.mubr.bf16.gmra.mrb[0].mxu0 %v886
      %v1384 = vpop.f32.mrb[0].mxu0
      %v1385 = vadd.f32 %v528, %v1384
      %v1386 = vpop.f32.mrb[0].mxu0
      %v1387 = vpop.f32.mrb[0].mxu0
      %v1388 = vadd.f32 %v528, %v1387
      %v1389 = vpop.f32.mrb[0].mxu0
      %1390 = vmatprep.mubr.bf16.mxu0 %v889
      %1391 = vmatmul.mubr.bf16.gmra.mrb[0].mxu0 %v888
      %v1392 = vpop.f32.mrb[0].mxu0
      %v1393 = vadd.f32 %v528, %v1392
      %v1394 = vpop.f32.mrb[0].mxu0
      %v1395 = vpop.f32.mrb[0].mxu0
      %v1396 = vadd.f32 %v528, %v1395
      %v1397 = vpop.f32.mrb[0].mxu0
      %1398 = vmatprep.mubr.bf16.mxu0 %v891
      %1399 = vmatmul.mubr.bf16.gmra.mrb[0].mxu0 %v890
      %v1400 = vpop.f32.mrb[0].mxu0
      %v1401 = vadd.f32 %v528, %v1400
      %v1402 = vpop.f32.mrb[0].mxu0
      %v1403 = vpop.f32.mrb[0].mxu0
      %v1404 = vadd.f32 %v528, %v1403
      %v1405 = vpop.f32.mrb[0].mxu0
      %1406 = vmatprep.mubr.bf16.mxu0 %v893
      %1407 = vmatmul.mubr.bf16.gmra.mrb[0].mxu0 %v892
      %v1408 = vpop.f32.mrb[0].mxu0
      %v1409 = vadd.f32 %v528, %v1408
      %v1410 = vpop.f32.mrb[0].mxu0
      %v1411 = vpop.f32.mrb[0].mxu0
      %v1412 = vadd.f32 %v528, %v1411
      %v1413 = vpop.f32.mrb[0].mxu0
      %1414 = vmatprep.mubr.bf16.mxu0 %v895
      %1415 = vmatmul.mubr.bf16.gmra.mrb[0].mxu0 %v894
      %v1416 = vpop.f32.mrb[0].mxu0
      %v1417 = vadd.f32 %v528, %v1416
      %v1418 = vpop.f32.mrb[0].mxu0
      %v1419 = vpop.f32.mrb[0].mxu0
      %v1420 = vadd.f32 %v528, %v1419
      %v1421 = vpop.f32.mrb[0].mxu0
      %1422 = vmatprep.mubr.bf16.mxu0 %v897
      %1423 = vmatmul.mubr.bf16.gmra.mrb[0].mxu0 %v896
      %v1424 = vpop.f32.mrb[0].mxu0
      %v1425 = vadd.f32 %v528, %v1424
      %v1426 = vpop.f32.mrb[0].mxu0
      %v1427 = vpop.f32.mrb[0].mxu0
      %v1428 = vadd.f32 %v528, %v1427
      %v1429 = vpop.f32.mrb[0].mxu0
      %1430 = vmatprep.mubr.bf16.mxu0 %v899
      %1431 = vmatmul.mubr.bf16.gmra.mrb[0].mxu0 %v898
      %v1432 = vpop.f32.mrb[0].mxu0
      %v1433 = vadd.f32 %v528, %v1432
      %v1434 = vpop.f32.mrb[0].mxu0
      %v1435 = vpop.f32.mrb[0].mxu0
      %v1436 = vadd.f32 %v528, %v1435
      %v1437 = vpop.f32.mrb[0].mxu0
      %1438 = vmatprep.mubr.bf16.mxu0 %v901
      %1439 = vmatmul.mubr.bf16.gmra.mrb[0].mxu0 %v900
      %v1440 = vpop.f32.mrb[0].mxu0
      %v1441 = vadd.f32 %v528, %v1440
      %v1442 = vpop.f32.mrb[0].mxu0
      %v1443 = vpop.f32.mrb[0].mxu0
      %v1444 = vadd.f32 %v528, %v1443
      %v1445 = vpop.f32.mrb[0].mxu0
      %1446 = vmatprep.mubr.bf16.mxu0 %v903
      %1447 = vmatmul.mubr.bf16.gmra.mrb[0].mxu0 %v902
      %v1448 = vpop.f32.mrb[0].mxu0
      %v1449 = vadd.f32 %v528, %v1448
      %v1450 = vpop.f32.mrb[0].mxu0
      %v1451 = vpop.f32.mrb[0].mxu0
      %v1452 = vadd.f32 %v528, %v1451
      %v1453 = vpop.f32.mrb[0].mxu0
      %1454 = vmatprep.mubr.bf16.mxu0 %v905
      %1455 = vmatmul.mubr.bf16.gmra.mrb[0].mxu0 %v904
      %v1456 = vpop.f32.mrb[0].mxu0
      %v1457 = vadd.f32 %v528, %v1456
      %v1458 = vpop.f32.mrb[0].mxu0
      %v1459 = vpop.f32.mrb[0].mxu0
      %v1460 = vadd.f32 %v528, %v1459
      %v1461 = vpop.f32.mrb[0].mxu0
      %1462 = vmatprep.mubr.bf16.mxu0 %v907
      %1463 = vmatmul.mubr.bf16.gmra.mrb[0].mxu0 %v906
      %v1464 = vpop.f32.mrb[0].mxu0
      %v1465 = vadd.f32 %v528, %v1464
      %v1466 = vpop.f32.mrb[0].mxu0
      %v1467 = vpop.f32.mrb[0].mxu0
      %v1468 = vadd.f32 %v528, %v1467
      %v1469 = vpop.f32.mrb[0].mxu0
      %1470 = vmatprep.mubr.bf16.mxu0 %v909
      %1471 = vmatmul.mubr.bf16.gmra.mrb[0].mxu0 %v908
      %v1472 = vpop.f32.mrb[0].mxu0
      %v1473 = vadd.f32 %v528, %v1472
      %v1474 = vpop.f32.mrb[0].mxu0
      %v1475 = vpop.f32.mrb[0].mxu0
      %v1476 = vadd.f32 %v528, %v1475
      %v1477 = vpop.f32.mrb[0].mxu0
      %1478 = vmatprep.mubr.bf16.mxu0 %v911
      %1479 = vmatmul.mubr.bf16.gmra.mrb[0].mxu0 %v910
      %v1480 = vpop.f32.mrb[0].mxu0
      %v1481 = vadd.f32 %v528, %v1480
      %v1482 = vpop.f32.mrb[0].mxu0
      %v1483 = vpop.f32.mrb[0].mxu0
      %v1484 = vadd.f32 %v528, %v1483
      %v1485 = vpop.f32.mrb[0].mxu0
      %1486 = vmatprep.mubr.bf16.mxu0 %v913
      %1487 = vmatmul.mubr.bf16.gmra.mrb[0].mxu0 %v912
      %v1488 = vpop.f32.mrb[0].mxu0
      %v1489 = vadd.f32 %v528, %v1488
      %v1490 = vpop.f32.mrb[0].mxu0
      %v1491 = vpop.f32.mrb[0].mxu0
      %v1492 = vadd.f32 %v528, %v1491
      %v1493 = vpop.f32.mrb[0].mxu0
      %1494 = vmatprep.mubr.bf16.mxu0 %v915
      %1495 = vmatmul.mubr.bf16.gmra.mrb[0].mxu0 %v914
      %v1496 = vpop.f32.mrb[0].mxu0
      %v1497 = vadd.f32 %v528, %v1496
      %v1498 = vpop.f32.mrb[0].mxu0
      %v1499 = vpop.f32.mrb[0].mxu0
      %v1500 = vadd.f32 %v528, %v1499
      %v1501 = vpop.f32.mrb[0].mxu0
      %1502 = vmatprep.mubr.bf16.mxu0 %v917
      %1503 = vmatmul.mubr.bf16.gmra.mrb[0].mxu0 %v916
      %v1504 = vpop.f32.mrb[0].mxu0
      %v1505 = vadd.f32 %v528, %v1504
      %v1506 = vpop.f32.mrb[0].mxu0
      %v1507 = vpop.f32.mrb[0].mxu0
      %v1508 = vadd.f32 %v528, %v1507
      %v1509 = vpop.f32.mrb[0].mxu0
      %1510 = vmatprep.mubr.bf16.mxu0 %v919
      %1511 = vmatmul.mubr.bf16.gmra.mrb[0].mxu0 %v918
      %v1512 = vpop.f32.mrb[0].mxu0
      %v1513 = vadd.f32 %v528, %v1512
      %v1514 = vpop.f32.mrb[0].mxu0
      %v1515 = vpop.f32.mrb[0].mxu0
      %v1516 = vadd.f32 %v528, %v1515
      %v1517 = vpop.f32.mrb[0].mxu0
      %1518 = vmatprep.mubr.bf16.mxu0 %v921
      %1519 = vmatmul.mubr.bf16.gmra.mrb[0].mxu0 %v920
      %v1520 = vpop.f32.mrb[0].mxu0
      %v1521 = vadd.f32 %v528, %v1520
      %v1522 = vpop.f32.mrb[0].mxu0
      %v1523 = vpop.f32.mrb[0].mxu0
      %v1524 = vadd.f32 %v528, %v1523
      %v1525 = vpop.f32.mrb[0].mxu0
      %1526 = vmatprep.mubr.bf16.mxu0 %v923
      %1527 = vmatmul.mubr.bf16.gmra.mrb[0].mxu0 %v922
      %v1528 = vpop.f32.mrb[0].mxu0
      %v1529 = vadd.f32 %v528, %v1528
      %v1530 = vpop.f32.mrb[0].mxu0
      %v1531 = vpop.f32.mrb[0].mxu0
      %v1532 = vadd.f32 %v528, %v1531
      %v1533 = vpop.f32.mrb[0].mxu0
      %1534 = vmatprep.mubr.bf16.mxu0 %v925
      %1535 = vmatmul.mubr.bf16.gmra.mrb[0].mxu0 %v924
      %v1536 = vpop.f32.mrb[0].mxu0
      %v1537 = vadd.f32 %v528, %v1536
      %v1538 = vpop.f32.mrb[0].mxu0
      %v1539 = vpop.f32.mrb[0].mxu0
      %v1540 = vadd.f32 %v528, %v1539
      %v1541 = vpop.f32.mrb[0].mxu0
      %1542 = vmatprep.mubr.bf16.mxu0 %v927
      %1543 = vmatmul.mubr.bf16.gmra.mrb[0].mxu0 %v926
      %v1544 = vpop.f32.mrb[0].mxu0
      %v1545 = vadd.f32 %v528, %v1544
      %v1546 = vpop.f32.mrb[0].mxu0
      %v1547 = vpop.f32.mrb[0].mxu0
      %v1548 = vadd.f32 %v528, %v1547
      %v1549 = vpop.f32.mrb[0].mxu0
      %1550 = vmatprep.mubr.bf16.mxu0 %v929
      %1551 = vmatmul.mubr.bf16.gmra.mrb[0].mxu0 %v928
      %v1552 = vpop.f32.mrb[0].mxu0
      %v1553 = vadd.f32 %v528, %v1552
      %v1554 = vpop.f32.mrb[0].mxu0
      %v1555 = vpop.f32.mrb[0].mxu0
      %v1556 = vadd.f32 %v528, %v1555
      %v1557 = vpop.f32.mrb[0].mxu0
      %1558 = vdwg.mxu0
      %v1559 = vmax.f32 %v1161, 0.0
      %v1560 = vmax.f32 %v1164, 0.0
      %v1561 = vmax.f32 %v1169, 0.0
      %v1562 = vmax.f32 %v1172, 0.0
      %v1563 = vmax.f32 %v1177, 0.0
      %v1564 = vmax.f32 %v1180, 0.0
      %v1565 = vmax.f32 %v1185, 0.0
      %v1566 = vmax.f32 %v1188, 0.0
      %v1567 = vmax.f32 %v1193, 0.0
      %v1568 = vmax.f32 %v1196, 0.0
      %v1569 = vmax.f32 %v1201, 0.0
      %v1570 = vmax.f32 %v1204, 0.0
      %v1571 = vmax.f32 %v1209, 0.0
      %v1572 = vmax.f32 %v1212, 0.0
      %v1573 = vmax.f32 %v1217, 0.0
      %v1574 = vmax.f32 %v1220, 0.0
      %v1575 = vmax.f32 %v1225, 0.0
      %v1576 = vmax.f32 %v1228, 0.0
      %v1577 = vmax.f32 %v1233, 0.0
      %v1578 = vmax.f32 %v1236, 0.0
      %v1579 = vmax.f32 %v1241, 0.0
      %v1580 = vmax.f32 %v1244, 0.0
      %v1581 = vmax.f32 %v1249, 0.0
      %v1582 = vmax.f32 %v1252, 0.0
      %v1583 = vmax.f32 %v1257, 0.0
      %v1584 = vmax.f32 %v1260, 0.0
      %v1585 = vmax.f32 %v1265, 0.0
      %v1586 = vmax.f32 %v1268, 0.0
      %v1587 = vmax.f32 %v1273, 0.0
      %v1588 = vmax.f32 %v1276, 0.0
      %v1589 = vmax.f32 %v1281, 0.0
      %v1590 = vmax.f32 %v1284, 0.0
      %v1591 = vmax.f32 %v1289, 0.0
      %v1592 = vmax.f32 %v1292, 0.0
      %v1593 = vmax.f32 %v1297, 0.0
      %v1594 = vmax.f32 %v1300, 0.0
      %v1595 = vmax.f32 %v1305, 0.0
      %v1596 = vmax.f32 %v1308, 0.0
      %v1597 = vmax.f32 %v1313, 0.0
      %v1598 = vmax.f32 %v1316, 0.0
      %v1599 = vmax.f32 %v1321, 0.0
      %v1600 = vmax.f32 %v1324, 0.0
      %v1601 = vmax.f32 %v1329, 0.0
      %v1602 = vmax.f32 %v1332, 0.0
      %v1603 = vmax.f32 %v1337, 0.0
      %v1604 = vmax.f32 %v1340, 0.0
      %v1605 = vmax.f32 %v1345, 0.0
      %v1606 = vmax.f32 %v1348, 0.0
      %v1607 = vmax.f32 %v1353, 0.0
      %v1608 = vmax.f32 %v1356, 0.0
      %v1609 = vmax.f32 %v1361, 0.0
      %v1610 = vmax.f32 %v1364, 0.0
      %v1611 = vmax.f32 %v1369, 0.0
      %v1612 = vmax.f32 %v1372, 0.0
      %v1613 = vmax.f32 %v1377, 0.0
      %v1614 = vmax.f32 %v1380, 0.0
      %v1615 = vmax.f32 %v1385, 0.0
      %v1616 = vmax.f32 %v1388, 0.0
      %v1617 = vmax.f32 %v1393, 0.0
      %v1618 = vmax.f32 %v1396, 0.0
      %v1619 = vmax.f32 %v1401, 0.0
      %v1620 = vmax.f32 %v1404, 0.0
      %v1621 = vmax.f32 %v1409, 0.0
      %v1622 = vmax.f32 %v1412, 0.0
      %v1623 = vmax.f32 %v1417, 0.0
      %v1624 = vmax.f32 %v1420, 0.0
      %v1625 = vmax.f32 %v1425, 0.0
      %v1626 = vmax.f32 %v1428, 0.0
      %v1627 = vmax.f32 %v1433, 0.0
      %v1628 = vmax.f32 %v1436, 0.0
      %v1629 = vmax.f32 %v1441, 0.0
      %v1630 = vmax.f32 %v1444, 0.0
      %v1631 = vmax.f32 %v1449, 0.0
      %v1632 = vmax.f32 %v1452, 0.0
      %v1633 = vmax.f32 %v1457, 0.0
      %v1634 = vmax.f32 %v1460, 0.0
      %v1635 = vmax.f32 %v1465, 0.0
      %v1636 = vmax.f32 %v1468, 0.0
      %v1637 = vmax.f32 %v1473, 0.0
      %v1638 = vmax.f32 %v1476, 0.0
      %v1639 = vmax.f32 %v1481, 0.0
      %v1640 = vmax.f32 %v1484, 0.0
      %v1641 = vmax.f32 %v1489, 0.0
      %v1642 = vmax.f32 %v1492, 0.0
      %v1643 = vmax.f32 %v1497, 0.0
      %v1644 = vmax.f32 %v1500, 0.0
      %v1645 = vmax.f32 %v1505, 0.0
      %v1646 = vmax.f32 %v1508, 0.0
      %v1647 = vmax.f32 %v1513, 0.0
      %v1648 = vmax.f32 %v1516, 0.0
      %v1649 = vmax.f32 %v1521, 0.0
      %v1650 = vmax.f32 %v1524, 0.0
      %v1651 = vmax.f32 %v1529, 0.0
      %v1652 = vmax.f32 %v1532, 0.0
      %v1653 = vmax.f32 %v1537, 0.0
      %v1654 = vmax.f32 %v1540, 0.0
      %v1655 = vmax.f32 %v1545, 0.0
      %v1656 = vmax.f32 %v1548, 0.0
      %v1657 = vmax.f32 %v1553, 0.0
      %v1658 = vmax.f32 %v1556, 0.0
      %1675 = vrot.lane.b32.xlu0 %v1584, 32
      %v1676 = vpop.permute.xlu0 %1675
      %1677 = vrot.lane.b32.xlu0 %v1585, 32
      %v1678 = vpop.permute.xlu0 %1677
      %1679 = vrot.lane.b32.xlu0 %v1586, 32
      %v1680 = vpop.permute.xlu0 %1679
      %1681 = vrot.lane.b32.xlu0 %v1587, 32
      %v1682 = vpop.permute.xlu0 %1681
      %1683 = vrot.lane.b32.xlu0 %v1589, 32
      %v1684 = vpop.permute.xlu0 %1683
      %1685 = vrot.lane.b32.xlu0 %v1590, 32
      %v1686 = vpop.permute.xlu0 %1685
      %1687 = vrot.lane.b32.xlu0 %v1591, 32
      %v1688 = vpop.permute.xlu0 %1687
      %1689 = vrot.lane.b32.xlu0 %v1592, 32
      %v1690 = vpop.permute.xlu0 %1689
      %1691 = vrot.lane.b32.xlu0 %v1594, 32
      %v1692 = vpop.permute.xlu0 %1691
      %1693 = vrot.lane.b32.xlu0 %v1595, 32
      %v1694 = vpop.permute.xlu0 %1693
      %1695 = vrot.lane.b32.xlu0 %v1596, 32
      %v1696 = vpop.permute.xlu0 %1695
      %1697 = vrot.lane.b32.xlu0 %v1597, 32
      %v1698 = vpop.permute.xlu0 %1697
      %1699 = vrot.lane.b32.xlu0 %v1599, 32
      %v1700 = vpop.permute.xlu0 %1699
      %1701 = vrot.lane.b32.xlu0 %v1600, 32
      %v1702 = vpop.permute.xlu0 %1701
      %1703 = vrot.lane.b32.xlu0 %v1601, 32
      %v1704 = vpop.permute.xlu0 %1703
      %1705 = vrot.lane.b32.xlu0 %v1602, 32
      %v1706 = vpop.permute.xlu0 %1705
      %1739 = vrot.lane.b32.xlu0 %v1560, 64
      %v1740 = vpop.permute.xlu0 %1739
      %1741 = vrot.lane.b32.xlu0 %v1561, 64
      %v1742 = vpop.permute.xlu0 %1741
      %1743 = vrot.lane.b32.xlu0 %v1562, 64
      %v1744 = vpop.permute.xlu0 %1743
      %1745 = vrot.lane.b32.xlu0 %v1563, 64
      %v1746 = vpop.permute.xlu0 %1745
      %1747 = vrot.lane.b32.xlu0 %v1565, 64
      %v1748 = vpop.permute.xlu0 %1747
      %1749 = vrot.lane.b32.xlu0 %v1566, 64
      %v1750 = vpop.permute.xlu0 %1749
      %1751 = vrot.lane.b32.xlu0 %v1567, 64
      %v1752 = vpop.permute.xlu0 %1751
      %1753 = vrot.lane.b32.xlu0 %v1568, 64
      %v1754 = vpop.permute.xlu0 %1753
      %1755 = vrot.lane.b32.xlu0 %v1570, 64
      %v1756 = vpop.permute.xlu0 %1755
      %1757 = vrot.lane.b32.xlu0 %v1571, 64
      %v1758 = vpop.permute.xlu0 %1757
      %1759 = vrot.lane.b32.xlu0 %v1572, 64
      %v1760 = vpop.permute.xlu0 %1759
      %1761 = vrot.lane.b32.xlu0 %v1573, 64
      %v1762 = vpop.permute.xlu0 %1761
      %1763 = vrot.lane.b32.xlu0 %v1575, 64
      %v1764 = vpop.permute.xlu0 %1763
      %1765 = vrot.lane.b32.xlu0 %v1576, 64
      %v1766 = vpop.permute.xlu0 %1765
      %1767 = vrot.lane.b32.xlu0 %v1577, 64
      %v1768 = vpop.permute.xlu0 %1767
      %1769 = vrot.lane.b32.xlu0 %v1578, 64
      %v1770 = vpop.permute.xlu0 %1769
      %1791 = vrot.lane.b32.xlu0 %v1585, 96
      %v1792 = vpop.permute.xlu0 %1791
      %1793 = vrot.lane.b32.xlu0 %v1586, 96
      %v1794 = vpop.permute.xlu0 %1793
      %1795 = vrot.lane.b32.xlu0 %v1587, 96
      %v1796 = vpop.permute.xlu0 %1795
      %1797 = vrot.lane.b32.xlu0 %v1588, 96
      %v1798 = vpop.permute.xlu0 %1797
      %1799 = vrot.lane.b32.xlu0 %v1590, 96
      %v1800 = vpop.permute.xlu0 %1799
      %1801 = vrot.lane.b32.xlu0 %v1591, 96
      %v1802 = vpop.permute.xlu0 %1801
      %1803 = vrot.lane.b32.xlu0 %v1592, 96
      %v1804 = vpop.permute.xlu0 %1803
      %1805 = vrot.lane.b32.xlu0 %v1593, 96
      %v1806 = vpop.permute.xlu0 %1805
      %1807 = vrot.lane.b32.xlu0 %v1595, 96
      %v1808 = vpop.permute.xlu0 %1807
      %1809 = vrot.lane.b32.xlu0 %v1596, 96
      %v1810 = vpop.permute.xlu0 %1809
      %1811 = vrot.lane.b32.xlu0 %v1597, 96
      %v1812 = vpop.permute.xlu0 %1811
      %1813 = vrot.lane.b32.xlu0 %v1598, 96
      %v1814 = vpop.permute.xlu0 %1813
      %1815 = vrot.lane.b32.xlu0 %v1600, 96
      %v1816 = vpop.permute.xlu0 %1815
      %1817 = vrot.lane.b32.xlu0 %v1601, 96
      %v1818 = vpop.permute.xlu0 %1817
      %1819 = vrot.lane.b32.xlu0 %v1602, 96
      %v1820 = vpop.permute.xlu0 %1819
      %1821 = vrot.lane.b32.xlu0 %v1603, 96
      %v1822 = vpop.permute.xlu0 %1821
      %1855 = vrot.lane.b32.xlu0 %v1634, 32
      %v1856 = vpop.permute.xlu0 %1855
      %1857 = vrot.lane.b32.xlu0 %v1635, 32
      %v1858 = vpop.permute.xlu0 %1857
      %1859 = vrot.lane.b32.xlu0 %v1636, 32
      %v1860 = vpop.permute.xlu0 %1859
      %1861 = vrot.lane.b32.xlu0 %v1637, 32
      %v1862 = vpop.permute.xlu0 %1861
      %1863 = vrot.lane.b32.xlu0 %v1639, 32
      %v1864 = vpop.permute.xlu0 %1863
      %1865 = vrot.lane.b32.xlu0 %v1640, 32
      %v1866 = vpop.permute.xlu0 %1865
      %1867 = vrot.lane.b32.xlu0 %v1641, 32
      %v1868 = vpop.permute.xlu0 %1867
      %1869 = vrot.lane.b32.xlu0 %v1642, 32
      %v1870 = vpop.permute.xlu0 %1869
      %1871 = vrot.lane.b32.xlu0 %v1644, 32
      %v1872 = vpop.permute.xlu0 %1871
      %1873 = vrot.lane.b32.xlu0 %v1645, 32
      %v1874 = vpop.permute.xlu0 %1873
      %1875 = vrot.lane.b32.xlu0 %v1646, 32
      %v1876 = vpop.permute.xlu0 %1875
      %1877 = vrot.lane.b32.xlu0 %v1647, 32
      %v1878 = vpop.permute.xlu0 %1877
      %1879 = vrot.lane.b32.xlu0 %v1649, 32
      %v1880 = vpop.permute.xlu0 %1879
      %1881 = vrot.lane.b32.xlu0 %v1650, 32
      %v1882 = vpop.permute.xlu0 %1881
      %1883 = vrot.lane.b32.xlu0 %v1651, 32
      %v1884 = vpop.permute.xlu0 %1883
      %1885 = vrot.lane.b32.xlu0 %v1652, 32
      %v1886 = vpop.permute.xlu0 %1885
      %1919 = vrot.lane.b32.xlu0 %v1610, 64
      %v1920 = vpop.permute.xlu0 %1919
      %1921 = vrot.lane.b32.xlu0 %v1611, 64
      %v1922 = vpop.permute.xlu0 %1921
      %1923 = vrot.lane.b32.xlu0 %v1612, 64
      %v1924 = vpop.permute.xlu0 %1923
      %1925 = vrot.lane.b32.xlu0 %v1613, 64
      %v1926 = vpop.permute.xlu0 %1925
      %1927 = vrot.lane.b32.xlu0 %v1615, 64
      %v1928 = vpop.permute.xlu0 %1927
      %1929 = vrot.lane.b32.xlu0 %v1616, 64
      %v1930 = vpop.permute.xlu0 %1929
      %1931 = vrot.lane.b32.xlu0 %v1617, 64
      %v1932 = vpop.permute.xlu0 %1931
      %1933 = vrot.lane.b32.xlu0 %v1618, 64
      %v1934 = vpop.permute.xlu0 %1933
      %1935 = vrot.lane.b32.xlu0 %v1620, 64
      %v1936 = vpop.permute.xlu0 %1935
      %1937 = vrot.lane.b32.xlu0 %v1621, 64
      %v1938 = vpop.permute.xlu0 %1937
      %1939 = vrot.lane.b32.xlu0 %v1622, 64
      %v1940 = vpop.permute.xlu0 %1939
      %1941 = vrot.lane.b32.xlu0 %v1623, 64
      %v1942 = vpop.permute.xlu0 %1941
      %1943 = vrot.lane.b32.xlu0 %v1625, 64
      %v1944 = vpop.permute.xlu0 %1943
      %1945 = vrot.lane.b32.xlu0 %v1626, 64
      %v1946 = vpop.permute.xlu0 %1945
      %1947 = vrot.lane.b32.xlu0 %v1627, 64
      %v1948 = vpop.permute.xlu0 %1947
      %1949 = vrot.lane.b32.xlu0 %v1628, 64
      %v1950 = vpop.permute.xlu0 %1949
      %1971 = vrot.lane.b32.xlu0 %v1635, 96
      %v1972 = vpop.permute.xlu0 %1971
      %1973 = vrot.lane.b32.xlu0 %v1636, 96
      %v1974 = vpop.permute.xlu0 %1973
      %1975 = vrot.lane.b32.xlu0 %v1637, 96
      %v1976 = vpop.permute.xlu0 %1975
      %1977 = vrot.lane.b32.xlu0 %v1638, 96
      %v1978 = vpop.permute.xlu0 %1977
      %1979 = vrot.lane.b32.xlu0 %v1640, 96
      %v1980 = vpop.permute.xlu0 %1979
      %1981 = vrot.lane.b32.xlu0 %v1641, 96
      %v1982 = vpop.permute.xlu0 %1981
      %1983 = vrot.lane.b32.xlu0 %v1642, 96
      %v1984 = vpop.permute.xlu0 %1983
      %1985 = vrot.lane.b32.xlu0 %v1643, 96
      %v1986 = vpop.permute.xlu0 %1985
      %1987 = vrot.lane.b32.xlu0 %v1645, 96
      %v1988 = vpop.permute.xlu0 %1987
      %1989 = vrot.lane.b32.xlu0 %v1646, 96
      %v1990 = vpop.permute.xlu0 %1989
      %1991 = vrot.lane.b32.xlu0 %v1647, 96
      %v1992 = vpop.permute.xlu0 %1991
      %1993 = vrot.lane.b32.xlu0 %v1648, 96
      %v1994 = vpop.permute.xlu0 %1993
      %1995 = vrot.lane.b32.xlu0 %v1650, 96
      %v1996 = vpop.permute.xlu0 %1995
      %1997 = vrot.lane.b32.xlu0 %v1651, 96
      %v1998 = vpop.permute.xlu0 %1997
      %1999 = vrot.lane.b32.xlu0 %v1652, 96
      %v2000 = vpop.permute.xlu0 %1999
      %2001 = vrot.lane.b32.xlu0 %v1653, 96
      %v2002 = vpop.permute.xlu0 %2001
      %2023 = vrot.lane.b32.xlu0 %v1604, 32
      %v2024 = vpop.permute.xlu0 %2023
      %2025 = vrot.lane.b32.xlu0 %v1605, 32
      %v2026 = vpop.permute.xlu0 %2025
      %2027 = vrot.lane.b32.xlu0 %v1606, 32
      %v2028 = vpop.permute.xlu0 %2027
      %2029 = vrot.lane.b32.xlu0 %v1607, 32
      %v2030 = vpop.permute.xlu0 %2029
      %2039 = vrot.lane.b32.xlu0 %v1580, 64
      %v2040 = vpop.permute.xlu0 %2039
      %2041 = vrot.lane.b32.xlu0 %v1581, 64
      %v2042 = vpop.permute.xlu0 %2041
      %2043 = vrot.lane.b32.xlu0 %v1582, 64
      %v2044 = vpop.permute.xlu0 %2043
      %2045 = vrot.lane.b32.xlu0 %v1583, 64
      %v2046 = vpop.permute.xlu0 %2045
      %2052 = vrot.lane.b32.xlu0 %v1605, 96
      %v2053 = vpop.permute.xlu0 %2052
      %2054 = vrot.lane.b32.xlu0 %v1606, 96
      %v2055 = vpop.permute.xlu0 %2054
      %2056 = vrot.lane.b32.xlu0 %v1607, 96
      %v2057 = vpop.permute.xlu0 %2056
      %2058 = vrot.lane.b32.xlu0 %v1608, 96
      %v2059 = vpop.permute.xlu0 %2058
      %2068 = vrot.lane.b32.xlu0 %v1654, 32
      %v2069 = vpop.permute.xlu0 %2068
      %2070 = vrot.lane.b32.xlu0 %v1655, 32
      %v2071 = vpop.permute.xlu0 %2070
      %2072 = vrot.lane.b32.xlu0 %v1656, 32
      %v2073 = vpop.permute.xlu0 %2072
      %2074 = vrot.lane.b32.xlu0 %v1657, 32
      %v2075 = vpop.permute.xlu0 %2074
      %2084 = vrot.lane.b32.xlu0 %v1630, 64
      %v2085 = vpop.permute.xlu0 %2084
      %2086 = vrot.lane.b32.xlu0 %v1631, 64
      %v2087 = vpop.permute.xlu0 %2086
      %2088 = vrot.lane.b32.xlu0 %v1632, 64
      %v2089 = vpop.permute.xlu0 %2088
      %2090 = vrot.lane.b32.xlu0 %v1633, 64
      %v2091 = vpop.permute.xlu0 %2090
      %2097 = vrot.lane.b32.xlu0 %v1655, 96
      %v2098 = vpop.permute.xlu0 %2097
      %2099 = vrot.lane.b32.xlu0 %v1656, 96
      %v2100 = vpop.permute.xlu0 %2099
      %2101 = vrot.lane.b32.xlu0 %v1657, 96
      %v2102 = vpop.permute.xlu0 %2101
      %2103 = vrot.lane.b32.xlu0 %v1658, 96
      %v2104 = vpop.permute.xlu0 %2103
      %vm2109 = vcmask 261120
      %v2110 = vsel %vm2109, %v1559, %v1676
      %v2111 = vsel %vm2109, %v1560, %v1678
      %v2112 = vsel %vm2109, %v1561, %v1680
      %v2113 = vsel %vm2109, %v1562, %v1682
      %v2114 = vsel %vm2109, %v1564, %v1684
      %v2115 = vsel %vm2109, %v1565, %v1686
      %v2116 = vsel %vm2109, %v1566, %v1688
      %v2117 = vsel %vm2109, %v1567, %v1690
      %v2118 = vsel %vm2109, %v1569, %v1692
      %v2119 = vsel %vm2109, %v1570, %v1694
      %v2120 = vsel %vm2109, %v1571, %v1696
      %v2121 = vsel %vm2109, %v1572, %v1698
      %v2122 = vsel %vm2109, %v1574, %v1700
      %v2123 = vsel %vm2109, %v1575, %v1702
      %v2124 = vsel %vm2109, %v1576, %v1704
      %v2125 = vsel %vm2109, %v1577, %v1706
      %vm2126 = vcmask 523264
      %v2127 = vsel %vm2126, %v2110, %v1740
      %v2128 = vsel %vm2126, %v2111, %v1742
      %v2129 = vsel %vm2126, %v2112, %v1744
      %v2130 = vsel %vm2126, %v2113, %v1746
      %v2131 = vsel %vm2126, %v2114, %v1748
      %v2132 = vsel %vm2126, %v2115, %v1750
      %v2133 = vsel %vm2126, %v2116, %v1752
      %v2134 = vsel %vm2126, %v2117, %v1754
      %v2135 = vsel %vm2126, %v2118, %v1756
      %v2136 = vsel %vm2126, %v2119, %v1758
      %v2137 = vsel %vm2126, %v2120, %v1760
      %v2138 = vsel %vm2126, %v2121, %v1762
      %v2139 = vsel %vm2126, %v2122, %v1764
      %v2140 = vsel %vm2126, %v2123, %v1766
      %v2141 = vsel %vm2126, %v2124, %v1768
      %v2142 = vsel %vm2126, %v2125, %v1770
      %vm2143 = vcmask 785408
      %v2144 = vsel %vm2143, %v2127, %v1792
      %v2145 = vsel %vm2143, %v2128, %v1794
      %v2146 = vsel %vm2143, %v2129, %v1796
      %v2147 = vsel %vm2143, %v2130, %v1798
      %v2148 = vsel %vm2143, %v2131, %v1800
      %v2149 = vsel %vm2143, %v2132, %v1802
      %v2150 = vsel %vm2143, %v2133, %v1804
      %v2151 = vsel %vm2143, %v2134, %v1806
      %v2152 = vsel %vm2143, %v2135, %v1808
      %v2153 = vsel %vm2143, %v2136, %v1810
      %v2154 = vsel %vm2143, %v2137, %v1812
      %v2155 = vsel %vm2143, %v2138, %v1814
      %v2156 = vsel %vm2143, %v2139, %v1816
      %v2157 = vsel %vm2143, %v2140, %v1818
      %v2158 = vsel %vm2143, %v2141, %v1820
      %v2159 = vsel %vm2143, %v2142, %v1822
      %v2160 = vsel %vm2109, %v1609, %v1856
      %v2161 = vsel %vm2109, %v1610, %v1858
      %v2162 = vsel %vm2109, %v1611, %v1860
      %v2163 = vsel %vm2109, %v1612, %v1862
      %v2164 = vsel %vm2109, %v1614, %v1864
      %v2165 = vsel %vm2109, %v1615, %v1866
      %v2166 = vsel %vm2109, %v1616, %v1868
      %v2167 = vsel %vm2109, %v1617, %v1870
      %v2168 = vsel %vm2109, %v1619, %v1872
      %v2169 = vsel %vm2109, %v1620, %v1874
      %v2170 = vsel %vm2109, %v1621, %v1876
      %v2171 = vsel %vm2109, %v1622, %v1878
      %v2172 = vsel %vm2109, %v1624, %v1880
      %v2173 = vsel %vm2109, %v1625, %v1882
      %v2174 = vsel %vm2109, %v1626, %v1884
      %v2175 = vsel %vm2109, %v1627, %v1886
      %v2176 = vsel %vm2126, %v2160, %v1920
      %v2177 = vsel %vm2126, %v2161, %v1922
      %v2178 = vsel %vm2126, %v2162, %v1924
      %v2179 = vsel %vm2126, %v2163, %v1926
      %v2180 = vsel %vm2126, %v2164, %v1928
      %v2181 = vsel %vm2126, %v2165, %v1930
      %v2182 = vsel %vm2126, %v2166, %v1932
      %v2183 = vsel %vm2126, %v2167, %v1934
      %v2184 = vsel %vm2126, %v2168, %v1936
      %v2185 = vsel %vm2126, %v2169, %v1938
      %v2186 = vsel %vm2126, %v2170, %v1940
      %v2187 = vsel %vm2126, %v2171, %v1942
      %v2188 = vsel %vm2126, %v2172, %v1944
      %v2189 = vsel %vm2126, %v2173, %v1946
      %v2190 = vsel %vm2126, %v2174, %v1948
      %v2191 = vsel %vm2126, %v2175, %v1950
      %v2192 = vsel %vm2143, %v2176, %v1972
      %v2193 = vsel %vm2143, %v2177, %v1974
      %v2194 = vsel %vm2143, %v2178, %v1976
      %v2195 = vsel %vm2143, %v2179, %v1978
      %v2196 = vsel %vm2143, %v2180, %v1980
      %v2197 = vsel %vm2143, %v2181, %v1982
      %v2198 = vsel %vm2143, %v2182, %v1984
      %v2199 = vsel %vm2143, %v2183, %v1986
      %v2200 = vsel %vm2143, %v2184, %v1988
      %v2201 = vsel %vm2143, %v2185, %v1990
      %v2202 = vsel %vm2143, %v2186, %v1992
      %v2203 = vsel %vm2143, %v2187, %v1994
      %v2204 = vsel %vm2143, %v2188, %v1996
      %v2205 = vsel %vm2143, %v2189, %v1998
      %v2206 = vsel %vm2143, %v2190, %v2000
      %v2207 = vsel %vm2143, %v2191, %v2002
      %v2208 = vsel %vm2109, %v1579, %v2024
      %v2209 = vsel %vm2109, %v1580, %v2026
      %v2210 = vsel %vm2109, %v1581, %v2028
      %v2211 = vsel %vm2109, %v1582, %v2030
      %v2212 = vsel %vm2126, %v2208, %v2040
      %v2213 = vsel %vm2126, %v2209, %v2042
      %v2214 = vsel %vm2126, %v2210, %v2044
      %v2215 = vsel %vm2126, %v2211, %v2046
      %v2216 = vsel %vm2143, %v2212, %v2053
      %v2217 = vsel %vm2143, %v2213, %v2055
      %v2218 = vsel %vm2143, %v2214, %v2057
      %v2219 = vsel %vm2143, %v2215, %v2059
      %v2220 = vsel %vm2109, %v1629, %v2069
      %v2221 = vsel %vm2109, %v1630, %v2071
      %v2222 = vsel %vm2109, %v1631, %v2073
      %v2223 = vsel %vm2109, %v1632, %v2075
      %v2224 = vsel %vm2126, %v2220, %v2085
      %v2225 = vsel %vm2126, %v2221, %v2087
      %v2226 = vsel %vm2126, %v2222, %v2089
      %v2227 = vsel %vm2126, %v2223, %v2091
      %v2228 = vsel %vm2143, %v2224, %v2098
      %v2229 = vsel %vm2143, %v2225, %v2100
      %v2230 = vsel %vm2143, %v2226, %v2102
      %v2231 = vsel %vm2143, %v2227, %v2104
      %v2232 = vpack.c.bf16 %v2145, %v2144
      %v2233 = vpack.c.bf16 %v2193, %v2192
      %v2234 = vpack.c.bf16 %v2149, %v2148
      %v2235 = vpack.c.bf16 %v2197, %v2196
      %v2236 = vpack.c.bf16 %v2147, %v2146
      %v2237 = vpack.c.bf16 %v2195, %v2194
      %v2238 = vpack.c.bf16 %v2151, %v2150
      %v2239 = vpack.c.bf16 %v2199, %v2198
      %v2240 = vpack.c.bf16 %v2153, %v2152
      %v2241 = vpack.c.bf16 %v2201, %v2200
      %v2242 = vpack.c.bf16 %v2155, %v2154
      %v2243 = vpack.c.bf16 %v2203, %v2202
      %v2244 = vpack.c.bf16 %v2157, %v2156
      %v2245 = vpack.c.bf16 %v2205, %v2204
      %v2246 = vpack.c.bf16 %v2159, %v2158
      %v2247 = vpack.c.bf16 %v2207, %v2206
      %v2248 = vpack.c.bf16 %v2217, %v2216
      %v2249 = vpack.c.bf16 %v2229, %v2228
      %v2250 = vpack.c.bf16 %v2219, %v2218
      %v2251 = vpack.c.bf16 %v2231, %v2230
      %v2252 = vld [vmem:[%s3] sm:$0xf]
      %v2253 = vld [vmem:[%s3 + $0x4] sm:$0xf]
      %v2254 = vld [vmem:[%s3 + $0x8] sm:$0xf]
      %v2255 = vld [vmem:[%s3 + $0xc] sm:$0xf]
      %v2256 = vld [vmem:[%s3 + $0x10] sm:$0xf]
      %v2257 = vld [vmem:[%s3 + $0x14] sm:$0xf]
      %v2258 = vld [vmem:[%s3 + $0x18] sm:$0xf]
      %v2259 = vld [vmem:[%s3 + $0x1c] sm:$0xf]
      %v2260 = vld [vmem:[%s3 + $0x20] sm:$0xf]
      %v2261 = vld [vmem:[%s3 + $0x24] sm:$0xf]
      %v2262 = vld [vmem:[%s3 + $0x28] sm:$0xf]
      %v2263 = vld [vmem:[%s3 + $0x2c] sm:$0xf]
      %v2264 = vld [vmem:[%s3 + $0x30] sm:$0xf]
      %v2265 = vld [vmem:[%s3 + $0x34] sm:$0xf]
      %v2266 = vld [vmem:[%s3 + $0x38] sm:$0xf]
      %v2267 = vld [vmem:[%s3 + $0x3c] sm:$0xf]
      %v2268 = vld [vmem:[%s3 + $0x40] sm:$0xf]
      %v2269 = vld [vmem:[%s3 + $0x44] sm:$0xf]
      %v2270 = vld [vmem:[%s3 + $0x48] sm:$0xf]
      %v2271 = vld [vmem:[%s3 + $0x4c] sm:$0xf]
      %v2272 = vld [vmem:[%s3 + $0x50] sm:$0xf]
      %v2273 = vld [vmem:[%s3 + $0x54] sm:$0xf]
      %v2274 = vld [vmem:[%s3 + $0x58] sm:$0xf]
      %v2275 = vld [vmem:[%s3 + $0x5c] sm:$0xf]
      %v2276 = vld [vmem:[%s3 + $0x60] sm:$0xf]
      %v2277 = vld [vmem:[%s3 + $0x64] sm:$0xf]
      %v2278 = vld [vmem:[%s3 + $0x68] sm:$0xf]
      %v2279 = vld [vmem:[%s3 + $0x6c] sm:$0xf]
      %v2280 = vld [vmem:[%s3 + $0x70] sm:$0xf]
      %v2281 = vld [vmem:[%s3 + $0x74] sm:$0xf]
      %v2282 = vld [vmem:[%s3 + $0x78] sm:$0xf]
      %v2283 = vld [vmem:[%s3 + $0x7c] sm:$0xf]
      %v2284 = vld [vmem:[%s3 + $0x80] sm:$0xf]
      %v2285 = vld [vmem:[%s3 + $0x84] sm:$0xf]
      %v2286 = vld [vmem:[%s3 + $0x88] sm:$0xf]
      %v2287 = vld [vmem:[%s3 + $0x8c] sm:$0xf]
      %v2288 = vld [vmem:[%s3 + $0x90] sm:$0xf]
      %v2289 = vld [vmem:[%s3 + $0x94] sm:$0xf]
      %v2290 = vld [vmem:[%s3 + $0x98] sm:$0xf]
      %v2291 = vld [vmem:[%s3 + $0x9c] sm:$0xf]
      %v2292 = vld [vmem:[%s3 + $0xa0] sm:$0xf]
      %v2293 = vld [vmem:[%s3 + $0xa4] sm:$0xf]
      %v2294 = vld [vmem:[%s3 + $0xa8] sm:$0xf]
      %v2295 = vld [vmem:[%s3 + $0xac] sm:$0xf]
      %v2296 = vld [vmem:[%s3 + $0xb0] sm:$0xf]
      %v2297 = vld [vmem:[%s3 + $0xb4] sm:$0xf]
      %v2298 = vld [vmem:[%s3 + $0xb8] sm:$0xf]
      %v2299 = vld [vmem:[%s3 + $0xbc] sm:$0xf]
      %v2300 = vld [vmem:[%s3 + $0xc0] sm:$0xf]
      %v2301 = vld [vmem:[%s3 + $0xc4] sm:$0xf]
      %v2302 = vld [vmem:[%s3 + $0xc8] sm:$0xf]
      %v2303 = vld [vmem:[%s3 + $0xcc] sm:$0xf]
      %v2304 = vld [vmem:[%s3 + $0xd0] sm:$0xf]
      %v2305 = vld [vmem:[%s3 + $0xd4] sm:$0xf]
      %v2306 = vld [vmem:[%s3 + $0xd8] sm:$0xf]
      %v2307 = vld [vmem:[%s3 + $0xdc] sm:$0xf]
      %v2308 = vld [vmem:[%s3 + $0xe0] sm:$0xf]
      %v2309 = vld [vmem:[%s3 + $0xe4] sm:$0xf]
      %v2310 = vld [vmem:[%s3 + $0xe8] sm:$0xf]
      %v2311 = vld [vmem:[%s3 + $0xec] sm:$0xf]
      %v2312 = vld [vmem:[%s3 + $0xf0] sm:$0xf]
      %v2313 = vld [vmem:[%s3 + $0xf4] sm:$0xf]
      %v2314 = vld [vmem:[%s3 + $0xf8] sm:$0xf]
      %v2315 = vld [vmem:[%s3 + $0xfc] sm:$0xf]
      %v2316 = vld [vmem:[%s4] sm:$0x1]
      %v2318 = vlaneseq
      %v2319 = vshrl.u32 %v2318, 7
      %v2320 = vsub.s32 0, %v2319
      %v2321 = vrot.slane %v2316, %v2320
      %v2387 = vunpack.c.l.b16 %v2252
      %v2388 = vunpack.c.l.b16 %v2253
      %v2389 = vunpack.c.l.b16 %v2254
      %v2390 = vunpack.c.l.b16 %v2255
      %v2391 = vunpack.c.l.b16 %v2256
      %v2392 = vunpack.c.l.b16 %v2257
      %v2393 = vunpack.c.l.b16 %v2258
      %v2394 = vunpack.c.l.b16 %v2259
      %v2395 = vunpack.c.l.b16 %v2260
      %v2396 = vunpack.c.l.b16 %v2261
      %v2397 = vunpack.c.l.b16 %v2262
      %v2398 = vunpack.c.l.b16 %v2263
      %v2399 = vunpack.c.l.b16 %v2264
      %v2400 = vunpack.c.l.b16 %v2265
      %v2401 = vunpack.c.l.b16 %v2266
      %v2402 = vunpack.c.l.b16 %v2267
      %v2403 = vunpack.c.l.b16 %v2268
      %v2404 = vunpack.c.l.b16 %v2269
      %v2405 = vunpack.c.l.b16 %v2270
      %v2406 = vunpack.c.l.b16 %v2271
      %v2407 = vunpack.c.l.b16 %v2272
      %v2408 = vunpack.c.l.b16 %v2273
      %v2409 = vunpack.c.l.b16 %v2274
      %v2410 = vunpack.c.l.b16 %v2275
      %v2411 = vunpack.c.l.b16 %v2276
      %v2412 = vunpack.c.l.b16 %v2277
      %v2413 = vunpack.c.l.b16 %v2278
      %v2414 = vunpack.c.l.b16 %v2279
      %v2415 = vunpack.c.l.b16 %v2280
      %v2416 = vunpack.c.l.b16 %v2281
      %v2417 = vunpack.c.l.b16 %v2282
      %v2418 = vunpack.c.l.b16 %v2283
      %v2419 = vunpack.c.l.b16 %v2284
      %v2420 = vunpack.c.l.b16 %v2285
      %v2421 = vunpack.c.l.b16 %v2286
      %v2422 = vunpack.c.l.b16 %v2287
      %v2423 = vunpack.c.l.b16 %v2288
      %v2424 = vunpack.c.l.b16 %v2289
      %v2425 = vunpack.c.l.b16 %v2290
      %v2426 = vunpack.c.l.b16 %v2291
      %v2427 = vunpack.c.l.b16 %v2292
      %v2428 = vunpack.c.l.b16 %v2293
      %v2429 = vunpack.c.l.b16 %v2294
      %v2430 = vunpack.c.l.b16 %v2295
      %v2431 = vunpack.c.l.b16 %v2296
      %v2432 = vunpack.c.l.b16 %v2297
      %v2433 = vunpack.c.l.b16 %v2298
      %v2434 = vunpack.c.l.b16 %v2299
      %v2435 = vunpack.c.l.b16 %v2300
      %v2436 = vunpack.c.l.b16 %v2301
      %v2437 = vunpack.c.l.b16 %v2302
      %v2438 = vunpack.c.l.b16 %v2303
      %v2439 = vunpack.c.l.b16 %v2304
      %v2440 = vunpack.c.l.b16 %v2305
      %v2441 = vunpack.c.l.b16 %v2306
      %v2442 = vunpack.c.l.b16 %v2307
      %v2443 = vunpack.c.l.b16 %v2308
      %v2444 = vunpack.c.l.b16 %v2309
      %v2445 = vunpack.c.l.b16 %v2310
      %v2446 = vunpack.c.l.b16 %v2311
      %v2447 = vunpack.c.l.b16 %v2312
      %v2448 = vunpack.c.l.b16 %v2313
      %v2449 = vunpack.c.l.b16 %v2314
      %v2450 = vunpack.c.l.b16 %v2315
      %v2451 = vpack.c.b16 %v2388, %v2387
      %v2452 = vpack.c.b16 %v2390, %v2389
      %v2453 = vpack.c.b16 %v2392, %v2391
      %v2454 = vpack.c.b16 %v2394, %v2393
      %v2455 = vpack.c.b16 %v2396, %v2395
      %v2456 = vpack.c.b16 %v2398, %v2397
      %v2457 = vpack.c.b16 %v2400, %v2399
      %v2458 = vpack.c.b16 %v2402, %v2401
      %v2459 = vpack.c.b16 %v2404, %v2403
      %v2460 = vpack.c.b16 %v2406, %v2405
      %v2461 = vpack.c.b16 %v2408, %v2407
      %v2462 = vpack.c.b16 %v2410, %v2409
      %v2463 = vpack.c.b16 %v2412, %v2411
      %v2464 = vpack.c.b16 %v2414, %v2413
      %v2465 = vpack.c.b16 %v2416, %v2415
      %v2466 = vpack.c.b16 %v2418, %v2417
      %v2467 = vpack.c.b16 %v2420, %v2419
      %v2468 = vpack.c.b16 %v2422, %v2421
      %v2469 = vpack.c.b16 %v2424, %v2423
      %v2470 = vpack.c.b16 %v2426, %v2425
      %v2471 = vpack.c.b16 %v2428, %v2427
      %v2472 = vpack.c.b16 %v2430, %v2429
      %v2473 = vpack.c.b16 %v2432, %v2431
      %v2474 = vpack.c.b16 %v2434, %v2433
      %v2475 = vpack.c.b16 %v2436, %v2435
      %v2476 = vpack.c.b16 %v2438, %v2437
      %v2477 = vpack.c.b16 %v2440, %v2439
      %v2478 = vpack.c.b16 %v2442, %v2441
      %v2479 = vpack.c.b16 %v2444, %v2443
      %v2480 = vpack.c.b16 %v2446, %v2445
      %v2481 = vpack.c.b16 %v2448, %v2447
      %v2482 = vpack.c.b16 %v2450, %v2449
      %2515 = vmatprep.subr.bf16.mxu0 0
      %2516 = vmatpush1.bf16.msra.mxu0 %v2451
      %2517 = vmatprep.subr.bf16.mxu0 0
      %2518 = vmatpush1.bf16.msra.mxu0 %v2452
      %2519 = vmatprep.subr.bf16.mxu0 0
      %2520 = vmatpush1.bf16.msra.mxu0 %v2453
      %2521 = vmatprep.subr.bf16.mxu0 0
      %2522 = vmatpush1.bf16.msra.mxu0 %v2454
      %2523 = vmatprep.subr.bf16.mxu0 0
      %2524 = vmatpush1.bf16.msra.mxu0 %v2455
      %2525 = vmatprep.subr.bf16.mxu0 0
      %2526 = vmatpush1.bf16.msra.mxu0 %v2456
      %2527 = vmatprep.subr.bf16.mxu0 0
      %2528 = vmatpush1.bf16.msra.mxu0 %v2457
      %2529 = vmatprep.subr.bf16.mxu0 0
      %2530 = vmatpush1.bf16.msra.mxu0 %v2458
      %2531 = vmatprep.subr.bf16.mxu0 0
      %2532 = vmatpush1.bf16.msra.mxu0 %v2459
      %2533 = vmatprep.subr.bf16.mxu0 0
      %2534 = vmatpush1.bf16.msra.mxu0 %v2460
      %2535 = vmatprep.subr.bf16.mxu0 0
      %2536 = vmatpush1.bf16.msra.mxu0 %v2461
      %2537 = vmatprep.subr.bf16.mxu0 0
      %2538 = vmatpush1.bf16.msra.mxu0 %v2462
      %2539 = vmatprep.subr.bf16.mxu0 0
      %2540 = vmatpush1.bf16.msra.mxu0 %v2463
      %2541 = vmatprep.subr.bf16.mxu0 0
      %2542 = vmatpush1.bf16.msra.mxu0 %v2464
      %2543 = vmatprep.subr.bf16.mxu0 0
      %2544 = vmatpush1.bf16.msra.mxu0 %v2465
      %2545 = vmatprep.subr.bf16.mxu0 0
      %2546 = vmatpush1.bf16.msra.mxu0 %v2466
      %2547 = vmatprep.mubr.bf16.mxu0 %v2233
      %2548 = vmatmul.mubr.bf16.gmra.mrb[0].mxu0 %v2232
      %v2549 = vpop.f32.mrb[0].mxu0
      %v2550 = vadd.f32 %v2321, %v2549
      %v2551 = vpop.f32.mrb[0].mxu0
      %v2552 = vpop.f32.mrb[0].mxu0
      %v2553 = vadd.f32 %v2321, %v2552
      %v2554 = vpop.f32.mrb[0].mxu0
      %2555 = vmatprep.mubr.bf16.mxu0 %v2237
      %2556 = vmatmul.mubr.bf16.gmra.mrb[0].mxu0 %v2236
      %v2557 = vpop.f32.mrb[0].mxu0
      %v2558 = vadd.f32 %v2321, %v2557
      %v2559 = vpop.f32.mrb[0].mxu0
      %v2560 = vpop.f32.mrb[0].mxu0
      %v2561 = vadd.f32 %v2321, %v2560
      %v2562 = vpop.f32.mrb[0].mxu0
      %2563 = vmatprep.mubr.bf16.mxu0 %v2235
      %2564 = vmatmul.mubr.bf16.gmra.mrb[0].mxu0 %v2234
      %v2565 = vpop.f32.mrb[0].mxu0
      %v2566 = vadd.f32 %v2321, %v2565
      %v2567 = vpop.f32.mrb[0].mxu0
      %v2568 = vpop.f32.mrb[0].mxu0
      %v2569 = vadd.f32 %v2321, %v2568
      %v2570 = vpop.f32.mrb[0].mxu0
      %2571 = vmatprep.mubr.bf16.mxu0 %v2239
      %2572 = vmatmul.mubr.bf16.gmra.mrb[0].mxu0 %v2238
      %v2573 = vpop.f32.mrb[0].mxu0
      %v2574 = vadd.f32 %v2321, %v2573
      %v2575 = vpop.f32.mrb[0].mxu0
      %v2576 = vpop.f32.mrb[0].mxu0
      %v2577 = vadd.f32 %v2321, %v2576
      %v2578 = vpop.f32.mrb[0].mxu0
      %2579 = vmatprep.mubr.bf16.mxu0 %v2241
      %2580 = vmatmul.mubr.bf16.gmra.mrb[0].mxu0 %v2240
      %v2581 = vpop.f32.mrb[0].mxu0
      %v2582 = vadd.f32 %v2321, %v2581
      %v2583 = vpop.f32.mrb[0].mxu0
      %v2584 = vpop.f32.mrb[0].mxu0
      %v2585 = vadd.f32 %v2321, %v2584
      %v2586 = vpop.f32.mrb[0].mxu0
      %2587 = vmatprep.mubr.bf16.mxu0 %v2243
      %2588 = vmatmul.mubr.bf16.gmra.mrb[0].mxu0 %v2242
      %v2589 = vpop.f32.mrb[0].mxu0
      %v2590 = vadd.f32 %v2321, %v2589
      %v2591 = vpop.f32.mrb[0].mxu0
      %v2592 = vpop.f32.mrb[0].mxu0
      %v2593 = vadd.f32 %v2321, %v2592
      %v2594 = vpop.f32.mrb[0].mxu0
      %2595 = vmatprep.mubr.bf16.mxu0 %v2245
      %2596 = vmatmul.mubr.bf16.gmra.mrb[0].mxu0 %v2244
      %v2597 = vpop.f32.mrb[0].mxu0
      %v2598 = vadd.f32 %v2321, %v2597
      %v2599 = vpop.f32.mrb[0].mxu0
      %v2600 = vpop.f32.mrb[0].mxu0
      %v2601 = vadd.f32 %v2321, %v2600
      %v2602 = vpop.f32.mrb[0].mxu0
      %2603 = vmatprep.mubr.bf16.mxu0 %v2247
      %2604 = vmatmul.mubr.bf16.gmra.mrb[0].mxu0 %v2246
      %v2605 = vpop.f32.mrb[0].mxu0
      %v2606 = vadd.f32 %v2321, %v2605
      %v2607 = vpop.f32.mrb[0].mxu0
      %v2608 = vpop.f32.mrb[0].mxu0
      %v2609 = vadd.f32 %v2321, %v2608
      %v2610 = vpop.f32.mrb[0].mxu0
      %2611 = vdwg.mxu0
      %2612 = vmatprep.subr.bf16.mxu0 0
      %2613 = vmatpush1.bf16.msra.mxu0 %v2467
      %2614 = vmatprep.subr.bf16.mxu0 0
      %2615 = vmatpush1.bf16.msra.mxu0 %v2468
      %2616 = vmatprep.subr.bf16.mxu0 0
      %2617 = vmatpush1.bf16.msra.mxu0 %v2469
      %2618 = vmatprep.subr.bf16.mxu0 0
      %2619 = vmatpush1.bf16.msra.mxu0 %v2470
      %2620 = vmatprep.subr.bf16.mxu0 0
      %2621 = vmatpush1.bf16.msra.mxu0 %v2471
      %2622 = vmatprep.subr.bf16.mxu0 0
      %2623 = vmatpush1.bf16.msra.mxu0 %v2472
      %2624 = vmatprep.subr.bf16.mxu0 0
      %2625 = vmatpush1.bf16.msra.mxu0 %v2473
      %2626 = vmatprep.subr.bf16.mxu0 0
      %2627 = vmatpush1.bf16.msra.mxu0 %v2474
      %2628 = vmatprep.subr.bf16.mxu0 0
      %2629 = vmatpush1.bf16.msra.mxu0 %v2475
      %2630 = vmatprep.subr.bf16.mxu0 0
      %2631 = vmatpush1.bf16.msra.mxu0 %v2476
      %2632 = vmatprep.subr.bf16.mxu0 0
      %2633 = vmatpush1.bf16.msra.mxu0 %v2477
      %2634 = vmatprep.subr.bf16.mxu0 0
      %2635 = vmatpush1.bf16.msra.mxu0 %v2478
      %2636 = vmatprep.subr.bf16.mxu0 0
      %2637 = vmatpush1.bf16.msra.mxu0 %v2479
      %2638 = vmatprep.subr.bf16.mxu0 0
      %2639 = vmatpush1.bf16.msra.mxu0 %v2480
      %2640 = vmatprep.subr.bf16.mxu0 0
      %2641 = vmatpush1.bf16.msra.mxu0 %v2481
      %2642 = vmatprep.subr.bf16.mxu0 0
      %2643 = vmatpush1.bf16.msra.mxu0 %v2482
      %2644 = vmatprep.mubr.bf16.mxu0 %v2235
      %2645 = vmatmul.mubr.bf16.gmra.mrb[0].mxu0 %v2234
      %v2646 = vpop.f32.mrb[0].mxu0
      %v2647 = vadd.f32 %v2550, %v2646
      %v2648 = vpop.f32.mrb[0].mxu0
      %v2649 = vpop.f32.mrb[0].mxu0
      %v2650 = vadd.f32 %v2553, %v2649
      %v2651 = vpop.f32.mrb[0].mxu0
      %2652 = vmatprep.mubr.bf16.mxu0 %v2239
      %2653 = vmatmul.mubr.bf16.gmra.mrb[0].mxu0 %v2238
      %v2654 = vpop.f32.mrb[0].mxu0
      %v2655 = vadd.f32 %v2558, %v2654
      %v2656 = vpop.f32.mrb[0].mxu0
      %v2657 = vpop.f32.mrb[0].mxu0
      %v2658 = vadd.f32 %v2561, %v2657
      %v2659 = vpop.f32.mrb[0].mxu0
      %2660 = vmatprep.mubr.bf16.mxu0 %v2241
      %2661 = vmatmul.mubr.bf16.gmra.mrb[0].mxu0 %v2240
      %v2662 = vpop.f32.mrb[0].mxu0
      %v2663 = vadd.f32 %v2566, %v2662
      %v2664 = vpop.f32.mrb[0].mxu0
      %v2665 = vpop.f32.mrb[0].mxu0
      %v2666 = vadd.f32 %v2569, %v2665
      %v2667 = vpop.f32.mrb[0].mxu0
      %2668 = vmatprep.mubr.bf16.mxu0 %v2243
      %2669 = vmatmul.mubr.bf16.gmra.mrb[0].mxu0 %v2242
      %v2670 = vpop.f32.mrb[0].mxu0
      %v2671 = vadd.f32 %v2574, %v2670
      %v2672 = vpop.f32.mrb[0].mxu0
      %v2673 = vpop.f32.mrb[0].mxu0
      %v2674 = vadd.f32 %v2577, %v2673
      %v2675 = vpop.f32.mrb[0].mxu0
      %2676 = vmatprep.mubr.bf16.mxu0 %v2245
      %2677 = vmatmul.mubr.bf16.gmra.mrb[0].mxu0 %v2244
      %v2678 = vpop.f32.mrb[0].mxu0
      %v2679 = vadd.f32 %v2582, %v2678
      %v2680 = vpop.f32.mrb[0].mxu0
      %v2681 = vpop.f32.mrb[0].mxu0
      %v2682 = vadd.f32 %v2585, %v2681
      %v2683 = vpop.f32.mrb[0].mxu0
      %2684 = vmatprep.mubr.bf16.mxu0 %v2247
      %2685 = vmatmul.mubr.bf16.gmra.mrb[0].mxu0 %v2246
      %v2686 = vpop.f32.mrb[0].mxu0
      %v2687 = vadd.f32 %v2590, %v2686
      %v2688 = vpop.f32.mrb[0].mxu0
      %v2689 = vpop.f32.mrb[0].mxu0
      %v2690 = vadd.f32 %v2593, %v2689
      %v2691 = vpop.f32.mrb[0].mxu0
      %2692 = vmatprep.mubr.bf16.mxu0 %v2249
      %2693 = vmatmul.mubr.bf16.gmra.mrb[0].mxu0 %v2248
      %v2694 = vpop.f32.mrb[0].mxu0
      %v2695 = vadd.f32 %v2598, %v2694
      %v2696 = vpop.f32.mrb[0].mxu0
      %v2697 = vpop.f32.mrb[0].mxu0
      %v2698 = vadd.f32 %v2601, %v2697
      %v2699 = vpop.f32.mrb[0].mxu0
      %2700 = vmatprep.mubr.bf16.mxu0 %v2251
      %2701 = vmatmul.mubr.bf16.gmra.mrb[0].mxu0 %v2250
      %v2702 = vpop.f32.mrb[0].mxu0
      %v2703 = vadd.f32 %v2606, %v2702
      %v2704 = vpop.f32.mrb[0].mxu0
      %v2705 = vpop.f32.mrb[0].mxu0
      %v2706 = vadd.f32 %v2609, %v2705
      %v2707 = vpop.f32.mrb[0].mxu0
      %2708 = vdwg.mxu0
      %v2709 = vmax.f32 %v2647, 0.0
      %v2710 = vmax.f32 %v2650, 0.0
      %v2711 = vmax.f32 %v2655, 0.0
      %v2712 = vmax.f32 %v2658, 0.0
      %v2713 = vmax.f32 %v2663, 0.0
      %v2714 = vmax.f32 %v2666, 0.0
      %v2715 = vmax.f32 %v2671, 0.0
      %v2716 = vmax.f32 %v2674, 0.0
      %v2717 = vmax.f32 %v2679, 0.0
      %v2718 = vmax.f32 %v2682, 0.0
      %v2719 = vmax.f32 %v2687, 0.0
      %v2720 = vmax.f32 %v2690, 0.0
      %v2721 = vmax.f32 %v2695, 0.0
      %v2722 = vmax.f32 %v2698, 0.0
      %v2723 = vmax.f32 %v2703, 0.0
      %v2724 = vmax.f32 %v2706, 0.0
      %2729 = vrot.lane.b32.xlu0 %v2710, 64
      %v2730 = vpop.permute.xlu0 %2729
      %2731 = vrot.lane.b32.xlu0 %v2711, 64
      %v2732 = vpop.permute.xlu0 %2731
      %2733 = vrot.lane.b32.xlu0 %v2714, 64
      %v2734 = vpop.permute.xlu0 %2733
      %2735 = vrot.lane.b32.xlu0 %v2715, 64
      %v2736 = vpop.permute.xlu0 %2735
      %2744 = vrot.lane.b32.xlu0 %v2713, 64
      %v2745 = vpop.permute.xlu0 %2744
      %2746 = vrot.lane.b32.xlu0 %v2717, 64
      %v2747 = vpop.permute.xlu0 %2746
      %2748 = vrot.lane.b32.xlu0 %v2718, 64
      %v2749 = vpop.permute.xlu0 %2748
      %2756 = vrot.lane.b32.xlu0 %v2716, 64
      %v2757 = vpop.permute.xlu0 %2756
      %2758 = vrot.lane.b32.xlu0 %v2719, 64
      %v2759 = vpop.permute.xlu0 %2758
      %2760 = vrot.lane.b32.xlu0 %v2720, 64
      %v2761 = vpop.permute.xlu0 %2760
      %2767 = vrot.lane.b32.xlu0 %v2722, 64
      %v2768 = vpop.permute.xlu0 %2767
      %2769 = vrot.lane.b32.xlu0 %v2723, 64
      %v2770 = vpop.permute.xlu0 %2769
      %v2773 = vsel %vm2126, %v2709, %v2730
      %v2774 = vsel %vm2126, %v2710, %v2732
      %v2775 = vsel %vm2126, %v2713, %v2734
      %v2776 = vsel %vm2126, %v2714, %v2736
      %v2777 = vsel %vm2126, %v2711, %v2745
      %v2778 = vsel %vm2126, %v2712, %v2734
      %v2779 = vsel %vm2126, %v2715, %v2747
      %v2780 = vsel %vm2126, %v2716, %v2749
      %v2781 = vsel %vm2126, %v2715, %v2757
      %v2782 = vsel %vm2126, %v2718, %v2759
      %v2783 = vsel %vm2126, %v2719, %v2761
      %v2784 = vsel %vm2126, %v2717, %v2749
      %v2785 = vsel %vm2126, %v2721, %v2768
      %v2786 = vsel %vm2126, %v2722, %v2770
      %v2787 = vpack.c.bf16 %v2774, %v2773
      %v2788 = vpack.c.bf16 %v2778, %v2777
      %v2789 = vpack.c.bf16 %v2781, %v2776
      %v2790 = vpack.c.bf16 %v2782, %v2784
      %v2791 = vpack.c.bf16 %v2720, %v2719
      %v2792 = vpack.c.bf16 %v2776, %v2775
      %v2793 = vpack.c.bf16 %v2780, %v2779
      %v2794 = vpack.c.bf16 %v2783, %v2782
      %v2795 = vpack.c.bf16 %v2786, %v2785
      %v2796 = vpack.c.bf16 %v2724, %v2723
      %v2797 = vld [vmem:[%s5] sm:$0xf]
      %v2798 = vld [vmem:[%s5 + $0x4] sm:$0xf]
      %v2799 = vld [vmem:[%s5 + $0x8] sm:$0xf]
      %v2800 = vld [vmem:[%s5 + $0xc] sm:$0xf]
      %v2801 = vld [vmem:[%s5 + $0x10] sm:$0xf]
      %v2802 = vld [vmem:[%s5 + $0x14] sm:$0xf]
      %v2803 = vld [vmem:[%s5 + $0x18] sm:$0xf]
      %v2804 = vld [vmem:[%s5 + $0x1c] sm:$0xf]
      %v2805 = vld [vmem:[%s5 + $0x20] sm:$0xf]
      %v2806 = vld [vmem:[%s5 + $0x24] sm:$0xf]
      %v2807 = vld [vmem:[%s5 + $0x28] sm:$0xf]
      %v2808 = vld [vmem:[%s5 + $0x2c] sm:$0xf]
      %v2809 = vld [vmem:[%s5 + $0x30] sm:$0xf]
      %v2810 = vld [vmem:[%s5 + $0x34] sm:$0xf]
      %v2811 = vld [vmem:[%s5 + $0x38] sm:$0xf]
      %v2812 = vld [vmem:[%s5 + $0x3c] sm:$0xf]
      %v2813 = vld [vmem:[%s5 + $0x40] sm:$0xf]
      %v2814 = vld [vmem:[%s5 + $0x44] sm:$0xf]
      %v2815 = vld [vmem:[%s5 + $0x48] sm:$0xf]
      %v2816 = vld [vmem:[%s5 + $0x4c] sm:$0xf]
      %v2817 = vld [vmem:[%s5 + $0x50] sm:$0xf]
      %v2818 = vld [vmem:[%s5 + $0x54] sm:$0xf]
      %v2819 = vld [vmem:[%s5 + $0x58] sm:$0xf]
      %v2820 = vld [vmem:[%s5 + $0x5c] sm:$0xf]
      %v2821 = vld [vmem:[%s5 + $0x60] sm:$0xf]
      %v2822 = vld [vmem:[%s5 + $0x64] sm:$0xf]
      %v2823 = vld [vmem:[%s5 + $0x68] sm:$0xf]
      %v2824 = vld [vmem:[%s5 + $0x6c] sm:$0xf]
      %v2825 = vld [vmem:[%s5 + $0x70] sm:$0xf]
      %v2826 = vld [vmem:[%s5 + $0x74] sm:$0xf]
      %v2827 = vld [vmem:[%s5 + $0x78] sm:$0xf]
      %v2828 = vld [vmem:[%s5 + $0x7c] sm:$0xf]
      %v2829 = vld [vmem:[%s5 + $0x80] sm:$0xf]
      %v2830 = vld [vmem:[%s5 + $0x84] sm:$0xf]
      %v2831 = vld [vmem:[%s5 + $0x88] sm:$0xf]
      %v2832 = vld [vmem:[%s5 + $0x8c] sm:$0xf]
      %v2833 = vld [vmem:[%s5 + $0x90] sm:$0xf]
      %v2834 = vld [vmem:[%s5 + $0x94] sm:$0xf]
      %v2835 = vld [vmem:[%s5 + $0x98] sm:$0xf]
      %v2836 = vld [vmem:[%s5 + $0x9c] sm:$0xf]
      %v2837 = vld [vmem:[%s5 + $0xa0] sm:$0xf]
      %v2838 = vld [vmem:[%s5 + $0xa4] sm:$0xf]
      %v2839 = vld [vmem:[%s5 + $0xa8] sm:$0xf]
      %v2840 = vld [vmem:[%s5 + $0xac] sm:$0xf]
      %v2841 = vld [vmem:[%s5 + $0xb0] sm:$0xf]
      %v2842 = vld [vmem:[%s5 + $0xb4] sm:$0xf]
      %v2843 = vld [vmem:[%s5 + $0xb8] sm:$0xf]
      %v2844 = vld [vmem:[%s5 + $0xbc] sm:$0xf]
      %v2845 = vld [vmem:[%s5 + $0xc0] sm:$0xf]
      %v2846 = vld [vmem:[%s5 + $0xc4] sm:$0xf]
      %v2847 = vld [vmem:[%s5 + $0xc8] sm:$0xf]
      %v2848 = vld [vmem:[%s5 + $0xcc] sm:$0xf]
      %v2849 = vld [vmem:[%s5 + $0xd0] sm:$0xf]
      %v2850 = vld [vmem:[%s5 + $0xd4] sm:$0xf]
      %v2851 = vld [vmem:[%s5 + $0xd8] sm:$0xf]
      %v2852 = vld [vmem:[%s5 + $0xdc] sm:$0xf]
      %v2853 = vld [vmem:[%s5 + $0xe0] sm:$0xf]
      %v2854 = vld [vmem:[%s5 + $0xe4] sm:$0xf]
      %v2855 = vld [vmem:[%s5 + $0xe8] sm:$0xf]
      %v2856 = vld [vmem:[%s5 + $0xec] sm:$0xf]
      %v2857 = vld [vmem:[%s5 + $0xf0] sm:$0xf]
      %v2858 = vld [vmem:[%s5 + $0xf4] sm:$0xf]
      %v2859 = vld [vmem:[%s5 + $0xf8] sm:$0xf]
      %v2860 = vld [vmem:[%s5 + $0xfc] sm:$0xf]
      %v2861 = vld [vmem:[%s5 + $0x100] sm:$0xf]
      %v2862 = vld [vmem:[%s5 + $0x104] sm:$0xf]
      %v2863 = vld [vmem:[%s5 + $0x108] sm:$0xf]
      %v2864 = vld [vmem:[%s5 + $0x10c] sm:$0xf]
      %v2865 = vld [vmem:[%s5 + $0x110] sm:$0xf]
      %v2866 = vld [vmem:[%s5 + $0x114] sm:$0xf]
      %v2867 = vld [vmem:[%s5 + $0x118] sm:$0xf]
      %v2868 = vld [vmem:[%s5 + $0x11c] sm:$0xf]
      %v2869 = vld [vmem:[%s6] sm:$0x1]
      %v2871 = vlaneseq
      %v2872 = vshrl.u32 %v2871, 7
      %v2873 = vsub.s32 0, %v2872
      %v2874 = vrot.slane %v2869, %v2873
      %v2948 = vunpack.c.l.b16 %v2797
      %v2949 = vunpack.c.l.b16 %v2798
      %v2950 = vunpack.c.l.b16 %v2799
      %v2951 = vunpack.c.l.b16 %v2800
      %v2952 = vunpack.c.l.b16 %v2801
      %v2953 = vunpack.c.l.b16 %v2802
      %v2954 = vunpack.c.l.b16 %v2803
      %v2955 = vunpack.c.l.b16 %v2804
      %v2956 = vunpack.c.l.b16 %v2805
      %v2957 = vunpack.c.l.b16 %v2806
      %v2958 = vunpack.c.l.b16 %v2807
      %v2959 = vunpack.c.l.b16 %v2808
      %v2960 = vunpack.c.l.b16 %v2809
      %v2961 = vunpack.c.l.b16 %v2810
      %v2962 = vunpack.c.l.b16 %v2811
      %v2963 = vunpack.c.l.b16 %v2812
      %v2964 = vunpack.c.l.b16 %v2813
      %v2965 = vunpack.c.l.b16 %v2814
      %v2966 = vunpack.c.l.b16 %v2815
      %v2967 = vunpack.c.l.b16 %v2816
      %v2968 = vunpack.c.l.b16 %v2817
      %v2969 = vunpack.c.l.b16 %v2818
      %v2970 = vunpack.c.l.b16 %v2819
      %v2971 = vunpack.c.l.b16 %v2820
      %v2972 = vunpack.c.l.b16 %v2821
      %v2973 = vunpack.c.l.b16 %v2822
      %v2974 = vunpack.c.l.b16 %v2823
      %v2975 = vunpack.c.l.b16 %v2824
      %v2976 = vunpack.c.l.b16 %v2825
      %v2977 = vunpack.c.l.b16 %v2826
      %v2978 = vunpack.c.l.b16 %v2827
      %v2979 = vunpack.c.l.b16 %v2828
      %v2980 = vunpack.c.l.b16 %v2829
      %v2981 = vunpack.c.l.b16 %v2830
      %v2982 = vunpack.c.l.b16 %v2831
      %v2983 = vunpack.c.l.b16 %v2832
      %v2984 = vunpack.c.l.b16 %v2833
      %v2985 = vunpack.c.l.b16 %v2834
      %v2986 = vunpack.c.l.b16 %v2835
      %v2987 = vunpack.c.l.b16 %v2836
      %v2988 = vunpack.c.l.b16 %v2837
      %v2989 = vunpack.c.l.b16 %v2838
      %v2990 = vunpack.c.l.b16 %v2839
      %v2991 = vunpack.c.l.b16 %v2840
      %v2992 = vunpack.c.l.b16 %v2841
      %v2993 = vunpack.c.l.b16 %v2842
      %v2994 = vunpack.c.l.b16 %v2843
      %v2995 = vunpack.c.l.b16 %v2844
      %v2996 = vunpack.c.l.b16 %v2845
      %v2997 = vunpack.c.l.b16 %v2846
      %v2998 = vunpack.c.l.b16 %v2847
      %v2999 = vunpack.c.l.b16 %v2848
      %v3000 = vunpack.c.l.b16 %v2849
      %v3001 = vunpack.c.l.b16 %v2850
      %v3002 = vunpack.c.l.b16 %v2851
      %v3003 = vunpack.c.l.b16 %v2852
      %v3004 = vunpack.c.l.b16 %v2853
      %v3005 = vunpack.c.l.b16 %v2854
      %v3006 = vunpack.c.l.b16 %v2855
      %v3007 = vunpack.c.l.b16 %v2856
      %v3008 = vunpack.c.l.b16 %v2857
      %v3009 = vunpack.c.l.b16 %v2858
      %v3010 = vunpack.c.l.b16 %v2859
      %v3011 = vunpack.c.l.b16 %v2860
      %v3012 = vunpack.c.l.b16 %v2861
      %v3013 = vunpack.c.l.b16 %v2862
      %v3014 = vunpack.c.l.b16 %v2863
      %v3015 = vunpack.c.l.b16 %v2864
      %v3016 = vunpack.c.l.b16 %v2865
      %v3017 = vunpack.c.l.b16 %v2866
      %v3018 = vunpack.c.l.b16 %v2867
      %v3019 = vunpack.c.l.b16 %v2868
      %v3020 = vpack.c.b16 %v2949, %v2948
      %v3021 = vpack.c.b16 %v2951, %v2950
      %v3022 = vpack.c.b16 %v2953, %v2952
      %v3023 = vpack.c.b16 %v2955, %v2954
      %v3024 = vpack.c.b16 %v2957, %v2956
      %v3025 = vpack.c.b16 %v2959, %v2958
      %v3026 = vpack.c.b16 %v2961, %v2960
      %v3027 = vpack.c.b16 %v2963, %v2962
      %v3028 = vpack.c.b16 %v2965, %v2964
      %v3029 = vpack.c.b16 %v2967, %v2966
      %v3030 = vpack.c.b16 %v2969, %v2968
      %v3031 = vpack.c.b16 %v2971, %v2970
      %v3032 = vpack.c.b16 %v2973, %v2972
      %v3033 = vpack.c.b16 %v2975, %v2974
      %v3034 = vpack.c.b16 %v2977, %v2976
      %v3035 = vpack.c.b16 %v2979, %v2978
      %v3036 = vpack.c.b16 %v2981, %v2980
      %v3037 = vpack.c.b16 %v2983, %v2982
      %v3038 = vpack.c.b16 %v2985, %v2984
      %v3039 = vpack.c.b16 %v2987, %v2986
      %v3040 = vpack.c.b16 %v2989, %v2988
      %v3041 = vpack.c.b16 %v2991, %v2990
      %v3042 = vpack.c.b16 %v2993, %v2992
      %v3043 = vpack.c.b16 %v2995, %v2994
      %v3044 = vpack.c.b16 %v2997, %v2996
      %v3045 = vpack.c.b16 %v2999, %v2998
      %v3046 = vpack.c.b16 %v3001, %v3000
      %v3047 = vpack.c.b16 %v3003, %v3002
      %v3048 = vpack.c.b16 %v3005, %v3004
      %v3049 = vpack.c.b16 %v3007, %v3006
      %v3050 = vpack.c.b16 %v3009, %v3008
      %v3051 = vpack.c.b16 %v3011, %v3010
      %v3052 = vpack.c.b16 %v3013, %v3012
      %v3053 = vpack.c.b16 %v3015, %v3014
      %v3054 = vpack.c.b16 %v3017, %v3016
      %v3055 = vpack.c.b16 %v3019, %v3018
      %v3093 = vsel %vm2126, %v2791, 0
      %v3096 = vsel %vm2126, %v2796, 0
      %3098 = vmatprep.subr.bf16.mxu0 0
      %3099 = vmatpush1.bf16.msra.mxu0 %v3020
      %3100 = vmatprep.subr.bf16.mxu0 0
      %3101 = vmatpush1.bf16.msra.mxu0 %v3021
      %3102 = vmatprep.subr.bf16.mxu0 0
      %3103 = vmatpush1.bf16.msra.mxu0 %v3022
      %3104 = vmatprep.subr.bf16.mxu0 0
      %3105 = vmatpush1.bf16.msra.mxu0 %v3023
      %3106 = vmatprep.subr.bf16.mxu0 0
      %3107 = vmatpush1.bf16.msra.mxu0 %v3024
      %3108 = vmatprep.subr.bf16.mxu0 0
      %3109 = vmatpush1.bf16.msra.mxu0 %v3025
      %3110 = vmatprep.subr.bf16.mxu0 0
      %3111 = vmatpush1.bf16.msra.mxu0 %v3026
      %3112 = vmatprep.subr.bf16.mxu0 0
      %3113 = vmatpush1.bf16.msra.mxu0 %v3027
      %3114 = vmatprep.subr.bf16.mxu0 0
      %3115 = vmatpush1.bf16.msra.mxu0 %v3028
      %3116 = vmatprep.subr.bf16.mxu0 0
      %3117 = vmatpush1.bf16.msra.mxu0 %v3029
      %3118 = vmatprep.subr.bf16.mxu0 0
      %3119 = vmatpush1.bf16.msra.mxu0 %v3030
      %3120 = vmatprep.subr.bf16.mxu0 0
      %3121 = vmatpush1.bf16.msra.mxu0 %v3031
      %3122 = vmatprep.subr.bf16.mxu0 0
      %3123 = vmatpush1.bf16.msra.mxu0 %v3032
      %3124 = vmatprep.subr.bf16.mxu0 0
      %3125 = vmatpush1.bf16.msra.mxu0 %v3033
      %3126 = vmatprep.subr.bf16.mxu0 0
      %3127 = vmatpush1.bf16.msra.mxu0 %v3034
      %3128 = vmatprep.subr.bf16.mxu0 0
      %3129 = vmatpush1.bf16.msra.mxu0 %v3035
      %3130 = vmatprep.mubr.bf16.mxu0 %v2788
      %3131 = vmatmul.mubr.bf16.gmra.mrb[0].mxu0 %v2787
      %v3132 = vpop.f32.mrb[0].mxu0
      %v3133 = vadd.f32 %v2874, %v3132
      %v3134 = vpop.f32.mrb[0].mxu0
      %v3135 = vpop.f32.mrb[0].mxu0
      %v3136 = vadd.f32 %v2874, %v3135
      %v3137 = vpop.f32.mrb[0].mxu0
      %3138 = vmatprep.mubr.bf16.mxu0 %v2793
      %3139 = vmatmul.mubr.bf16.gmra.mrb[0].mxu0 %v2792
      %v3140 = vpop.f32.mrb[0].mxu0
      %v3141 = vadd.f32 %v2874, %v3140
      %v3142 = vpop.f32.mrb[0].mxu0
      %v3143 = vpop.f32.mrb[0].mxu0
      %v3144 = vadd.f32 %v2874, %v3143
      %v3145 = vpop.f32.mrb[0].mxu0
      %3146 = vdwg.mxu0
      %3147 = vmatprep.subr.bf16.mxu0 0
      %3148 = vmatpush1.bf16.msra.mxu0 %v3036
      %3149 = vmatprep.subr.bf16.mxu0 0
      %3150 = vmatpush1.bf16.msra.mxu0 %v3037
      %3151 = vmatprep.subr.bf16.mxu0 0
      %3152 = vmatpush1.bf16.msra.mxu0 %v3038
      %3153 = vmatprep.subr.bf16.mxu0 0
      %3154 = vmatpush1.bf16.msra.mxu0 %v3039
      %3155 = vmatprep.subr.bf16.mxu0 0
      %3156 = vmatpush1.bf16.msra.mxu0 %v3040
      %3157 = vmatprep.subr.bf16.mxu0 0
      %3158 = vmatpush1.bf16.msra.mxu0 %v3041
      %3159 = vmatprep.subr.bf16.mxu0 0
      %3160 = vmatpush1.bf16.msra.mxu0 %v3042
      %3161 = vmatprep.subr.bf16.mxu0 0
      %3162 = vmatpush1.bf16.msra.mxu0 %v3043
      %3163 = vmatprep.subr.bf16.mxu0 0
      %3164 = vmatpush1.bf16.msra.mxu0 %v3044
      %3165 = vmatprep.subr.bf16.mxu0 0
      %3166 = vmatpush1.bf16.msra.mxu0 %v3045
      %3167 = vmatprep.subr.bf16.mxu0 0
      %3168 = vmatpush1.bf16.msra.mxu0 %v3046
      %3169 = vmatprep.subr.bf16.mxu0 0
      %3170 = vmatpush1.bf16.msra.mxu0 %v3047
      %3171 = vmatprep.subr.bf16.mxu0 0
      %3172 = vmatpush1.bf16.msra.mxu0 %v3048
      %3173 = vmatprep.subr.bf16.mxu0 0
      %3174 = vmatpush1.bf16.msra.mxu0 %v3049
      %3175 = vmatprep.subr.bf16.mxu0 0
      %3176 = vmatpush1.bf16.msra.mxu0 %v3050
      %3177 = vmatprep.subr.bf16.mxu0 0
      %3178 = vmatpush1.bf16.msra.mxu0 %v3051
      %3179 = vmatprep.mubr.bf16.mxu0 %v2790
      %3180 = vmatmul.mubr.bf16.gmra.mrb[0].mxu0 %v2789
      %v3181 = vpop.f32.mrb[0].mxu0
      %v3182 = vadd.f32 %v3133, %v3181
      %v3183 = vpop.f32.mrb[0].mxu0
      %v3184 = vpop.f32.mrb[0].mxu0
      %v3185 = vadd.f32 %v3136, %v3184
      %v3186 = vpop.f32.mrb[0].mxu0
      %3187 = vmatprep.mubr.bf16.mxu0 %v2795
      %3188 = vmatmul.mubr.bf16.gmra.mrb[0].mxu0 %v2794
      %v3189 = vpop.f32.mrb[0].mxu0
      %v3190 = vadd.f32 %v3141, %v3189
      %v3191 = vpop.f32.mrb[0].mxu0
      %v3192 = vpop.f32.mrb[0].mxu0
      %v3193 = vadd.f32 %v3144, %v3192
      %v3194 = vpop.f32.mrb[0].mxu0
      %3195 = vdwg.mxu0
      %3196 = vmatprep.subr.bf16.mxu0 0
      %3197 = vmatpush1.bf16.msra.mxu0 %v3052
      %3198 = vmatprep.subr.bf16.mxu0 0
      %3199 = vmatpush1.bf16.msra.mxu0 %v3053
      %3200 = vmatprep.subr.bf16.mxu0 0
      %3201 = vmatpush1.bf16.msra.mxu0 %v3054
      %3202 = vmatprep.subr.bf16.mxu0 0
      %3203 = vmatpush1.bf16.msra.mxu0 %v3055
      %3204 = vmatprep.subr.bf16.mxu0 0
      %3205 = vmatpush1.bf16.msra.mxu0 0
      %3206 = vmatprep.subr.bf16.mxu0 0
      %3207 = vmatpush1.bf16.msra.mxu0 0
      %3208 = vmatprep.subr.bf16.mxu0 0
      %3209 = vmatpush1.bf16.msra.mxu0 0
      %3210 = vmatprep.subr.bf16.mxu0 0
      %3211 = vmatpush1.bf16.msra.mxu0 0
      %3212 = vmatprep.subr.bf16.mxu0 0
      %3213 = vmatpush1.bf16.msra.mxu0 0
      %3214 = vmatprep.subr.bf16.mxu0 0
      %3215 = vmatpush1.bf16.msra.mxu0 0
      %3216 = vmatprep.subr.bf16.mxu0 0
      %3217 = vmatpush1.bf16.msra.mxu0 0
      %3218 = vmatprep.subr.bf16.mxu0 0
      %3219 = vmatpush1.bf16.msra.mxu0 0
      %3220 = vmatprep.subr.bf16.mxu0 0
      %3221 = vmatpush1.bf16.msra.mxu0 0
      %3222 = vmatprep.subr.bf16.mxu0 0
      %3223 = vmatpush1.bf16.msra.mxu0 0
      %3224 = vmatprep.subr.bf16.mxu0 0
      %3225 = vmatpush1.bf16.msra.mxu0 0
      %3226 = vmatprep.subr.bf16.mxu0 0
      %3227 = vmatpush1.bf16.msra.mxu0 0
      %3228 = vmatprep.mubr.bf16.mxu0 0
      %3229 = vmatmul.mubr.bf16.gmra.mrb[0].mxu0 %v3093
      %v3230 = vpop.f32.mrb[0].mxu0
      %v3231 = vadd.f32 %v3182, %v3230
      %v3232 = vpop.f32.mrb[0].mxu0
      %v3233 = vpop.f32.mrb[0].mxu0
      %v3234 = vadd.f32 %v3185, %v3233
      %v3235 = vpop.f32.mrb[0].mxu0
      %3236 = vmatprep.mubr.bf16.mxu0 0
      %3237 = vmatmul.mubr.bf16.gmra.mrb[0].mxu0 %v3096
      %v3238 = vpop.f32.mrb[0].mxu0
      %v3239 = vadd.f32 %v3190, %v3238
      %v3240 = vpop.f32.mrb[0].mxu0
      %v3241 = vpop.f32.mrb[0].mxu0
      %v3242 = vadd.f32 %v3193, %v3241
      %v3243 = vpop.f32.mrb[0].mxu0
      %3244 = vdwg.mxu0
      %v3245 = vmax.f32 %v3231, 0.0
      %v3246 = vmax.f32 %v3234, 0.0
      %v3247 = vmax.f32 %v3239, 0.0
      %v3248 = vmax.f32 %v3242, 0.0
      %3250 = vrot.lane.b32.xlu0 %v3246, 64
      %v3251 = vpop.permute.xlu0 %3250
      %3254 = vrot.lane.b32.xlu0 %v3248, 64
      %v3255 = vpop.permute.xlu0 %3254
      %v3257 = vsel %vm2126, %v3245, %v3251
      %v3258 = vsel %vm2126, %v3247, %v3255
      %v3259 = vpack.c.bf16 %v3257, %v3257
      %v3260 = vpack.c.bf16 %v3258, %v3258
      %v3261 = vld [vmem:[%s7] sm:$0xff]
      %v3262 = vld [vmem:[%s7 + $0x8] sm:$0xff]
      %v3263 = vld [vmem:[%s7 + $0x10] sm:$0xff]
      %v3264 = vld [vmem:[%s7 + $0x18] sm:$0xff]
      %v3265 = vld [vmem:[%s7 + $0x20] sm:$0xff]
      %v3266 = vld [vmem:[%s7 + $0x28] sm:$0xff]
      %v3267 = vld [vmem:[%s7 + $0x30] sm:$0xff]
      %v3268 = vld [vmem:[%s7 + $0x38] sm:$0xff]
      %v3269 = vld [vmem:[%s7 + $0x40] sm:$0xff]
      %v3270 = vld [vmem:[%s7 + $0x48] sm:$0xff]
      %v3271 = vld [vmem:[%s7 + $0x50] sm:$0xff]
      %v3272 = vld [vmem:[%s7 + $0x58] sm:$0xff]
      %v3273 = vld [vmem:[%s7 + $0x60] sm:$0xff]
      %v3274 = vld [vmem:[%s7 + $0x68] sm:$0xff]
      %v3275 = vld [vmem:[%s7 + $0x70] sm:$0xff]
      %v3276 = vld [vmem:[%s7 + $0x78] sm:$0xff]
      %v3277 = vld [vmem:[%s7 + $0x80] sm:$0xff]
      %v3278 = vld [vmem:[%s7 + $0x88] sm:$0xff]
      %v3279 = vld [vmem:[%s7 + $0x90] sm:$0xff]
      %v3280 = vld [vmem:[%s7 + $0x98] sm:$0xff]
      %v3281 = vld [vmem:[%s7 + $0xa0] sm:$0xff]
      %v3282 = vld [vmem:[%s7 + $0xa8] sm:$0xff]
      %v3283 = vld [vmem:[%s7 + $0xb0] sm:$0xff]
      %v3284 = vld [vmem:[%s7 + $0xb8] sm:$0xff]
      %v3285 = vld [vmem:[%s7 + $0xc0] sm:$0xff]
      %v3286 = vld [vmem:[%s7 + $0xc8] sm:$0xff]
      %v3287 = vld [vmem:[%s7 + $0xd0] sm:$0xff]
      %v3288 = vld [vmem:[%s7 + $0xd8] sm:$0xff]
      %v3289 = vld [vmem:[%s7 + $0xe0] sm:$0xff]
      %v3290 = vld [vmem:[%s7 + $0xe8] sm:$0xff]
      %v3291 = vld [vmem:[%s7 + $0xf0] sm:$0xff]
      %v3292 = vld [vmem:[%s7 + $0xf8] sm:$0xff]
      %v3293 = vld [vmem:[%s7 + $0x100] sm:$0xff]
      %v3294 = vld [vmem:[%s7 + $0x108] sm:$0xff]
      %v3295 = vld [vmem:[%s7 + $0x110] sm:$0xff]
      %v3296 = vld [vmem:[%s7 + $0x118] sm:$0xff]
      %v3297 = vld [vmem:[%s7 + $0x120] sm:$0xff]
      %v3298 = vld [vmem:[%s7 + $0x128] sm:$0xff]
      %v3299 = vld [vmem:[%s7 + $0x130] sm:$0xff]
      %v3300 = vld [vmem:[%s7 + $0x138] sm:$0xff]
      %v3301 = vld [vmem:[%s7 + $0x140] sm:$0xff]
      %v3302 = vld [vmem:[%s7 + $0x148] sm:$0xff]
      %v3303 = vld [vmem:[%s7 + $0x150] sm:$0xff]
      %v3304 = vld [vmem:[%s7 + $0x158] sm:$0xff]
      %v3305 = vld [vmem:[%s7 + $0x160] sm:$0xff]
      %v3306 = vld [vmem:[%s7 + $0x168] sm:$0xff]
      %v3307 = vld [vmem:[%s7 + $0x170] sm:$0xff]
      %v3308 = vld [vmem:[%s7 + $0x178] sm:$0xff]
      %v3309 = vld [vmem:[%s7 + $0x180] sm:$0xff]
      %v3310 = vld [vmem:[%s7 + $0x188] sm:$0xff]
      %v3311 = vld [vmem:[%s7 + $0x190] sm:$0xff]
      %v3312 = vld [vmem:[%s7 + $0x198] sm:$0xff]
      %v3313 = vld [vmem:[%s7 + $0x1a0] sm:$0xff]
      %v3314 = vld [vmem:[%s7 + $0x1a8] sm:$0xff]
      %v3315 = vld [vmem:[%s7 + $0x1b0] sm:$0xff]
      %v3316 = vld [vmem:[%s7 + $0x1b8] sm:$0xff]
      %v3317 = vld [vmem:[%s7 + $0x1c0] sm:$0xff]
      %v3318 = vld [vmem:[%s7 + $0x1c8] sm:$0xff]
      %v3319 = vld [vmem:[%s7 + $0x1d0] sm:$0xff]
      %v3320 = vld [vmem:[%s7 + $0x1d8] sm:$0xff]
      %v3321 = vld [vmem:[%s7 + $0x1e0] sm:$0xff]
      %v3322 = vld [vmem:[%s7 + $0x1e8] sm:$0xff]
      %v3323 = vld [vmem:[%s7 + $0x1f0] sm:$0xff]
      %v3324 = vld [vmem:[%s7 + $0x1f8] sm:$0xff]
      %v3325 = vld [vmem:[%s8] sm:$0xf]
      %v3327 = vlaneseq
      %v3328 = vshrl.u32 %v3327, 7
      %v3329 = vsub.s32 0, %v3328
      %v3330 = vrot.slane %v3325, %v3329
      %v3331 = vlaneseq
      %v3332 = vshrl.u32 %v3331, 7
      %v3333 = vsub.s32 1, %v3332
      %v3334 = vrot.slane %v3325, %v3333
      %v3335 = vlaneseq
      %v3336 = vshrl.u32 %v3335, 7
      %v3337 = vsub.s32 2, %v3336
      %v3338 = vrot.slane %v3325, %v3337
      %v3339 = vlaneseq
      %v3340 = vshrl.u32 %v3339, 7
      %v3341 = vsub.s32 3, %v3340
      %v3342 = vrot.slane %v3325, %v3341
      %v3411 = vunpack.c.l.b16 %v3261
      %v3412 = vunpack.c.h.b16 %v3261
      %v3413 = vunpack.c.l.b16 %v3262
      %v3414 = vunpack.c.h.b16 %v3262
      %v3415 = vunpack.c.l.b16 %v3263
      %v3416 = vunpack.c.h.b16 %v3263
      %v3417 = vunpack.c.l.b16 %v3264
      %v3418 = vunpack.c.h.b16 %v3264
      %v3419 = vunpack.c.l.b16 %v3265
      %v3420 = vunpack.c.h.b16 %v3265
      %v3421 = vunpack.c.l.b16 %v3266
      %v3422 = vunpack.c.h.b16 %v3266
      %v3423 = vunpack.c.l.b16 %v3267
      %v3424 = vunpack.c.h.b16 %v3267
      %v3425 = vunpack.c.l.b16 %v3268
      %v3426 = vunpack.c.h.b16 %v3268
      %v3427 = vunpack.c.l.b16 %v3269
      %v3428 = vunpack.c.h.b16 %v3269
      %v3429 = vunpack.c.l.b16 %v3270
      %v3430 = vunpack.c.h.b16 %v3270
      %v3431 = vunpack.c.l.b16 %v3271
      %v3432 = vunpack.c.h.b16 %v3271
      %v3433 = vunpack.c.l.b16 %v3272
      %v3434 = vunpack.c.h.b16 %v3272
      %v3435 = vunpack.c.l.b16 %v3273
      %v3436 = vunpack.c.h.b16 %v3273
      %v3437 = vunpack.c.l.b16 %v3274
      %v3438 = vunpack.c.h.b16 %v3274
      %v3439 = vunpack.c.l.b16 %v3275
      %v3440 = vunpack.c.h.b16 %v3275
      %v3441 = vunpack.c.l.b16 %v3276
      %v3442 = vunpack.c.h.b16 %v3276
      %v3443 = vunpack.c.l.b16 %v3277
      %v3444 = vunpack.c.h.b16 %v3277
      %v3445 = vunpack.c.l.b16 %v3278
      %v3446 = vunpack.c.h.b16 %v3278
      %v3447 = vunpack.c.l.b16 %v3279
      %v3448 = vunpack.c.h.b16 %v3279
      %v3449 = vunpack.c.l.b16 %v3280
      %v3450 = vunpack.c.h.b16 %v3280
      %v3451 = vunpack.c.l.b16 %v3281
      %v3452 = vunpack.c.h.b16 %v3281
      %v3453 = vunpack.c.l.b16 %v3282
      %v3454 = vunpack.c.h.b16 %v3282
      %v3455 = vunpack.c.l.b16 %v3283
      %v3456 = vunpack.c.h.b16 %v3283
      %v3457 = vunpack.c.l.b16 %v3284
      %v3458 = vunpack.c.h.b16 %v3284
      %v3459 = vunpack.c.l.b16 %v3285
      %v3460 = vunpack.c.h.b16 %v3285
      %v3461 = vunpack.c.l.b16 %v3286
      %v3462 = vunpack.c.h.b16 %v3286
      %v3463 = vunpack.c.l.b16 %v3287
      %v3464 = vunpack.c.h.b16 %v3287
      %v3465 = vunpack.c.l.b16 %v3288
      %v3466 = vunpack.c.h.b16 %v3288
      %v3467 = vunpack.c.l.b16 %v3289
      %v3468 = vunpack.c.h.b16 %v3289
      %v3469 = vunpack.c.l.b16 %v3290
      %v3470 = vunpack.c.h.b16 %v3290
      %v3471 = vunpack.c.l.b16 %v3291
      %v3472 = vunpack.c.h.b16 %v3291
      %v3473 = vunpack.c.l.b16 %v3292
      %v3474 = vunpack.c.h.b16 %v3292
      %v3475 = vunpack.c.l.b16 %v3293
      %v3476 = vunpack.c.h.b16 %v3293
      %v3477 = vunpack.c.l.b16 %v3294
      %v3478 = vunpack.c.h.b16 %v3294
      %v3479 = vunpack.c.l.b16 %v3295
      %v3480 = vunpack.c.h.b16 %v3295
      %v3481 = vunpack.c.l.b16 %v3296
      %v3482 = vunpack.c.h.b16 %v3296
      %v3483 = vunpack.c.l.b16 %v3297
      %v3484 = vunpack.c.h.b16 %v3297
      %v3485 = vunpack.c.l.b16 %v3298
      %v3486 = vunpack.c.h.b16 %v3298
      %v3487 = vunpack.c.l.b16 %v3299
      %v3488 = vunpack.c.h.b16 %v3299
      %v3489 = vunpack.c.l.b16 %v3300
      %v3490 = vunpack.c.h.b16 %v3300
      %v3491 = vunpack.c.l.b16 %v3301
      %v3492 = vunpack.c.h.b16 %v3301
      %v3493 = vunpack.c.l.b16 %v3302
      %v3494 = vunpack.c.h.b16 %v3302
      %v3495 = vunpack.c.l.b16 %v3303
      %v3496 = vunpack.c.h.b16 %v3303
      %v3497 = vunpack.c.l.b16 %v3304
      %v3498 = vunpack.c.h.b16 %v3304
      %v3499 = vunpack.c.l.b16 %v3305
      %v3500 = vunpack.c.h.b16 %v3305
      %v3501 = vunpack.c.l.b16 %v3306
      %v3502 = vunpack.c.h.b16 %v3306
      %v3503 = vunpack.c.l.b16 %v3307
      %v3504 = vunpack.c.h.b16 %v3307
      %v3505 = vunpack.c.l.b16 %v3308
      %v3506 = vunpack.c.h.b16 %v3308
      %v3507 = vunpack.c.l.b16 %v3309
      %v3508 = vunpack.c.h.b16 %v3309
      %v3509 = vunpack.c.l.b16 %v3310
      %v3510 = vunpack.c.h.b16 %v3310
      %v3511 = vunpack.c.l.b16 %v3311
      %v3512 = vunpack.c.h.b16 %v3311
      %v3513 = vunpack.c.l.b16 %v3312
      %v3514 = vunpack.c.h.b16 %v3312
      %v3515 = vunpack.c.l.b16 %v3313
      %v3516 = vunpack.c.h.b16 %v3313
      %v3517 = vunpack.c.l.b16 %v3314
      %v3518 = vunpack.c.h.b16 %v3314
      %v3519 = vunpack.c.l.b16 %v3315
      %v3520 = vunpack.c.h.b16 %v3315
      %v3521 = vunpack.c.l.b16 %v3316
      %v3522 = vunpack.c.h.b16 %v3316
      %v3523 = vunpack.c.l.b16 %v3317
      %v3524 = vunpack.c.h.b16 %v3317
      %v3525 = vunpack.c.l.b16 %v3318
      %v3526 = vunpack.c.h.b16 %v3318
      %v3527 = vunpack.c.l.b16 %v3319
      %v3528 = vunpack.c.h.b16 %v3319
      %v3529 = vunpack.c.l.b16 %v3320
      %v3530 = vunpack.c.h.b16 %v3320
      %v3531 = vunpack.c.l.b16 %v3321
      %v3532 = vunpack.c.h.b16 %v3321
      %v3533 = vunpack.c.l.b16 %v3322
      %v3534 = vunpack.c.h.b16 %v3322
      %v3535 = vunpack.c.l.b16 %v3323
      %v3536 = vunpack.c.h.b16 %v3323
      %v3537 = vunpack.c.l.b16 %v3324
      %v3538 = vunpack.c.h.b16 %v3324
      %v3539 = vpack.c.b16 %v3415, %v3411
      %v3540 = vpack.c.b16 %v3416, %v3412
      %v3541 = vpack.c.b16 %v3417, %v3413
      %v3542 = vpack.c.b16 %v3418, %v3414
      %v3543 = vpack.c.b16 %v3423, %v3419
      %v3544 = vpack.c.b16 %v3424, %v3420
      %v3545 = vpack.c.b16 %v3425, %v3421
      %v3546 = vpack.c.b16 %v3426, %v3422
      %v3547 = vpack.c.b16 %v3431, %v3427
      %v3548 = vpack.c.b16 %v3432, %v3428
      %v3549 = vpack.c.b16 %v3433, %v3429
      %v3550 = vpack.c.b16 %v3434, %v3430
      %v3551 = vpack.c.b16 %v3439, %v3435
      %v3552 = vpack.c.b16 %v3440, %v3436
      %v3553 = vpack.c.b16 %v3441, %v3437
      %v3554 = vpack.c.b16 %v3442, %v3438
      %v3555 = vpack.c.b16 %v3447, %v3443
      %v3556 = vpack.c.b16 %v3448, %v3444
      %v3557 = vpack.c.b16 %v3449, %v3445
      %v3558 = vpack.c.b16 %v3450, %v3446
      %v3559 = vpack.c.b16 %v3455, %v3451
      %v3560 = vpack.c.b16 %v3456, %v3452
      %v3561 = vpack.c.b16 %v3457, %v3453
      %v3562 = vpack.c.b16 %v3458, %v3454
      %v3563 = vpack.c.b16 %v3463, %v3459
      %v3564 = vpack.c.b16 %v3464, %v3460
      %v3565 = vpack.c.b16 %v3465, %v3461
      %v3566 = vpack.c.b16 %v3466, %v3462
      %v3567 = vpack.c.b16 %v3471, %v3467
      %v3568 = vpack.c.b16 %v3472, %v3468
      %v3569 = vpack.c.b16 %v3473, %v3469
      %v3570 = vpack.c.b16 %v3474, %v3470
      %v3571 = vpack.c.b16 %v3479, %v3475
      %v3572 = vpack.c.b16 %v3480, %v3476
      %v3573 = vpack.c.b16 %v3481, %v3477
      %v3574 = vpack.c.b16 %v3482, %v3478
      %v3575 = vpack.c.b16 %v3487, %v3483
      %v3576 = vpack.c.b16 %v3488, %v3484
      %v3577 = vpack.c.b16 %v3489, %v3485
      %v3578 = vpack.c.b16 %v3490, %v3486
      %v3579 = vpack.c.b16 %v3495, %v3491
      %v3580 = vpack.c.b16 %v3496, %v3492
      %v3581 = vpack.c.b16 %v3497, %v3493
      %v3582 = vpack.c.b16 %v3498, %v3494
      %v3583 = vpack.c.b16 %v3503, %v3499
      %v3584 = vpack.c.b16 %v3504, %v3500
      %v3585 = vpack.c.b16 %v3505, %v3501
      %v3586 = vpack.c.b16 %v3506, %v3502
      %v3587 = vpack.c.b16 %v3511, %v3507
      %v3588 = vpack.c.b16 %v3512, %v3508
      %v3589 = vpack.c.b16 %v3513, %v3509
      %v3590 = vpack.c.b16 %v3514, %v3510
      %v3591 = vpack.c.b16 %v3519, %v3515
      %v3592 = vpack.c.b16 %v3520, %v3516
      %v3593 = vpack.c.b16 %v3521, %v3517
      %v3594 = vpack.c.b16 %v3522, %v3518
      %v3595 = vpack.c.b16 %v3527, %v3523
      %v3596 = vpack.c.b16 %v3528, %v3524
      %v3597 = vpack.c.b16 %v3529, %v3525
      %v3598 = vpack.c.b16 %v3530, %v3526
      %v3599 = vpack.c.b16 %v3535, %v3531
      %v3600 = vpack.c.b16 %v3536, %v3532
      %v3601 = vpack.c.b16 %v3537, %v3533
      %v3602 = vpack.c.b16 %v3538, %v3534
      %3667 = vmatprep.subr.bf16.mxu0 %v3540
      %3668 = vmatpush1.bf16.msra.mxu0 %v3539
      %3669 = vmatprep.subr.bf16.mxu0 %v3544
      %3670 = vmatpush1.bf16.msra.mxu0 %v3543
      %3671 = vmatprep.subr.bf16.mxu0 %v3548
      %3672 = vmatpush1.bf16.msra.mxu0 %v3547
      %3673 = vmatprep.subr.bf16.mxu0 %v3552
      %3674 = vmatpush1.bf16.msra.mxu0 %v3551
      %3675 = vmatprep.subr.bf16.mxu0 %v3556
      %3676 = vmatpush1.bf16.msra.mxu0 %v3555
      %3677 = vmatprep.subr.bf16.mxu0 %v3560
      %3678 = vmatpush1.bf16.msra.mxu0 %v3559
      %3679 = vmatprep.subr.bf16.mxu0 %v3564
      %3680 = vmatpush1.bf16.msra.mxu0 %v3563
      %3681 = vmatprep.subr.bf16.mxu0 %v3568
      %3682 = vmatpush1.bf16.msra.mxu0 %v3567
      %3683 = vmatprep.subr.bf16.mxu0 %v3572
      %3684 = vmatpush1.bf16.msra.mxu0 %v3571
      %3685 = vmatprep.subr.bf16.mxu0 %v3576
      %3686 = vmatpush1.bf16.msra.mxu0 %v3575
      %3687 = vmatprep.subr.bf16.mxu0 %v3580
      %3688 = vmatpush1.bf16.msra.mxu0 %v3579
      %3689 = vmatprep.subr.bf16.mxu0 %v3584
      %3690 = vmatpush1.bf16.msra.mxu0 %v3583
      %3691 = vmatprep.subr.bf16.mxu0 %v3588
      %3692 = vmatpush1.bf16.msra.mxu0 %v3587
      %3693 = vmatprep.subr.bf16.mxu0 %v3592
      %3694 = vmatpush1.bf16.msra.mxu0 %v3591
      %3695 = vmatprep.subr.bf16.mxu0 %v3596
      %3696 = vmatpush1.bf16.msra.mxu0 %v3595
      %3697 = vmatprep.subr.bf16.mxu0 %v3600
      %3698 = vmatpush1.bf16.msra.mxu0 %v3599
      %3699 = vmatprep.mubr.bf16.mxu0 %v3260
      %3700 = vmatmul.mubr.bf16.gmra.mrb[0].mxu0 %v3259
      %v3701 = vpop.f32.mrb[0].mxu0
      %v3702 = vadd.f32 %v3330, %v3701
      %v3703 = vpop.f32.mrb[0].mxu0
      %v3704 = vadd.f32 %v3334, %v3703
      %v3705 = vpop.f32.mrb[0].mxu0
      %v3706 = vpop.f32.mrb[0].mxu0
      %3707 = vdwg.mxu0
      %3708 = vmatprep.subr.bf16.mxu0 %v3542
      %3709 = vmatpush1.bf16.msra.mxu0 %v3541
      %3710 = vmatprep.subr.bf16.mxu0 %v3546
      %3711 = vmatpush1.bf16.msra.mxu0 %v3545
      %3712 = vmatprep.subr.bf16.mxu0 %v3550
      %3713 = vmatpush1.bf16.msra.mxu0 %v3549
      %3714 = vmatprep.subr.bf16.mxu0 %v3554
      %3715 = vmatpush1.bf16.msra.mxu0 %v3553
      %3716 = vmatprep.subr.bf16.mxu0 %v3558
      %3717 = vmatpush1.bf16.msra.mxu0 %v3557
      %3718 = vmatprep.subr.bf16.mxu0 %v3562
      %3719 = vmatpush1.bf16.msra.mxu0 %v3561
      %3720 = vmatprep.subr.bf16.mxu0 %v3566
      %3721 = vmatpush1.bf16.msra.mxu0 %v3565
      %3722 = vmatprep.subr.bf16.mxu0 %v3570
      %3723 = vmatpush1.bf16.msra.mxu0 %v3569
      %3724 = vmatprep.subr.bf16.mxu0 %v3574
      %3725 = vmatpush1.bf16.msra.mxu0 %v3573
      %3726 = vmatprep.subr.bf16.mxu0 %v3578
      %3727 = vmatpush1.bf16.msra.mxu0 %v3577
      %3728 = vmatprep.subr.bf16.mxu0 %v3582
      %3729 = vmatpush1.bf16.msra.mxu0 %v3581
      %3730 = vmatprep.subr.bf16.mxu0 %v3586
      %3731 = vmatpush1.bf16.msra.mxu0 %v3585
      %3732 = vmatprep.subr.bf16.mxu0 %v3590
      %3733 = vmatpush1.bf16.msra.mxu0 %v3589
      %3734 = vmatprep.subr.bf16.mxu0 %v3594
      %3735 = vmatpush1.bf16.msra.mxu0 %v3593
      %3736 = vmatprep.subr.bf16.mxu0 %v3598
      %3737 = vmatpush1.bf16.msra.mxu0 %v3597
      %3738 = vmatprep.subr.bf16.mxu0 %v3602
      %3739 = vmatpush1.bf16.msra.mxu0 %v3601
      %3740 = vmatprep.mubr.bf16.mxu0 %v3260
      %3741 = vmatmul.mubr.bf16.gmra.mrb[0].mxu0 %v3259
      %v3742 = vpop.f32.mrb[0].mxu0
      %v3743 = vadd.f32 %v3338, %v3742
      %v3744 = vpop.f32.mrb[0].mxu0
      %v3745 = vadd.f32 %v3342, %v3744
      %v3746 = vpop.f32.mrb[0].mxu0
      %v3747 = vpop.f32.mrb[0].mxu0
      %3748 = vdwg.mxu0
      %v3749 = vmax.f32 %v3702, 0.0
      %v3750 = vmax.f32 %v3704, 0.0
      %v3751 = vmax.f32 %v3743, 0.0
      %v3752 = vmax.f32 %v3745, 0.0
      %v3753 = vpack.c.bf16 %v3749, %v3749
      %v3754 = vpack.c.bf16 %v3750, %v3750
      %v3755 = vpack.c.bf16 %v3751, %v3751
      %v3756 = vpack.c.bf16 %v3752, %v3752
      %v3757 = vld [vmem:[%s9] sm:$0xf]
      %v3758 = vld [vmem:[%s9 + $0x4] sm:$0xf]
      %v3759 = vld [vmem:[%s9 + $0x8] sm:$0xf]
      %v3760 = vld [vmem:[%s9 + $0xc] sm:$0xf]
      %v3761 = vld [vmem:[%s9 + $0x10] sm:$0xf]
      %v3762 = vld [vmem:[%s9 + $0x14] sm:$0xf]
      %v3763 = vld [vmem:[%s9 + $0x18] sm:$0xf]
      %v3764 = vld [vmem:[%s9 + $0x1c] sm:$0xf]
      %v3765 = vld [vmem:[%s9 + $0x20] sm:$0xf]
      %v3766 = vld [vmem:[%s9 + $0x24] sm:$0xf]
      %v3767 = vld [vmem:[%s9 + $0x28] sm:$0xf]
      %v3768 = vld [vmem:[%s9 + $0x2c] sm:$0xf]
      %v3769 = vld [vmem:[%s9 + $0x30] sm:$0xf]
      %v3770 = vld [vmem:[%s9 + $0x34] sm:$0xf]
      %v3771 = vld [vmem:[%s9 + $0x38] sm:$0xf]
      %v3772 = vld [vmem:[%s9 + $0x3c] sm:$0xf]
      %v3773 = vld [vmem:[%s9 + $0x40] sm:$0xf]
      %v3774 = vld [vmem:[%s9 + $0x44] sm:$0xf]
      %v3775 = vld [vmem:[%s9 + $0x48] sm:$0xf]
      %v3776 = vld [vmem:[%s9 + $0x4c] sm:$0xf]
      %v3777 = vld [vmem:[%s9 + $0x50] sm:$0xf]
      %v3778 = vld [vmem:[%s9 + $0x54] sm:$0xf]
      %v3779 = vld [vmem:[%s9 + $0x58] sm:$0xf]
      %v3780 = vld [vmem:[%s9 + $0x5c] sm:$0xf]
      %v3781 = vld [vmem:[%s9 + $0x60] sm:$0xf]
      %v3782 = vld [vmem:[%s9 + $0x64] sm:$0xf]
      %v3783 = vld [vmem:[%s9 + $0x68] sm:$0xf]
      %v3784 = vld [vmem:[%s9 + $0x6c] sm:$0xf]
      %v3785 = vld [vmem:[%s9 + $0x70] sm:$0xf]
      %v3786 = vld [vmem:[%s9 + $0x74] sm:$0xf]
      %v3787 = vld [vmem:[%s9 + $0x78] sm:$0xf]
      %v3788 = vld [vmem:[%s9 + $0x7c] sm:$0xf]
      %v3789 = vld [vmem:[%s9 + $0x80] sm:$0xf]
      %v3790 = vld [vmem:[%s9 + $0x84] sm:$0xf]
      %v3791 = vld [vmem:[%s9 + $0x88] sm:$0xf]
      %v3792 = vld [vmem:[%s9 + $0x8c] sm:$0xf]
      %v3793 = vld [vmem:[%s9 + $0x90] sm:$0xf]
      %v3794 = vld [vmem:[%s9 + $0x94] sm:$0xf]
      %v3795 = vld [vmem:[%s9 + $0x98] sm:$0xf]
      %v3796 = vld [vmem:[%s9 + $0x9c] sm:$0xf]
      %v3797 = vld [vmem:[%s9 + $0xa0] sm:$0xf]
      %v3798 = vld [vmem:[%s9 + $0xa4] sm:$0xf]
      %v3799 = vld [vmem:[%s9 + $0xa8] sm:$0xf]
      %v3800 = vld [vmem:[%s9 + $0xac] sm:$0xf]
      %v3801 = vld [vmem:[%s9 + $0xb0] sm:$0xf]
      %v3802 = vld [vmem:[%s9 + $0xb4] sm:$0xf]
      %v3803 = vld [vmem:[%s9 + $0xb8] sm:$0xf]
      %v3804 = vld [vmem:[%s9 + $0xbc] sm:$0xf]
      %v3805 = vld [vmem:[%s9 + $0xc0] sm:$0xf]
      %v3806 = vld [vmem:[%s9 + $0xc4] sm:$0xf]
      %v3807 = vld [vmem:[%s9 + $0xc8] sm:$0xf]
      %v3808 = vld [vmem:[%s9 + $0xcc] sm:$0xf]
      %v3809 = vld [vmem:[%s9 + $0xd0] sm:$0xf]
      %v3810 = vld [vmem:[%s9 + $0xd4] sm:$0xf]
      %v3811 = vld [vmem:[%s9 + $0xd8] sm:$0xf]
      %v3812 = vld [vmem:[%s9 + $0xdc] sm:$0xf]
      %v3813 = vld [vmem:[%s9 + $0xe0] sm:$0xf]
      %v3814 = vld [vmem:[%s9 + $0xe4] sm:$0xf]
      %v3815 = vld [vmem:[%s9 + $0xe8] sm:$0xf]
      %v3816 = vld [vmem:[%s9 + $0xec] sm:$0xf]
      %v3817 = vld [vmem:[%s9 + $0xf0] sm:$0xf]
      %v3818 = vld [vmem:[%s9 + $0xf4] sm:$0xf]
      %v3819 = vld [vmem:[%s9 + $0xf8] sm:$0xf]
      %v3820 = vld [vmem:[%s9 + $0xfc] sm:$0xf]
      %v3821 = vld [vmem:[%s10] sm:$0x1]
      %v3823 = vlaneseq
      %v3824 = vshrl.u32 %v3823, 7
      %v3825 = vsub.s32 0, %v3824
      %v3826 = vrot.slane %v3821, %v3825
      %v3892 = vunpack.c.l.b16 %v3757
      %v3893 = vunpack.c.l.b16 %v3758
      %v3894 = vunpack.c.l.b16 %v3759
      %v3895 = vunpack.c.l.b16 %v3760
      %v3896 = vunpack.c.l.b16 %v3761
      %v3897 = vunpack.c.l.b16 %v3762
      %v3898 = vunpack.c.l.b16 %v3763
      %v3899 = vunpack.c.l.b16 %v3764
      %v3900 = vunpack.c.l.b16 %v3765
      %v3901 = vunpack.c.l.b16 %v3766
      %v3902 = vunpack.c.l.b16 %v3767
      %v3903 = vunpack.c.l.b16 %v3768
      %v3904 = vunpack.c.l.b16 %v3769
      %v3905 = vunpack.c.l.b16 %v3770
      %v3906 = vunpack.c.l.b16 %v3771
      %v3907 = vunpack.c.l.b16 %v3772
      %v3908 = vunpack.c.l.b16 %v3773
      %v3909 = vunpack.c.l.b16 %v3774
      %v3910 = vunpack.c.l.b16 %v3775
      %v3911 = vunpack.c.l.b16 %v3776
      %v3912 = vunpack.c.l.b16 %v3777
      %v3913 = vunpack.c.l.b16 %v3778
      %v3914 = vunpack.c.l.b16 %v3779
      %v3915 = vunpack.c.l.b16 %v3780
      %v3916 = vunpack.c.l.b16 %v3781
      %v3917 = vunpack.c.l.b16 %v3782
      %v3918 = vunpack.c.l.b16 %v3783
      %v3919 = vunpack.c.l.b16 %v3784
      %v3920 = vunpack.c.l.b16 %v3785
      %v3921 = vunpack.c.l.b16 %v3786
      %v3922 = vunpack.c.l.b16 %v3787
      %v3923 = vunpack.c.l.b16 %v3788
      %v3924 = vunpack.c.l.b16 %v3789
      %v3925 = vunpack.c.l.b16 %v3790
      %v3926 = vunpack.c.l.b16 %v3791
      %v3927 = vunpack.c.l.b16 %v3792
      %v3928 = vunpack.c.l.b16 %v3793
      %v3929 = vunpack.c.l.b16 %v3794
      %v3930 = vunpack.c.l.b16 %v3795
      %v3931 = vunpack.c.l.b16 %v3796
      %v3932 = vunpack.c.l.b16 %v3797
      %v3933 = vunpack.c.l.b16 %v3798
      %v3934 = vunpack.c.l.b16 %v3799
      %v3935 = vunpack.c.l.b16 %v3800
      %v3936 = vunpack.c.l.b16 %v3801
      %v3937 = vunpack.c.l.b16 %v3802
      %v3938 = vunpack.c.l.b16 %v3803
      %v3939 = vunpack.c.l.b16 %v3804
      %v3940 = vunpack.c.l.b16 %v3805
      %v3941 = vunpack.c.l.b16 %v3806
      %v3942 = vunpack.c.l.b16 %v3807
      %v3943 = vunpack.c.l.b16 %v3808
      %v3944 = vunpack.c.l.b16 %v3809
      %v3945 = vunpack.c.l.b16 %v3810
      %v3946 = vunpack.c.l.b16 %v3811
      %v3947 = vunpack.c.l.b16 %v3812
      %v3948 = vunpack.c.l.b16 %v3813
      %v3949 = vunpack.c.l.b16 %v3814
      %v3950 = vunpack.c.l.b16 %v3815
      %v3951 = vunpack.c.l.b16 %v3816
      %v3952 = vunpack.c.l.b16 %v3817
      %v3953 = vunpack.c.l.b16 %v3818
      %v3954 = vunpack.c.l.b16 %v3819
      %v3955 = vunpack.c.l.b16 %v3820
      %v3956 = vpack.c.b16 %v3893, %v3892
      %v3957 = vpack.c.b16 %v3895, %v3894
      %v3958 = vpack.c.b16 %v3897, %v3896
      %v3959 = vpack.c.b16 %v3899, %v3898
      %v3960 = vpack.c.b16 %v3901, %v3900
      %v3961 = vpack.c.b16 %v3903, %v3902
      %v3962 = vpack.c.b16 %v3905, %v3904
      %v3963 = vpack.c.b16 %v3907, %v3906
      %v3964 = vpack.c.b16 %v3909, %v3908
      %v3965 = vpack.c.b16 %v3911, %v3910
      %v3966 = vpack.c.b16 %v3913, %v3912
      %v3967 = vpack.c.b16 %v3915, %v3914
      %v3968 = vpack.c.b16 %v3917, %v3916
      %v3969 = vpack.c.b16 %v3919, %v3918
      %v3970 = vpack.c.b16 %v3921, %v3920
      %v3971 = vpack.c.b16 %v3923, %v3922
      %v3972 = vpack.c.b16 %v3925, %v3924
      %v3973 = vpack.c.b16 %v3927, %v3926
      %v3974 = vpack.c.b16 %v3929, %v3928
      %v3975 = vpack.c.b16 %v3931, %v3930
      %v3976 = vpack.c.b16 %v3933, %v3932
      %v3977 = vpack.c.b16 %v3935, %v3934
      %v3978 = vpack.c.b16 %v3937, %v3936
      %v3979 = vpack.c.b16 %v3939, %v3938
      %v3980 = vpack.c.b16 %v3941, %v3940
      %v3981 = vpack.c.b16 %v3943, %v3942
      %v3982 = vpack.c.b16 %v3945, %v3944
      %v3983 = vpack.c.b16 %v3947, %v3946
      %v3984 = vpack.c.b16 %v3949, %v3948
      %v3985 = vpack.c.b16 %v3951, %v3950
      %v3986 = vpack.c.b16 %v3953, %v3952
      %v3987 = vpack.c.b16 %v3955, %v3954
      %4020 = vmatprep.subr.bf16.mxu0 0
      %4021 = vmatpush1.bf16.msra.mxu0 %v3956
      %4022 = vmatprep.subr.bf16.mxu0 0
      %4023 = vmatpush1.bf16.msra.mxu0 %v3957
      %4024 = vmatprep.subr.bf16.mxu0 0
      %4025 = vmatpush1.bf16.msra.mxu0 %v3958
      %4026 = vmatprep.subr.bf16.mxu0 0
      %4027 = vmatpush1.bf16.msra.mxu0 %v3959
      %4028 = vmatprep.subr.bf16.mxu0 0
      %4029 = vmatpush1.bf16.msra.mxu0 %v3960
      %4030 = vmatprep.subr.bf16.mxu0 0
      %4031 = vmatpush1.bf16.msra.mxu0 %v3961
      %4032 = vmatprep.subr.bf16.mxu0 0
      %4033 = vmatpush1.bf16.msra.mxu0 %v3962
      %4034 = vmatprep.subr.bf16.mxu0 0
      %4035 = vmatpush1.bf16.msra.mxu0 %v3963
      %4036 = vmatprep.subr.bf16.mxu0 0
      %4037 = vmatpush1.bf16.msra.mxu0 %v3964
      %4038 = vmatprep.subr.bf16.mxu0 0
      %4039 = vmatpush1.bf16.msra.mxu0 %v3965
      %4040 = vmatprep.subr.bf16.mxu0 0
      %4041 = vmatpush1.bf16.msra.mxu0 %v3966
      %4042 = vmatprep.subr.bf16.mxu0 0
      %4043 = vmatpush1.bf16.msra.mxu0 %v3967
      %4044 = vmatprep.subr.bf16.mxu0 0
      %4045 = vmatpush1.bf16.msra.mxu0 %v3968
      %4046 = vmatprep.subr.bf16.mxu0 0
      %4047 = vmatpush1.bf16.msra.mxu0 %v3969
      %4048 = vmatprep.subr.bf16.mxu0 0
      %4049 = vmatpush1.bf16.msra.mxu0 %v3970
      %4050 = vmatprep.subr.bf16.mxu0 0
      %4051 = vmatpush1.bf16.msra.mxu0 %v3971
      %4052 = vmatprep.mubr.bf16.mxu0 %v3754
      %4053 = vmatmul.mubr.bf16.gmra.mrb[0].mxu0 %v3753
      %v4054 = vpop.f32.mrb[0].mxu0
      %v4055 = vadd.f32 %v3826, %v4054
      %v4056 = vpop.f32.mrb[0].mxu0
      %v4057 = vpop.f32.mrb[0].mxu0
      %v4058 = vpop.f32.mrb[0].mxu0
      %4059 = vdwg.mxu0
      %4060 = vmatprep.subr.bf16.mxu0 0
      %4061 = vmatpush1.bf16.msra.mxu0 %v3972
      %4062 = vmatprep.subr.bf16.mxu0 0
      %4063 = vmatpush1.bf16.msra.mxu0 %v3973
      %4064 = vmatprep.subr.bf16.mxu0 0
      %4065 = vmatpush1.bf16.msra.mxu0 %v3974
      %4066 = vmatprep.subr.bf16.mxu0 0
      %4067 = vmatpush1.bf16.msra.mxu0 %v3975
      %4068 = vmatprep.subr.bf16.mxu0 0
      %4069 = vmatpush1.bf16.msra.mxu0 %v3976
      %4070 = vmatprep.subr.bf16.mxu0 0
      %4071 = vmatpush1.bf16.msra.mxu0 %v3977
      %4072 = vmatprep.subr.bf16.mxu0 0
      %4073 = vmatpush1.bf16.msra.mxu0 %v3978
      %4074 = vmatprep.subr.bf16.mxu0 0
      %4075 = vmatpush1.bf16.msra.mxu0 %v3979
      %4076 = vmatprep.subr.bf16.mxu0 0
      %4077 = vmatpush1.bf16.msra.mxu0 %v3980
      %4078 = vmatprep.subr.bf16.mxu0 0
      %4079 = vmatpush1.bf16.msra.mxu0 %v3981
      %4080 = vmatprep.subr.bf16.mxu0 0
      %4081 = vmatpush1.bf16.msra.mxu0 %v3982
      %4082 = vmatprep.subr.bf16.mxu0 0
      %4083 = vmatpush1.bf16.msra.mxu0 %v3983
      %4084 = vmatprep.subr.bf16.mxu0 0
      %4085 = vmatpush1.bf16.msra.mxu0 %v3984
      %4086 = vmatprep.subr.bf16.mxu0 0
      %4087 = vmatpush1.bf16.msra.mxu0 %v3985
      %4088 = vmatprep.subr.bf16.mxu0 0
      %4089 = vmatpush1.bf16.msra.mxu0 %v3986
      %4090 = vmatprep.subr.bf16.mxu0 0
      %4091 = vmatpush1.bf16.msra.mxu0 %v3987
      %4092 = vmatprep.mubr.bf16.mxu0 %v3756
      %4093 = vmatmul.mubr.bf16.gmra.mrb[0].mxu0 %v3755
      %v4094 = vpop.f32.mrb[0].mxu0
      %v4095 = vadd.f32 %v4055, %v4094
      %v4096 = vpop.f32.mrb[0].mxu0
      %v4097 = vpop.f32.mrb[0].mxu0
      %v4098 = vpop.f32.mrb[0].mxu0
      %4099 = vdwg.mxu0
      %4100 = vst [vmem:[%s389] sm:$0xff] %v4095
      %p4101 = scmp.lt.s32.totalorder %s22, 1
      %s4102 = scalar_select %p4101, %s22, 1
      %s4103 = smul.addr %s4102, 8
      %s4104 = scalar_lea.vmem %s11, %s4103
      // Predicated region
      $region65: #{forward.1} parent=63 // pred_check
        %p4105 = pneg %p276
      $region66: #{forward.1} parent=63 // pred_check_branch
        %4107 = sbr.rel (%p4105) target = $region68
      $region67: #{forward.1} parent=63 // pred_region
        _
      $region68: #{forward.1} parent=63 // pred_fallthru
        _
    $region64: #{forward.1} parent=5 // pred_fallthru
      _
    %p4108 = scmp.le.s32.totalorder 2, %s17
    // Predicated region
    $region69: #{forward.1} parent=5 // pred_check
      %p4109 = pneg %p4108
    $region70: #{forward.1} parent=5 // pred_check_branch
      %4111 = sbr.rel (%p4109) target = $region72
    $region71: #{forward.1} parent=5 // pred_region
      %s4112 = ssub.s32 %s17, 2
      // Predicated region
      $region73: #{forward.1} parent=71 // pred_check
        %p4113 = pneg %p282
      $region74: #{forward.1} parent=71 // pred_check_branch
        %4115 = sbr.rel (%p4113) target = $region76
      $region75: #{forward.1} parent=71 // pred_region
        %p4116 = scmp.lt.s32.totalorder %s23, 1
        %s4117 = scalar_select %p4116, %s23, 1
        %s4118 = smul.addr %s4117, 8
        %s4119 = scalar_lea.vmem %s11, %s4118
      $region76: #{forward.1} parent=71 // pred_fallthru
        _
    $region72: #{forward.1} parent=5 // pred_fallthru
      _
  $region6: #{forward.1} parent=0 // loop_footer
    %s21 = sadd.s32 1, %s17
  $region7: #{forward.1} parent=0 // loop_footer_branch
    %16 = sbr.rel target = $region3
  $region8: #{forward.1} parent=0 // loop_exit
    _

</llo_original>
